<compile_context>
chip_gen: v6e
topology: v6e:2x2x1
jax: 0.10.0
libtpu: 0.0.40
codegen_flags: <defaults>
</compile_context>

<pallas_src>
import functools
import math

import jax
import jax.numpy as jnp
import numpy as np
from jax import lax
from jax.experimental import pallas as pl
from jax.experimental.pallas import tpu as pltpu

BN_EPS = 1e-5
F32 = jnp.float32
MM_DTYPE = jnp.bfloat16          # MXU operand dtype (accumulation stays f32)


# ----------------------------------------------------------------------------
# Fused MBConv kernel (one grid step = one image)
# ----------------------------------------------------------------------------
def _mbconv_kernel(*refs, k, stride, wp, n_out_ext, inv_hw, has_expand,
                   has_skip, pad):
    it = iter(refs)
    x_ref = next(it)                     # (1, Hp*Wp, Cin)   f32, spatially padded, flattened
    int_mask_ref = next(it)              # (Hp*Wp, 1)        1.0 inside the image, 0.0 in halo
    valid_mask_ref = next(it)            # (n_out_ext, 1)    1.0 on real output rows
    if has_expand:
        w_exp_ref = next(it)             # (Cin, Cexp)       bf16
        s0_ref = next(it)                # (1, Cexp)
        b0_ref = next(it)                # (1, Cexp)
    w_dw_ref = next(it)                  # (k*k, 1, Cexp)    f32
    s1_ref = next(it)                    # (1, Cexp)
    b1_ref = next(it)                    # (1, Cexp)
    w_se1_ref = next(it)                 # (Csq, Cexp)       f32
    b_se1_ref = next(it)                 # (Csq, 1)
    w_se2_ref = next(it)                 # (Csq, Cexp)       f32
    b_se2_ref = next(it)                 # (1, Cexp)
    w_proj_ref = next(it)                # (Cexp, Cout)      bf16
    s2_ref = next(it)                    # (1, Cout)
    b2_ref = next(it)                    # (1, Cout)
    o_ref = next(it)                     # (1, n_out_ext, Cout)
    ex_scr = next(it)                    # VMEM scratch (Hp*Wp, Cexp) f32

    x_pad = x_ref[0]                                         # (Hp*Wp, Cin)

    # ---- expand 1x1 conv + folded BN + relu6 (MXU), result stays in VMEM ----
    if has_expand:
        ex = jnp.dot(x_pad.astype(w_exp_ref.dtype), w_exp_ref[...],
                     preferred_element_type=jnp.float32)
        ex = ex * s0_ref[...] + b0_ref[...]
        ex = jnp.clip(ex, 0.0, 6.0)
    else:
        ex = x_pad.astype(jnp.float32)
    # re-zero the spatial halo: the depthwise conv needs zeros in its padding
    ex_scr[...] = ex * int_mask_ref[...]

    # ---- depthwise kxk conv via shifted flat VMEM windows + BN + relu6 ------
    cexp = ex_scr.shape[1]
    w_dw = w_dw_ref[...]                                      # (k*k, 1, Cexp)
    acc = jnp.zeros((n_out_ext, cexp), jnp.float32)
    for t in range(k * k):
        off = (t // k) * wp + (t % k)
        if stride == 1:
            tap = ex_scr[pl.ds(off, n_out_ext), :]
        else:
            tap = ex_scr[pl.ds(off, n_out_ext, stride=stride), :]
        acc = acc + tap * w_dw[t]                             # (n_out_ext, Cexp)
    dw = jnp.clip(acc * s1_ref[...] + b1_ref[...], 0.0, 6.0)

    # ---- squeeze & excitation, fully fused -----------------------------------
    valid = valid_mask_ref[...]                               # (n_out_ext, 1)
    pooled = jnp.sum(dw * valid, axis=0, keepdims=True) * inv_hw        # (1, Cexp)
    se = jnp.sum(w_se1_ref[...] * pooled, axis=1, keepdims=True) + b_se1_ref[...]
    se = jnp.maximum(se, 0.0)                                 # (Csq, 1)  (relu)
    gate = jnp.sum(w_se2_ref[...] * se, axis=0, keepdims=True) + b_se2_ref[...]
    gate = jax.nn.sigmoid(gate)                               # (1, Cexp)
    dw = dw * gate

    # ---- project 1x1 conv + folded BN (+ fused residual) (MXU) --------------
    y = jnp.dot(dw.astype(w_proj_ref.dtype), w_proj_ref[...],
                preferred_element_type=jnp.float32)
    y = y * s2_ref[...] + b2_ref[...]
    if has_skip:
        ident = x_ref[0, pl.ds(pad * wp + pad, n_out_ext), :]
        y = y + ident.astype(jnp.float32)
    o_ref[0] = y.astype(o_ref.dtype)


# ----------------------------------------------------------------------------
# Wrapper
# ----------------------------------------------------------------------------
def fold_bn(gamma, beta, mean, var):
    scale = gamma / jnp.sqrt(var + BN_EPS)
    bias = beta - mean * scale
    return scale.astype(F32), bias.astype(F32)


def mbconv_block(x_nchw, params, *, kernel_size, stride, expand_ratio):
    n, cin, h, w = x_nchw.shape
    k = kernel_size
    p = k // 2
    hp, wp = h + 2 * p, w + 2 * p
    ho = (h + 2 * p - k) // stride + 1
    wo = (w + 2 * p - k) // stride + 1
    # extended output rows: row-major over (Ho, Wp); columns >= Wo are scratch
    n_out_ext = (ho - 1) * wp + wo
    cexp = params["w_dw"].shape[1]
    cout = params["w_proj"].shape[1]
    csq = params["w_se1"].shape[0]
    has_expand = expand_ratio != 1
    has_skip = (stride == 1 and cin == cout)

    # crude per-image VMEM footprint check (expanded scratch + live values)
    vmem_est = 4 * (hp * wp * (cin + cexp) + n_out_ext * (2 * cexp + cout)) * 3
    assert vmem_est < 24 * (1 << 20), "re-tile over rows: per-image set too big"

    # NCHW -> zero-padded NHWC, flattened to (N, Hp*Wp, Cin)
    x = jnp.transpose(x_nchw, (0, 2, 3, 1)).astype(F32)
    x = jnp.pad(x, ((0, 0), (p, p), (p, p), (0, 0)))
    x_flat = x.reshape(n, hp * wp, cin)

    # static masks (built host-side; avoids in-kernel integer div/mod)
    rr = np.arange(hp * wp)
    hh, ww = rr // wp, rr % wp
    interior = (hh >= p) & (hh < p + h) & (ww >= p) & (ww < p + w)
    int_mask = jnp.asarray(interior.astype(np.float32).reshape(hp * wp, 1))
    ro = np.arange(n_out_ext)
    valid_mask = jnp.asarray(((ro % wp) < wo).astype(np.float32).reshape(n_out_ext, 1))

    def full(shape):
        return pl.BlockSpec(shape, lambda b, _r=len(shape): (0,) * _r)

    inputs = [x_flat, int_mask, valid_mask]
    in_specs = [
        pl.BlockSpec((1, hp * wp, cin), lambda b: (b, 0, 0)),
        full((hp * wp, 1)),
        full((n_out_ext, 1)),
    ]
    if has_expand:
        inputs += [params["w_exp"].astype(MM_DTYPE),
                   params["s0"].reshape(1, cexp), params["b0"].reshape(1, cexp)]
        in_specs += [full((cin, cexp)), full((1, cexp)), full((1, cexp))]
    inputs += [
        params["w_dw"].reshape(k * k, 1, cexp),
        params["s1"].reshape(1, cexp), params["b1"].reshape(1, cexp),
        params["w_se1"], params["b_se1"].reshape(csq, 1),
        params["w_se2"], params["b_se2"].reshape(1, cexp),
        params["w_proj"].astype(MM_DTYPE),
        params["s2"].reshape(1, cout), params["b2"].reshape(1, cout),
    ]
    in_specs += [
        full((k * k, 1, cexp)),
        full((1, cexp)), full((1, cexp)),
        full((csq, cexp)), full((csq, 1)),
        full((csq, cexp)), full((1, cexp)),
        full((cexp, cout)),
        full((1, cout)), full((1, cout)),
    ]

    kernel = functools.partial(
        _mbconv_kernel, k=k, stride=stride, wp=wp, n_out_ext=n_out_ext,
        inv_hw=1.0 / float(ho * wo), has_expand=has_expand, has_skip=has_skip,
        pad=p)

    out_ext = pl.pallas_call(
        kernel,
        out_shape=jax.ShapeDtypeStruct((n, n_out_ext, cout), F32),
        grid=(n,),
        in_specs=in_specs,
        out_specs=pl.BlockSpec((1, n_out_ext, cout), lambda b: (b, 0, 0)),
        scratch_shapes=[pltpu.VMEM((hp * wp, cexp), jnp.float32)],
        compiler_params=pltpu.CompilerParams(dimension_semantics=("parallel",)),
    )(*inputs)

    # strip the width padding from the extended-row output; return NCHW
    out_full = jnp.pad(out_ext, ((0, 0), (0, ho * wp - n_out_ext), (0, 0)))
    out = out_full.reshape(n, ho, wp, cout)[:, :, :wo, :]
    return jnp.transpose(out, (0, 3, 1, 2))


# ----------------------------------------------------------------------------
# Parameters (random, with BN eval-stats folded) and a pure-JAX reference
# ----------------------------------------------------------------------------
def init_params(key, *, in_channels, out_channels, kernel_size, expand_ratio,
                se_ratio=0.25):
    cexp = in_channels * expand_ratio
    csq = max(1, int(in_channels * se_ratio))
    k = kernel_size
    cnt = [0]

    def nk():
        cnt[0] += 1
        return jax.random.fold_in(key, cnt[0])

    def bn(c):
        gamma = jax.random.uniform(nk(), (c,), F32, 0.5, 1.5)
        beta = jax.random.normal(nk(), (c,), F32) * 0.1
        mean = jax.random.normal(nk(), (c,), F32) * 0.1
        var = jax.random.uniform(nk(), (c,), F32, 0.5, 1.5)
        return fold_bn(gamma, beta, mean, var)

    prm = {}
    if expand_ratio != 1:
        prm["w_exp"] = jax.random.normal(nk(), (in_channels, cexp), F32) * math.sqrt(2.0 / in_channels)
        prm["s0"], prm["b0"] = bn(cexp)
    prm["w_dw"] = jax.random.normal(nk(), (k * k, cexp), F32) * math.sqrt(2.0 / (k * k))
    prm["s1"], prm["b1"] = bn(cexp)
    prm["w_se1"] = jax.random.normal(nk(), (csq, cexp), F32) * math.sqrt(1.0 / cexp)
    prm["b_se1"] = jax.random.normal(nk(), (csq,), F32) * 0.05
    prm["w_se2"] = jax.random.normal(nk(), (csq, cexp), F32) * math.sqrt(1.0 / csq)
    prm["b_se2"] = jax.random.normal(nk(), (cexp,), F32) * 0.05
    prm["w_proj"] = jax.random.normal(nk(), (cexp, out_channels), F32) * math.sqrt(2.0 / cexp)
    prm["s2"], prm["b2"] = bn(out_channels)
    return prm


def mbconv_reference(x_nchw, params, *, kernel_size, stride, expand_ratio):
    k = kernel_size
    p = k // 2
    cexp = params["w_dw"].shape[1]
    cout = params["w_proj"].shape[1]
    x = jnp.transpose(x_nchw, (0, 2, 3, 1)).astype(F32)       # NHWC
    h = x
    if expand_ratio != 1:
        w_exp = params["w_exp"].astype(MM_DTYPE).astype(F32)  # match kernel's bf16 weights
        h = jnp.einsum("nhwc,ce->nhwe", h, w_exp)
        h = jnp.clip(h * params["s0"] + params["b0"], 0.0, 6.0)
    dw_kernel = params["w_dw"].reshape(k, k, 1, cexp)
    h = lax.conv_general_dilated(
        h, dw_kernel, window_strides=(stride, stride),
        padding=[(p, p), (p, p)],
        dimension_numbers=("NHWC", "HWIO", "NHWC"),
        feature_group_count=cexp)
    h = jnp.clip(h * params["s1"] + params["b1"], 0.0, 6.0)
    pooled = jnp.mean(h, axis=(1, 2))                         # (N, Cexp)
    se = jnp.maximum(pooled @ params["w_se1"].T + params["b_se1"], 0.0)
    gate = jax.nn.sigmoid(se @ params["w_se2"] + params["b_se2"])
    h = h * gate[:, None, None, :]
    w_proj = params["w_proj"].astype(MM_DTYPE).astype(F32)
    h = jnp.einsum("nhwe,eo->nhwo", h, w_proj)
    h = h * params["s2"] + params["b2"]
    if stride == 1 and x.shape[-1] == cout:
        h = h + x
    return jnp.transpose(h, (0, 3, 1, 2))


if __name__ == "__main__":
    # MBConvBlock(in=32, out=32, kernel_size=3, stride=1, expand_ratio=6, se_ratio=0.25)
    N, CIN, H, W = 2, 32, 16, 16
    COUT, K, STRIDE, EXPAND = 32, 3, 1, 6

    key = jax.random.PRNGKey(0)
    pkey, xkey = jax.random.split(key)
    params = init_params(pkey, in_channels=CIN, out_channels=COUT,
                         kernel_size=K, expand_ratio=EXPAND)
    x = jax.random.normal(xkey, (N, CIN, H, W), F32)

    fwd = jax.jit(functools.partial(mbconv_block, kernel_size=K, stride=STRIDE,
                                    expand_ratio=EXPAND))
    out = jax.block_until_ready(fwd(x, params))

    assert out.shape == (N, COUT, H, W), out.shape
    assert bool(jnp.all(jnp.isfinite(out)))

    ref = mbconv_reference(x, params, kernel_size=K, stride=STRIDE,
                           expand_ratio=EXPAND)
    rel_err = float(jnp.max(jnp.abs(out - ref)) / (jnp.max(jnp.abs(ref)) + 1e-6))
    assert rel_err < 3e-2, f"mismatch vs reference: rel_err={rel_err}"
    print("KERNEL_OK")
</pallas_src>

<mosaic_0001>
module attributes {stable_mosaic.version = 11 : i64} {
  func.func @_mbconv_kernel(%arg0: i32, %arg1: memref<1x324x32xf32, #tpu.memory_space<vmem>>, %arg2: memref<324x1xf32, #tpu.memory_space<vmem>>, %arg3: memref<286x1xf32, #tpu.memory_space<vmem>>, %arg4: memref<32x192xbf16, #tpu.memory_space<vmem>>, %arg5: memref<1x192xf32, #tpu.memory_space<vmem>>, %arg6: memref<1x192xf32, #tpu.memory_space<vmem>>, %arg7: memref<9x1x192xf32, #tpu.memory_space<vmem>>, %arg8: memref<1x192xf32, #tpu.memory_space<vmem>>, %arg9: memref<1x192xf32, #tpu.memory_space<vmem>>, %arg10: memref<8x192xf32, #tpu.memory_space<vmem>>, %arg11: memref<8x1xf32, #tpu.memory_space<vmem>>, %arg12: memref<8x192xf32, #tpu.memory_space<vmem>>, %arg13: memref<1x192xf32, #tpu.memory_space<vmem>>, %arg14: memref<192x32xbf16, #tpu.memory_space<vmem>>, %arg15: memref<1x32xf32, #tpu.memory_space<vmem>>, %arg16: memref<1x32xf32, #tpu.memory_space<vmem>>, %arg17: memref<1x286x32xf32, #tpu.memory_space<vmem>>, %arg18: memref<324x192xf32, #tpu.memory_space<vmem>>) attributes {dimension_semantics = [#tpu.dimension_semantics<parallel>], iteration_bounds = array<i64: 2>, scalar_prefetch = 0 : i64, scratch_operands = 1 : i64, tpu.core_type = #tpu.core_type<tc>, window_params = [{transform_indices = @transform_0, window_bounds = array<i64: 1, 324, 32>}, {pipeline_mode = #tpu.pipeline_mode<synchronous>, transform_indices = @transform_1, window_bounds = array<i64: 324, 1>}, {pipeline_mode = #tpu.pipeline_mode<synchronous>, transform_indices = @transform_2, window_bounds = array<i64: 286, 1>}, {pipeline_mode = #tpu.pipeline_mode<synchronous>, transform_indices = @transform_3, window_bounds = array<i64: 32, 192>}, {pipeline_mode = #tpu.pipeline_mode<synchronous>, transform_indices = @transform_4, window_bounds = array<i64: 1, 192>}, {pipeline_mode = #tpu.pipeline_mode<synchronous>, transform_indices = @transform_5, window_bounds = array<i64: 1, 192>}, {pipeline_mode = #tpu.pipeline_mode<synchronous>, transform_indices = @transform_6, window_bounds = array<i64: 9, 1, 192>}, {pipeline_mode = #tpu.pipeline_mode<synchronous>, transform_indices = @transform_7, window_bounds = array<i64: 1, 192>}, {pipeline_mode = #tpu.pipeline_mode<synchronous>, transform_indices = @transform_8, window_bounds = array<i64: 1, 192>}, {pipeline_mode = #tpu.pipeline_mode<synchronous>, transform_indices = @transform_9, window_bounds = array<i64: 8, 192>}, {pipeline_mode = #tpu.pipeline_mode<synchronous>, transform_indices = @transform_10, window_bounds = array<i64: 8, 1>}, {pipeline_mode = #tpu.pipeline_mode<synchronous>, transform_indices = @transform_11, window_bounds = array<i64: 8, 192>}, {pipeline_mode = #tpu.pipeline_mode<synchronous>, transform_indices = @transform_12, window_bounds = array<i64: 1, 192>}, {pipeline_mode = #tpu.pipeline_mode<synchronous>, transform_indices = @transform_13, window_bounds = array<i64: 192, 32>}, {pipeline_mode = #tpu.pipeline_mode<synchronous>, transform_indices = @transform_14, window_bounds = array<i64: 1, 32>}, {pipeline_mode = #tpu.pipeline_mode<synchronous>, transform_indices = @transform_15, window_bounds = array<i64: 1, 32>}, {transform_indices = @transform_16, window_bounds = array<i64: 1, 286, 32>}]} {
    %c0 = arith.constant 0 : index
    %c0_0 = arith.constant 0 : index
    %c0_1 = arith.constant 0 : index
    %0 = vector.load %arg1[%c0, %c0_0, %c0_1] : memref<1x324x32xf32, #tpu.memory_space<vmem>>, vector<1x324x32xf32>
    %1 = vector.shape_cast %0 : vector<1x324x32xf32> to vector<324x32xf32>
    %2 = arith.truncf %1 : vector<324x32xf32> to vector<324x32xbf16>
    %c0_2 = arith.constant 0 : index
    %c0_3 = arith.constant 0 : index
    %3 = vector.load %arg4[%c0_2, %c0_3] : memref<32x192xbf16, #tpu.memory_space<vmem>>, vector<32x192xbf16>
    %cst = arith.constant dense<0.000000e+00> : vector<324x192xf32>
    %4 = tpu.matmul %2, %3, %cst {dimension_numbers = #tpu.dot_dimension_numbers<[1], [0], [0], [1], [0, 0, 1, 1], [], []>} : vector<324x32xbf16>, vector<32x192xbf16>, vector<324x192xf32> -> vector<324x192xf32>
    %c0_4 = arith.constant 0 : index
    %c0_5 = arith.constant 0 : index
    %5 = vector.load %arg5[%c0_4, %c0_5] : memref<1x192xf32, #tpu.memory_space<vmem>>, vector<1x192xf32>
    %6 = vector.broadcast %5 : vector<1x192xf32> to vector<324x192xf32>
    %7 = arith.mulf %4, %6 : vector<324x192xf32>
    %c0_6 = arith.constant 0 : index
    %c0_7 = arith.constant 0 : index
    %8 = vector.load %arg6[%c0_6, %c0_7] : memref<1x192xf32, #tpu.memory_space<vmem>>, vector<1x192xf32>
    %9 = vector.broadcast %8 : vector<1x192xf32> to vector<324x192xf32>
    %10 = arith.addf %7, %9 : vector<324x192xf32>
    %cst_8 = arith.constant 0.000000e+00 : f32
    %cst_9 = arith.constant 6.000000e+00 : f32
    %11 = vector.broadcast %cst_8 : f32 to vector<324x192xf32>
    %12 = arith.maximumf %11, %10 : vector<324x192xf32>
    %13 = vector.broadcast %cst_9 : f32 to vector<324x192xf32>
    %14 = arith.minimumf %13, %12 : vector<324x192xf32>
    %c0_10 = arith.constant 0 : index
    %c0_11 = arith.constant 0 : index
    %15 = vector.load %arg2[%c0_10, %c0_11] : memref<324x1xf32, #tpu.memory_space<vmem>>, vector<324x1xf32>
    %16 = vector.broadcast %15 : vector<324x1xf32> to vector<324x192xf32>
    %17 = arith.mulf %14, %16 : vector<324x192xf32>
    %c0_12 = arith.constant 0 : index
    %c0_13 = arith.constant 0 : index
    %18 = vector.load %arg18[%c0_12, %c0_13] : memref<324x192xf32, #tpu.memory_space<vmem>>, vector<324x192xf32>
    tpu.vector_store %arg18[%c0_12, %c0_13], %17 {strides = array<i32>} : memref<324x192xf32, #tpu.memory_space<vmem>>, vector<324x192xf32>,
    %c0_14 = arith.constant 0 : index
    %c0_15 = arith.constant 0 : index
    %c0_16 = arith.constant 0 : index
    %19 = vector.load %arg7[%c0_14, %c0_15, %c0_16] : memref<9x1x192xf32, #tpu.memory_space<vmem>>, vector<9x1x192xf32>
    %cst_17 = arith.constant 0.000000e+00 : f32
    %20 = vector.broadcast %cst_17 : f32 to vector<286x192xf32>
    %c0_18 = arith.constant 0 : index
    %c0_19 = arith.constant 0 : index
    %21 = vector.load %arg18[%c0_18, %c0_19] : memref<324x192xf32, #tpu.memory_space<vmem>>, vector<286x192xf32>
    %22 = vector.extract_strided_slice %19 {offsets = [0, 0, 0], sizes = [1, 1, 192], strides = [1, 1, 1]} : vector<9x1x192xf32> to vector<1x1x192xf32>
    %23 = vector.shape_cast %22 : vector<1x1x192xf32> to vector<1x192xf32>
    %24 = vector.broadcast %23 : vector<1x192xf32> to vector<286x192xf32>
    %25 = arith.mulf %21, %24 : vector<286x192xf32>
    %26 = arith.addf %20, %25 : vector<286x192xf32>
    %c1 = arith.constant 1 : index
    %c0_20 = arith.constant 0 : index
    %27 = vector.load %arg18[%c1, %c0_20] : memref<324x192xf32, #tpu.memory_space<vmem>>, vector<286x192xf32>
    %28 = vector.extract_strided_slice %19 {offsets = [1, 0, 0], sizes = [1, 1, 192], strides = [1, 1, 1]} : vector<9x1x192xf32> to vector<1x1x192xf32>
    %29 = vector.shape_cast %28 : vector<1x1x192xf32> to vector<1x192xf32>
    %30 = vector.broadcast %29 : vector<1x192xf32> to vector<286x192xf32>
    %31 = arith.mulf %27, %30 : vector<286x192xf32>
    %32 = arith.addf %26, %31 : vector<286x192xf32>
    %c2 = arith.constant 2 : index
    %c0_21 = arith.constant 0 : index
    %33 = vector.load %arg18[%c2, %c0_21] : memref<324x192xf32, #tpu.memory_space<vmem>>, vector<286x192xf32>
    %34 = vector.extract_strided_slice %19 {offsets = [2, 0, 0], sizes = [1, 1, 192], strides = [1, 1, 1]} : vector<9x1x192xf32> to vector<1x1x192xf32>
    %35 = vector.shape_cast %34 : vector<1x1x192xf32> to vector<1x192xf32>
    %36 = vector.broadcast %35 : vector<1x192xf32> to vector<286x192xf32>
    %37 = arith.mulf %33, %36 : vector<286x192xf32>
    %38 = arith.addf %32, %37 : vector<286x192xf32>
    %c18 = arith.constant 18 : index
    %c0_22 = arith.constant 0 : index
    %39 = vector.load %arg18[%c18, %c0_22] : memref<324x192xf32, #tpu.memory_space<vmem>>, vector<286x192xf32>
    %40 = vector.extract_strided_slice %19 {offsets = [3, 0, 0], sizes = [1, 1, 192], strides = [1, 1, 1]} : vector<9x1x192xf32> to vector<1x1x192xf32>
    %41 = vector.shape_cast %40 : vector<1x1x192xf32> to vector<1x192xf32>
    %42 = vector.broadcast %41 : vector<1x192xf32> to vector<286x192xf32>
    %43 = arith.mulf %39, %42 : vector<286x192xf32>
    %44 = arith.addf %38, %43 : vector<286x192xf32>
    %c19 = arith.constant 19 : index
    %c0_23 = arith.constant 0 : index
    %45 = vector.load %arg18[%c19, %c0_23] : memref<324x192xf32, #tpu.memory_space<vmem>>, vector<286x192xf32>
    %46 = vector.extract_strided_slice %19 {offsets = [4, 0, 0], sizes = [1, 1, 192], strides = [1, 1, 1]} : vector<9x1x192xf32> to vector<1x1x192xf32>
    %47 = vector.shape_cast %46 : vector<1x1x192xf32> to vector<1x192xf32>
    %48 = vector.broadcast %47 : vector<1x192xf32> to vector<286x192xf32>
    %49 = arith.mulf %45, %48 : vector<286x192xf32>
    %50 = arith.addf %44, %49 : vector<286x192xf32>
    %c20 = arith.constant 20 : index
    %c0_24 = arith.constant 0 : index
    %51 = vector.load %arg18[%c20, %c0_24] : memref<324x192xf32, #tpu.memory_space<vmem>>, vector<286x192xf32>
    %52 = vector.extract_strided_slice %19 {offsets = [5, 0, 0], sizes = [1, 1, 192], strides = [1, 1, 1]} : vector<9x1x192xf32> to vector<1x1x192xf32>
    %53 = vector.shape_cast %52 : vector<1x1x192xf32> to vector<1x192xf32>
    %54 = vector.broadcast %53 : vector<1x192xf32> to vector<286x192xf32>
    %55 = arith.mulf %51, %54 : vector<286x192xf32>
    %56 = arith.addf %50, %55 : vector<286x192xf32>
    %c36 = arith.constant 36 : index
    %c0_25 = arith.constant 0 : index
    %57 = vector.load %arg18[%c36, %c0_25] : memref<324x192xf32, #tpu.memory_space<vmem>>, vector<286x192xf32>
    %58 = vector.extract_strided_slice %19 {offsets = [6, 0, 0], sizes = [1, 1, 192], strides = [1, 1, 1]} : vector<9x1x192xf32> to vector<1x1x192xf32>
    %59 = vector.shape_cast %58 : vector<1x1x192xf32> to vector<1x192xf32>
    %60 = vector.broadcast %59 : vector<1x192xf32> to vector<286x192xf32>
    %61 = arith.mulf %57, %60 : vector<286x192xf32>
    %62 = arith.addf %56, %61 : vector<286x192xf32>
    %c37 = arith.constant 37 : index
    %c0_26 = arith.constant 0 : index
    %63 = vector.load %arg18[%c37, %c0_26] : memref<324x192xf32, #tpu.memory_space<vmem>>, vector<286x192xf32>
    %64 = vector.extract_strided_slice %19 {offsets = [7, 0, 0], sizes = [1, 1, 192], strides = [1, 1, 1]} : vector<9x1x192xf32> to vector<1x1x192xf32>
    %65 = vector.shape_cast %64 : vector<1x1x192xf32> to vector<1x192xf32>
    %66 = vector.broadcast %65 : vector<1x192xf32> to vector<286x192xf32>
    %67 = arith.mulf %63, %66 : vector<286x192xf32>
    %68 = arith.addf %62, %67 : vector<286x192xf32>
    %c38 = arith.constant 38 : index
    %c0_27 = arith.constant 0 : index
    %69 = vector.load %arg18[%c38, %c0_27] : memref<324x192xf32, #tpu.memory_space<vmem>>, vector<286x192xf32>
    %70 = vector.extract_strided_slice %19 {offsets = [8, 0, 0], sizes = [1, 1, 192], strides = [1, 1, 1]} : vector<9x1x192xf32> to vector<1x1x192xf32>
    %71 = vector.shape_cast %70 : vector<1x1x192xf32> to vector<1x192xf32>
    %72 = vector.broadcast %71 : vector<1x192xf32> to vector<286x192xf32>
    %73 = arith.mulf %69, %72 : vector<286x192xf32>
    %74 = arith.addf %68, %73 : vector<286x192xf32>
    %c0_28 = arith.constant 0 : index
    %c0_29 = arith.constant 0 : index
    %75 = vector.load %arg8[%c0_28, %c0_29] : memref<1x192xf32, #tpu.memory_space<vmem>>, vector<1x192xf32>
    %76 = vector.broadcast %75 : vector<1x192xf32> to vector<286x192xf32>
    %77 = arith.mulf %74, %76 : vector<286x192xf32>
    %c0_30 = arith.constant 0 : index
    %c0_31 = arith.constant 0 : index
    %78 = vector.load %arg9[%c0_30, %c0_31] : memref<1x192xf32, #tpu.memory_space<vmem>>, vector<1x192xf32>
    %79 = vector.broadcast %78 : vector<1x192xf32> to vector<286x192xf32>
    %80 = arith.addf %77, %79 : vector<286x192xf32>
    %cst_32 = arith.constant 0.000000e+00 : f32
    %cst_33 = arith.constant 6.000000e+00 : f32
    %81 = vector.broadcast %cst_32 : f32 to vector<286x192xf32>
    %82 = arith.maximumf %81, %80 : vector<286x192xf32>
    %83 = vector.broadcast %cst_33 : f32 to vector<286x192xf32>
    %84 = arith.minimumf %83, %82 : vector<286x192xf32>
    %c0_34 = arith.constant 0 : index
    %c0_35 = arith.constant 0 : index
    %85 = vector.load %arg3[%c0_34, %c0_35] : memref<286x1xf32, #tpu.memory_space<vmem>>, vector<286x1xf32>
    %86 = vector.broadcast %85 : vector<286x1xf32> to vector<286x192xf32>
    %87 = arith.mulf %84, %86 : vector<286x192xf32>
    %cst_36 = arith.constant dense<0.000000e+00> : vector<192xf32>
    %88 = vector.multi_reduction <add>, %87, %cst_36 [0] : vector<286x192xf32> to vector<192xf32>
    %89 = vector.shape_cast %88 : vector<192xf32> to vector<1x192xf32>
    %cst_37 = arith.constant 3.906250e-03 : f32
    %90 = vector.broadcast %cst_37 : f32 to vector<1x192xf32>
    %91 = arith.mulf %89, %90 : vector<1x192xf32>
    %c0_38 = arith.constant 0 : index
    %c0_39 = arith.constant 0 : index
    %92 = vector.load %arg10[%c0_38, %c0_39] : memref<8x192xf32, #tpu.memory_space<vmem>>, vector<8x192xf32>
    %93 = vector.broadcast %91 : vector<1x192xf32> to vector<8x192xf32>
    %94 = arith.mulf %92, %93 : vector<8x192xf32>
    %cst_40 = arith.constant dense<0.000000e+00> : vector<8xf32>
    %95 = vector.multi_reduction <add>, %94, %cst_40 [1] : vector<8x192xf32> to vector<8xf32>
    %96 = vector.shape_cast %95 : vector<8xf32> to vector<8x1xf32>
    %c0_41 = arith.constant 0 : index
    %c0_42 = arith.constant 0 : index
    %97 = vector.load %arg11[%c0_41, %c0_42] : memref<8x1xf32, #tpu.memory_space<vmem>>, vector<8x1xf32>
    %98 = arith.addf %96, %97 : vector<8x1xf32>
    %cst_43 = arith.constant 0.000000e+00 : f32
    %99 = vector.broadcast %cst_43 : f32 to vector<8x1xf32>
    %100 = arith.maximumf %98, %99 : vector<8x1xf32>
    %c0_44 = arith.constant 0 : index
    %c0_45 = arith.constant 0 : index
    %101 = vector.load %arg12[%c0_44, %c0_45] : memref<8x192xf32, #tpu.memory_space<vmem>>, vector<8x192xf32>
    %102 = vector.broadcast %100 : vector<8x1xf32> to vector<8x192xf32>
    %103 = arith.mulf %101, %102 : vector<8x192xf32>
    %cst_46 = arith.constant dense<0.000000e+00> : vector<192xf32>
    %104 = vector.multi_reduction <add>, %103, %cst_46 [0] : vector<8x192xf32> to vector<192xf32>
    %105 = vector.shape_cast %104 : vector<192xf32> to vector<1x192xf32>
    %c0_47 = arith.constant 0 : index
    %c0_48 = arith.constant 0 : index
    %106 = vector.load %arg13[%c0_47, %c0_48] : memref<1x192xf32, #tpu.memory_space<vmem>>, vector<1x192xf32>
    %107 = arith.addf %105, %106 : vector<1x192xf32>
    %108 = arith.negf %107 : vector<1x192xf32>
    %109 = math.exp %108 : vector<1x192xf32>
    %cst_49 = arith.constant 1.000000e+00 : f32
    %110 = vector.broadcast %cst_49 : f32 to vector<1x192xf32>
    %111 = arith.addf %110, %109 : vector<1x192xf32>
    %112 = arith.divf %110, %111 : vector<1x192xf32>
    %113 = vector.broadcast %112 : vector<1x192xf32> to vector<286x192xf32>
    %114 = arith.mulf %84, %113 : vector<286x192xf32>
    %115 = arith.truncf %114 : vector<286x192xf32> to vector<286x192xbf16>
    %c0_50 = arith.constant 0 : index
    %c0_51 = arith.constant 0 : index
    %116 = vector.load %arg14[%c0_50, %c0_51] : memref<192x32xbf16, #tpu.memory_space<vmem>>, vector<192x32xbf16>
    %cst_52 = arith.constant dense<0.000000e+00> : vector<286x32xf32>
    %117 = tpu.matmul %115, %116, %cst_52 {dimension_numbers = #tpu.dot_dimension_numbers<[1], [0], [0], [1], [0, 0, 1, 1], [], []>} : vector<286x192xbf16>, vector<192x32xbf16>, vector<286x32xf32> -> vector<286x32xf32>
    %c0_53 = arith.constant 0 : index
    %c0_54 = arith.constant 0 : index
    %118 = vector.load %arg15[%c0_53, %c0_54] : memref<1x32xf32, #tpu.memory_space<vmem>>, vector<1x32xf32>
    %119 = vector.broadcast %118 : vector<1x32xf32> to vector<286x32xf32>
    %120 = arith.mulf %117, %119 : vector<286x32xf32>
    %c0_55 = arith.constant 0 : index
    %c0_56 = arith.constant 0 : index
    %121 = vector.load %arg16[%c0_55, %c0_56] : memref<1x32xf32, #tpu.memory_space<vmem>>, vector<1x32xf32>
    %122 = vector.broadcast %121 : vector<1x32xf32> to vector<286x32xf32>
    %123 = arith.addf %120, %122 : vector<286x32xf32>
    %c0_57 = arith.constant 0 : index
    %c19_58 = arith.constant 19 : index
    %c0_59 = arith.constant 0 : index
    %124 = vector.load %arg1[%c0_57, %c19_58, %c0_59] : memref<1x324x32xf32, #tpu.memory_space<vmem>>, vector<1x286x32xf32>
    %125 = vector.shape_cast %124 : vector<1x286x32xf32> to vector<286x32xf32>
    %126 = arith.addf %123, %125 : vector<286x32xf32>
    %c0_60 = arith.constant 0 : index
    %c0_61 = arith.constant 0 : index
    %c0_62 = arith.constant 0 : index
    %127 = vector.load %arg17[%c0_60, %c0_61, %c0_62] : memref<1x286x32xf32, #tpu.memory_space<vmem>>, vector<1x286x32xf32>
    %128 = vector.shape_cast %127 : vector<1x286x32xf32> to vector<286x32xf32>
    %129 = vector.shape_cast %126 : vector<286x32xf32> to vector<1x286x32xf32>
    tpu.vector_store %arg17[%c0_60, %c0_61, %c0_62], %129 {strides = array<i32>} : memref<1x286x32xf32, #tpu.memory_space<vmem>>, vector<1x286x32xf32>,
    return
  }
  func.func @transform_0(%arg0: i32) -> (i32, i32, i32) {
    %c0_i32 = arith.constant 0 : i32
    %c0_i32_0 = arith.constant 0 : i32
    %c0_i32_1 = arith.constant 0 : i32
    return %arg0, %c0_i32, %c0_i32_0 : i32, i32, i32
  }
  func.func @transform_1(%arg0: i32) -> (i32, i32) {
    %c0_i32 = arith.constant 0 : i32
    %c0_i32_0 = arith.constant 0 : i32
    %c0_i32_1 = arith.constant 0 : i32
    return %c0_i32, %c0_i32_0 : i32, i32
  }
  func.func @transform_2(%arg0: i32) -> (i32, i32) {
    %c0_i32 = arith.constant 0 : i32
    %c0_i32_0 = arith.constant 0 : i32
    %c0_i32_1 = arith.constant 0 : i32
    return %c0_i32, %c0_i32_0 : i32, i32
  }
  func.func @transform_3(%arg0: i32) -> (i32, i32) {
    %c0_i32 = arith.constant 0 : i32
    %c0_i32_0 = arith.constant 0 : i32
    %c0_i32_1 = arith.constant 0 : i32
    return %c0_i32, %c0_i32_0 : i32, i32
  }
  func.func @transform_4(%arg0: i32) -> (i32, i32) {
    %c0_i32 = arith.constant 0 : i32
    %c0_i32_0 = arith.constant 0 : i32
    %c0_i32_1 = arith.constant 0 : i32
    return %c0_i32, %c0_i32_0 : i32, i32
  }
  func.func @transform_5(%arg0: i32) -> (i32, i32) {
    %c0_i32 = arith.constant 0 : i32
    %c0_i32_0 = arith.constant 0 : i32
    %c0_i32_1 = arith.constant 0 : i32
    return %c0_i32, %c0_i32_0 : i32, i32
  }
  func.func @transform_6(%arg0: i32) -> (i32, i32, i32) {
    %c0_i32 = arith.constant 0 : i32
    %c0_i32_0 = arith.constant 0 : i32
    %c0_i32_1 = arith.constant 0 : i32
    %c0_i32_2 = arith.constant 0 : i32
    return %c0_i32, %c0_i32_0, %c0_i32_1 : i32, i32, i32
  }
  func.func @transform_7(%arg0: i32) -> (i32, i32) {
    %c0_i32 = arith.constant 0 : i32
    %c0_i32_0 = arith.constant 0 : i32
    %c0_i32_1 = arith.constant 0 : i32
    return %c0_i32, %c0_i32_0 : i32, i32
  }
  func.func @transform_8(%arg0: i32) -> (i32, i32) {
    %c0_i32 = arith.constant 0 : i32
    %c0_i32_0 = arith.constant 0 : i32
    %c0_i32_1 = arith.constant 0 : i32
    return %c0_i32, %c0_i32_0 : i32, i32
  }
  func.func @transform_9(%arg0: i32) -> (i32, i32) {
    %c0_i32 = arith.constant 0 : i32
    %c0_i32_0 = arith.constant 0 : i32
    %c0_i32_1 = arith.constant 0 : i32
    return %c0_i32, %c0_i32_0 : i32, i32
  }
  func.func @transform_10(%arg0: i32) -> (i32, i32) {
    %c0_i32 = arith.constant 0 : i32
    %c0_i32_0 = arith.constant 0 : i32
    %c0_i32_1 = arith.constant 0 : i32
    return %c0_i32, %c0_i32_0 : i32, i32
  }
  func.func @transform_11(%arg0: i32) -> (i32, i32) {
    %c0_i32 = arith.constant 0 : i32
    %c0_i32_0 = arith.constant 0 : i32
    %c0_i32_1 = arith.constant 0 : i32
    return %c0_i32, %c0_i32_0 : i32, i32
  }
  func.func @transform_12(%arg0: i32) -> (i32, i32) {
    %c0_i32 = arith.constant 0 : i32
    %c0_i32_0 = arith.constant 0 : i32
    %c0_i32_1 = arith.constant 0 : i32
    return %c0_i32, %c0_i32_0 : i32, i32
  }
  func.func @transform_13(%arg0: i32) -> (i32, i32) {
    %c0_i32 = arith.constant 0 : i32
    %c0_i32_0 = arith.constant 0 : i32
    %c0_i32_1 = arith.constant 0 : i32
    return %c0_i32, %c0_i32_0 : i32, i32
  }
  func.func @transform_14(%arg0: i32) -> (i32, i32) {
    %c0_i32 = arith.constant 0 : i32
    %c0_i32_0 = arith.constant 0 : i32
    %c0_i32_1 = arith.constant 0 : i32
    return %c0_i32, %c0_i32_0 : i32, i32
  }
  func.func @transform_15(%arg0: i32) -> (i32, i32) {
    %c0_i32 = arith.constant 0 : i32
    %c0_i32_0 = arith.constant 0 : i32
    %c0_i32_1 = arith.constant 0 : i32
    return %c0_i32, %c0_i32_0 : i32, i32
  }
  func.func @transform_16(%arg0: i32) -> (i32, i32, i32) {
    %c0_i32 = arith.constant 0 : i32
    %c0_i32_0 = arith.constant 0 : i32
    %c0_i32_1 = arith.constant 0 : i32
    return %arg0, %c0_i32, %c0_i32_0 : i32, i32, i32
  }
}

</mosaic_0001>

<llo_original>
// kernel: mbconv_block.1
$region0: #{mbconv_block.1}
  #allocation0 [shape = 'u32[]', space=smem, size = 0x4, offset = 0x4, fixed_abs, tag = 'smem constant byte address 0x4 - core index']
  #allocation1 [shape = 'u32[144,128]{1,0:T(1,128)}', space=vmem, size = 0x12000, scoped, tag = 'internal scratch']
  #allocation2 [shape = 'f32[324,192]{1,0:T(8,128)}', space=vmem, size = 0x52000, scoped, tag = 'scratch operand']
  %s0 = inlined_call_operand.vmem [shape: f32[2,324,32], index: 0, kind: input, shape index: {}]
  %s1 = inlined_call_operand.vmem [shape: f32[324,1], index: 1, kind: input, shape index: {}]
  %s2 = inlined_call_operand.vmem [shape: f32[286,1], index: 2, kind: input, shape index: {}]
  %s3 = inlined_call_operand.vmem [shape: bf16[32,192], index: 3, kind: input, shape index: {}]
  %s4 = inlined_call_operand.vmem [shape: f32[1,192], index: 4, kind: input, shape index: {}]
  %s5 = inlined_call_operand.vmem [shape: f32[1,192], index: 5, kind: input, shape index: {}]
  %s6 = inlined_call_operand.vmem [shape: f32[9,1,192], index: 6, kind: input, shape index: {}]
  %s7 = inlined_call_operand.vmem [shape: f32[1,192], index: 7, kind: input, shape index: {}]
  %s8 = inlined_call_operand.vmem [shape: f32[1,192], index: 8, kind: input, shape index: {}]
  %s9 = inlined_call_operand.vmem [shape: f32[8,192], index: 9, kind: input, shape index: {}]
  %s10 = inlined_call_operand.vmem [shape: f32[8,1], index: 10, kind: input, shape index: {}]
  %s11 = inlined_call_operand.vmem [shape: f32[8,192], index: 11, kind: input, shape index: {}]
  %s12 = inlined_call_operand.vmem [shape: f32[1,192], index: 12, kind: input, shape index: {}]
  %s13 = inlined_call_operand.vmem [shape: bf16[192,32], index: 13, kind: input, shape index: {}]
  %s14 = inlined_call_operand.vmem [shape: f32[1,32], index: 14, kind: input, shape index: {}]
  %s15 = inlined_call_operand.vmem [shape: f32[1,32], index: 15, kind: input, shape index: {}]
  %s16 = inlined_call_operand.vmem [shape: f32[2,286,32], index: 16, kind: output, shape index: {}]
  %s17 = sld [smem:[#allocation0]]
  $region97: #{mbconv_block.1} parent=0
    _
  %s19 = ssub.s32 1, %s17
  %s20 = scalar_select 0, %s19, %s17
  loop: start=0, step=1, limit=4
  $region2: #{mbconv_block.1} parent=0 // loop_pre_header
    _
  $region3: #{mbconv_block.1} parent=0 // loop_header
    %s22 = sphi 0, %s26
    %p23 = scmp.ge.s32.totalorder %s22, 4
    %s32 = sphi 0, %s34
    %s35 = sphi 0, %s32
    %s36 = sphi 0, %s35
    %s52 = sphi 0, %s36
    %s56 = sphi 0, %s56
    %s58 = sphi 0, %s56
    %s59 = sphi 0, %s58
    %s73 = sphi 0, %s59
    %s77 = sphi 0, %s77
    %s79 = sphi 0, %s77
    %s80 = sphi 0, %s79
    %s94 = sphi 0, %s80
    %s98 = sphi 0, %s98
    %s100 = sphi 0, %s98
    %s101 = sphi 0, %s100
    %s115 = sphi 0, %s101
    %s119 = sphi 0, %s119
    %s121 = sphi 0, %s119
    %s122 = sphi 0, %s121
    %s136 = sphi 0, %s122
    %s140 = sphi 0, %s140
    %s142 = sphi 0, %s140
    %s143 = sphi 0, %s142
    %s157 = sphi 0, %s143
    %s161 = sphi 0, %s161
    %s163 = sphi 0, %s161
    %s164 = sphi 0, %s163
    %s178 = sphi 0, %s164
    %s182 = sphi 0, %s182
    %s184 = sphi 0, %s182
    %s185 = sphi 0, %s184
    %s199 = sphi 0, %s185
    %s203 = sphi 0, %s203
    %s205 = sphi 0, %s203
    %s206 = sphi 0, %s205
    %s220 = sphi 0, %s206
    %s224 = sphi 0, %s224
    %s226 = sphi 0, %s224
    %s227 = sphi 0, %s226
    %s241 = sphi 0, %s227
    %s245 = sphi 0, %s245
    %s247 = sphi 0, %s245
    %s248 = sphi 0, %s247
    %s262 = sphi 0, %s248
    %s266 = sphi 0, %s266
    %s268 = sphi 0, %s266
    %s269 = sphi 0, %s268
    %s283 = sphi 0, %s269
    %s287 = sphi 0, %s287
    %s289 = sphi 0, %s287
    %s290 = sphi 0, %s289
    %s304 = sphi 0, %s290
    %s308 = sphi 0, %s308
    %s310 = sphi 0, %s308
    %s311 = sphi 0, %s310
    %s325 = sphi 0, %s311
    %s329 = sphi 0, %s329
    %s331 = sphi 0, %s329
    %s332 = sphi 0, %s331
    %s346 = sphi 0, %s332
    %s350 = sphi 0, %s350
    %s352 = sphi 0, %s350
    %s353 = sphi 0, %s352
    %s367 = sphi 0, %s353
    %s373 = sphi 0, %s375
    %s376 = sphi 0, %s373
    %s377 = sphi 0, %s376
    %s393 = sphi 0, %s377
  $region4: #{mbconv_block.1} parent=0 // loop_header_branch
    %25 = sbr.rel (%p23) target = $region8
  $region5: #{mbconv_block.1} parent=0 // loop_body
    %s27 = ssub.s32 %s22, 1
    %s28 = ssub.s32 %s22, 2
    %s29 = sadd.s32 %s22, 1
    %s30 = ssub.s32 %s22, %s29
    %p31 = scmp.eq.s32.totalorder %s30, 0
    %s33 = sadd.s32 %s32, 1
    %s34 = scalar_select %p31, %s32, %s33
    %p37 = pneg %p31
    %p38 = scmp.eq.s32.totalorder %s22, 1
    %p39 = por %p37, %p38
    %p40 = scmp.ne.s32.totalorder %s32, %s35
    %p41 = scmp.eq.s32.totalorder %s22, 0
    %p42 = por %p40, %p41
    %p43 = scmp.ne.s32.totalorder %s32, %s35
    %p44 = scmp.eq.s32.totalorder %s27, 1
    %p45 = por %p43, %p44
    %p46 = scmp.ne.s32.totalorder %s35, %s36
    %p47 = scmp.eq.s32.totalorder %s27, 0
    %p48 = por %p46, %p47
    %p49 = scmp.ne.s32.totalorder %s35, %s36
    %p50 = scmp.eq.s32.totalorder %s28, 1
    %p51 = por %p49, %p50
    %p53 = scmp.ne.s32.totalorder %s36, %s52
    %p54 = scmp.eq.s32.totalorder %s28, 0
    %p55 = por %p53, %p54
    %s57 = sadd.s32 %s56, 1
    %p60 = scmp.eq.s32.totalorder %s22, 1
    %p61 = scmp.ne.s32.totalorder %s56, %s58
    %p62 = scmp.eq.s32.totalorder %s22, 0
    %p63 = por %p61, %p62
    %p64 = scmp.ne.s32.totalorder %s56, %s58
    %p65 = scmp.eq.s32.totalorder %s27, 1
    %p66 = por %p64, %p65
    %p67 = scmp.ne.s32.totalorder %s58, %s59
    %p68 = scmp.eq.s32.totalorder %s27, 0
    %p69 = por %p67, %p68
    %p70 = scmp.ne.s32.totalorder %s58, %s59
    %p71 = scmp.eq.s32.totalorder %s28, 1
    %p72 = por %p70, %p71
    %p74 = scmp.ne.s32.totalorder %s59, %s73
    %p75 = scmp.eq.s32.totalorder %s28, 0
    %p76 = por %p74, %p75
    %s78 = sadd.s32 %s77, 1
    %p81 = scmp.eq.s32.totalorder %s22, 1
    %p82 = scmp.ne.s32.totalorder %s77, %s79
    %p83 = scmp.eq.s32.totalorder %s22, 0
    %p84 = por %p82, %p83
    %p85 = scmp.ne.s32.totalorder %s77, %s79
    %p86 = scmp.eq.s32.totalorder %s27, 1
    %p87 = por %p85, %p86
    %p88 = scmp.ne.s32.totalorder %s79, %s80
    %p89 = scmp.eq.s32.totalorder %s27, 0
    %p90 = por %p88, %p89
    %p91 = scmp.ne.s32.totalorder %s79, %s80
    %p92 = scmp.eq.s32.totalorder %s28, 1
    %p93 = por %p91, %p92
    %p95 = scmp.ne.s32.totalorder %s80, %s94
    %p96 = scmp.eq.s32.totalorder %s28, 0
    %p97 = por %p95, %p96
    %s99 = sadd.s32 %s98, 1
    %p102 = scmp.eq.s32.totalorder %s22, 1
    %p103 = scmp.ne.s32.totalorder %s98, %s100
    %p104 = scmp.eq.s32.totalorder %s22, 0
    %p105 = por %p103, %p104
    %p106 = scmp.ne.s32.totalorder %s98, %s100
    %p107 = scmp.eq.s32.totalorder %s27, 1
    %p108 = por %p106, %p107
    %p109 = scmp.ne.s32.totalorder %s100, %s101
    %p110 = scmp.eq.s32.totalorder %s27, 0
    %p111 = por %p109, %p110
    %p112 = scmp.ne.s32.totalorder %s100, %s101
    %p113 = scmp.eq.s32.totalorder %s28, 1
    %p114 = por %p112, %p113
    %p116 = scmp.ne.s32.totalorder %s101, %s115
    %p117 = scmp.eq.s32.totalorder %s28, 0
    %p118 = por %p116, %p117
    %s120 = sadd.s32 %s119, 1
    %p123 = scmp.eq.s32.totalorder %s22, 1
    %p124 = scmp.ne.s32.totalorder %s119, %s121
    %p125 = scmp.eq.s32.totalorder %s22, 0
    %p126 = por %p124, %p125
    %p127 = scmp.ne.s32.totalorder %s119, %s121
    %p128 = scmp.eq.s32.totalorder %s27, 1
    %p129 = por %p127, %p128
    %p130 = scmp.ne.s32.totalorder %s121, %s122
    %p131 = scmp.eq.s32.totalorder %s27, 0
    %p132 = por %p130, %p131
    %p133 = scmp.ne.s32.totalorder %s121, %s122
    %p134 = scmp.eq.s32.totalorder %s28, 1
    %p135 = por %p133, %p134
    %p137 = scmp.ne.s32.totalorder %s122, %s136
    %p138 = scmp.eq.s32.totalorder %s28, 0
    %p139 = por %p137, %p138
    %s141 = sadd.s32 %s140, 1
    %p144 = scmp.eq.s32.totalorder %s22, 1
    %p145 = scmp.ne.s32.totalorder %s140, %s142
    %p146 = scmp.eq.s32.totalorder %s22, 0
    %p147 = por %p145, %p146
    %p148 = scmp.ne.s32.totalorder %s140, %s142
    %p149 = scmp.eq.s32.totalorder %s27, 1
    %p150 = por %p148, %p149
    %p151 = scmp.ne.s32.totalorder %s142, %s143
    %p152 = scmp.eq.s32.totalorder %s27, 0
    %p153 = por %p151, %p152
    %p154 = scmp.ne.s32.totalorder %s142, %s143
    %p155 = scmp.eq.s32.totalorder %s28, 1
    %p156 = por %p154, %p155
    %p158 = scmp.ne.s32.totalorder %s143, %s157
    %p159 = scmp.eq.s32.totalorder %s28, 0
    %p160 = por %p158, %p159
    %s162 = sadd.s32 %s161, 1
    %p165 = scmp.eq.s32.totalorder %s22, 1
    %p166 = scmp.ne.s32.totalorder %s161, %s163
    %p167 = scmp.eq.s32.totalorder %s22, 0
    %p168 = por %p166, %p167
    %p169 = scmp.ne.s32.totalorder %s161, %s163
    %p170 = scmp.eq.s32.totalorder %s27, 1
    %p171 = por %p169, %p170
    %p172 = scmp.ne.s32.totalorder %s163, %s164
    %p173 = scmp.eq.s32.totalorder %s27, 0
    %p174 = por %p172, %p173
    %p175 = scmp.ne.s32.totalorder %s163, %s164
    %p176 = scmp.eq.s32.totalorder %s28, 1
    %p177 = por %p175, %p176
    %p179 = scmp.ne.s32.totalorder %s164, %s178
    %p180 = scmp.eq.s32.totalorder %s28, 0
    %p181 = por %p179, %p180
    %s183 = sadd.s32 %s182, 1
    %p186 = scmp.eq.s32.totalorder %s22, 1
    %p187 = scmp.ne.s32.totalorder %s182, %s184
    %p188 = scmp.eq.s32.totalorder %s22, 0
    %p189 = por %p187, %p188
    %p190 = scmp.ne.s32.totalorder %s182, %s184
    %p191 = scmp.eq.s32.totalorder %s27, 1
    %p192 = por %p190, %p191
    %p193 = scmp.ne.s32.totalorder %s184, %s185
    %p194 = scmp.eq.s32.totalorder %s27, 0
    %p195 = por %p193, %p194
    %p196 = scmp.ne.s32.totalorder %s184, %s185
    %p197 = scmp.eq.s32.totalorder %s28, 1
    %p198 = por %p196, %p197
    %p200 = scmp.ne.s32.totalorder %s185, %s199
    %p201 = scmp.eq.s32.totalorder %s28, 0
    %p202 = por %p200, %p201
    %s204 = sadd.s32 %s203, 1
    %p207 = scmp.eq.s32.totalorder %s22, 1
    %p208 = scmp.ne.s32.totalorder %s203, %s205
    %p209 = scmp.eq.s32.totalorder %s22, 0
    %p210 = por %p208, %p209
    %p211 = scmp.ne.s32.totalorder %s203, %s205
    %p212 = scmp.eq.s32.totalorder %s27, 1
    %p213 = por %p211, %p212
    %p214 = scmp.ne.s32.totalorder %s205, %s206
    %p215 = scmp.eq.s32.totalorder %s27, 0
    %p216 = por %p214, %p215
    %p217 = scmp.ne.s32.totalorder %s205, %s206
    %p218 = scmp.eq.s32.totalorder %s28, 1
    %p219 = por %p217, %p218
    %p221 = scmp.ne.s32.totalorder %s206, %s220
    %p222 = scmp.eq.s32.totalorder %s28, 0
    %p223 = por %p221, %p222
    %s225 = sadd.s32 %s224, 1
    %p228 = scmp.eq.s32.totalorder %s22, 1
    %p229 = scmp.ne.s32.totalorder %s224, %s226
    %p230 = scmp.eq.s32.totalorder %s22, 0
    %p231 = por %p229, %p230
    %p232 = scmp.ne.s32.totalorder %s224, %s226
    %p233 = scmp.eq.s32.totalorder %s27, 1
    %p234 = por %p232, %p233
    %p235 = scmp.ne.s32.totalorder %s226, %s227
    %p236 = scmp.eq.s32.totalorder %s27, 0
    %p237 = por %p235, %p236
    %p238 = scmp.ne.s32.totalorder %s226, %s227
    %p239 = scmp.eq.s32.totalorder %s28, 1
    %p240 = por %p238, %p239
    %p242 = scmp.ne.s32.totalorder %s227, %s241
    %p243 = scmp.eq.s32.totalorder %s28, 0
    %p244 = por %p242, %p243
    %s246 = sadd.s32 %s245, 1
    %p249 = scmp.eq.s32.totalorder %s22, 1
    %p250 = scmp.ne.s32.totalorder %s245, %s247
    %p251 = scmp.eq.s32.totalorder %s22, 0
    %p252 = por %p250, %p251
    %p253 = scmp.ne.s32.totalorder %s245, %s247
    %p254 = scmp.eq.s32.totalorder %s27, 1
    %p255 = por %p253, %p254
    %p256 = scmp.ne.s32.totalorder %s247, %s248
    %p257 = scmp.eq.s32.totalorder %s27, 0
    %p258 = por %p256, %p257
    %p259 = scmp.ne.s32.totalorder %s247, %s248
    %p260 = scmp.eq.s32.totalorder %s28, 1
    %p261 = por %p259, %p260
    %p263 = scmp.ne.s32.totalorder %s248, %s262
    %p264 = scmp.eq.s32.totalorder %s28, 0
    %p265 = por %p263, %p264
    %s267 = sadd.s32 %s266, 1
    %p270 = scmp.eq.s32.totalorder %s22, 1
    %p271 = scmp.ne.s32.totalorder %s266, %s268
    %p272 = scmp.eq.s32.totalorder %s22, 0
    %p273 = por %p271, %p272
    %p274 = scmp.ne.s32.totalorder %s266, %s268
    %p275 = scmp.eq.s32.totalorder %s27, 1
    %p276 = por %p274, %p275
    %p277 = scmp.ne.s32.totalorder %s268, %s269
    %p278 = scmp.eq.s32.totalorder %s27, 0
    %p279 = por %p277, %p278
    %p280 = scmp.ne.s32.totalorder %s268, %s269
    %p281 = scmp.eq.s32.totalorder %s28, 1
    %p282 = por %p280, %p281
    %p284 = scmp.ne.s32.totalorder %s269, %s283
    %p285 = scmp.eq.s32.totalorder %s28, 0
    %p286 = por %p284, %p285
    %s288 = sadd.s32 %s287, 1
    %p291 = scmp.eq.s32.totalorder %s22, 1
    %p292 = scmp.ne.s32.totalorder %s287, %s289
    %p293 = scmp.eq.s32.totalorder %s22, 0
    %p294 = por %p292, %p293
    %p295 = scmp.ne.s32.totalorder %s287, %s289
    %p296 = scmp.eq.s32.totalorder %s27, 1
    %p297 = por %p295, %p296
    %p298 = scmp.ne.s32.totalorder %s289, %s290
    %p299 = scmp.eq.s32.totalorder %s27, 0
    %p300 = por %p298, %p299
    %p301 = scmp.ne.s32.totalorder %s289, %s290
    %p302 = scmp.eq.s32.totalorder %s28, 1
    %p303 = por %p301, %p302
    %p305 = scmp.ne.s32.totalorder %s290, %s304
    %p306 = scmp.eq.s32.totalorder %s28, 0
    %p307 = por %p305, %p306
    %s309 = sadd.s32 %s308, 1
    %p312 = scmp.eq.s32.totalorder %s22, 1
    %p313 = scmp.ne.s32.totalorder %s308, %s310
    %p314 = scmp.eq.s32.totalorder %s22, 0
    %p315 = por %p313, %p314
    %p316 = scmp.ne.s32.totalorder %s308, %s310
    %p317 = scmp.eq.s32.totalorder %s27, 1
    %p318 = por %p316, %p317
    %p319 = scmp.ne.s32.totalorder %s310, %s311
    %p320 = scmp.eq.s32.totalorder %s27, 0
    %p321 = por %p319, %p320
    %p322 = scmp.ne.s32.totalorder %s310, %s311
    %p323 = scmp.eq.s32.totalorder %s28, 1
    %p324 = por %p322, %p323
    %p326 = scmp.ne.s32.totalorder %s311, %s325
    %p327 = scmp.eq.s32.totalorder %s28, 0
    %p328 = por %p326, %p327
    %s330 = sadd.s32 %s329, 1
    %p333 = scmp.eq.s32.totalorder %s22, 1
    %p334 = scmp.ne.s32.totalorder %s329, %s331
    %p335 = scmp.eq.s32.totalorder %s22, 0
    %p336 = por %p334, %p335
    %p337 = scmp.ne.s32.totalorder %s329, %s331
    %p338 = scmp.eq.s32.totalorder %s27, 1
    %p339 = por %p337, %p338
    %p340 = scmp.ne.s32.totalorder %s331, %s332
    %p341 = scmp.eq.s32.totalorder %s27, 0
    %p342 = por %p340, %p341
    %p343 = scmp.ne.s32.totalorder %s331, %s332
    %p344 = scmp.eq.s32.totalorder %s28, 1
    %p345 = por %p343, %p344
    %p347 = scmp.ne.s32.totalorder %s332, %s346
    %p348 = scmp.eq.s32.totalorder %s28, 0
    %p349 = por %p347, %p348
    %s351 = sadd.s32 %s350, 1
    %p354 = scmp.eq.s32.totalorder %s22, 1
    %p355 = scmp.ne.s32.totalorder %s350, %s352
    %p356 = scmp.eq.s32.totalorder %s22, 0
    %p357 = por %p355, %p356
    %p358 = scmp.ne.s32.totalorder %s350, %s352
    %p359 = scmp.eq.s32.totalorder %s27, 1
    %p360 = por %p358, %p359
    %p361 = scmp.ne.s32.totalorder %s352, %s353
    %p362 = scmp.eq.s32.totalorder %s27, 0
    %p363 = por %p361, %p362
    %p364 = scmp.ne.s32.totalorder %s352, %s353
    %p365 = scmp.eq.s32.totalorder %s28, 1
    %p366 = por %p364, %p365
    %p368 = scmp.ne.s32.totalorder %s353, %s367
    %p369 = scmp.eq.s32.totalorder %s28, 0
    %p370 = por %p368, %p369
    %s371 = ssub.s32 %s22, %s29
    %p372 = scmp.eq.s32.totalorder %s371, 0
    %s374 = sadd.s32 %s373, 1
    %s375 = scalar_select %p372, %s373, %s374
    %p378 = pneg %p372
    %p379 = scmp.eq.s32.totalorder %s22, 1
    %p380 = por %p378, %p379
    %p381 = scmp.ne.s32.totalorder %s373, %s376
    %p382 = scmp.eq.s32.totalorder %s22, 0
    %p383 = por %p381, %p382
    %p384 = scmp.ne.s32.totalorder %s373, %s376
    %p385 = scmp.eq.s32.totalorder %s27, 1
    %p386 = por %p384, %p385
    %p387 = scmp.ne.s32.totalorder %s376, %s377
    %p388 = scmp.eq.s32.totalorder %s27, 0
    %p389 = por %p387, %p388
    %p390 = scmp.ne.s32.totalorder %s376, %s377
    %p391 = scmp.eq.s32.totalorder %s28, 1
    %p392 = por %p390, %p391
    %p394 = scmp.ne.s32.totalorder %s377, %s393
    %p395 = scmp.eq.s32.totalorder %s28, 0
    %p396 = por %p394, %p395
    %p397 = scmp.le.s32.totalorder 1, %s22
    %p398 = scmp.lt.s32.totalorder %s22, 3
    %p399 = pnand %p397, %p398
    %p400 = pneg %p399
    // Predicated region
    $region9: #{mbconv_block.1} parent=5 // pred_check
      _
    $region10: #{mbconv_block.1} parent=5 // pred_check_branch
      %402 = sbr.rel (%p399) target = $region12
    $region11: #{mbconv_block.1} parent=5 // pred_region
      %s403 = ssub.s32 %s22, 1
      // Predicated region
      $region13: #{mbconv_block.1} parent=11 // pred_check
        %p404 = pneg %p69
      $region14: #{mbconv_block.1} parent=11 // pred_check_branch
        %406 = sbr.rel (%p404) target = $region16
      $region15: #{mbconv_block.1} parent=11 // pred_region
        _
      $region16: #{mbconv_block.1} parent=11 // pred_fallthru
        _
      // Predicated region
      $region17: #{mbconv_block.1} parent=11 // pred_check
        %p407 = pneg %p90
      $region18: #{mbconv_block.1} parent=11 // pred_check_branch
        %409 = sbr.rel (%p407) target = $region20
      $region19: #{mbconv_block.1} parent=11 // pred_region
        _
      $region20: #{mbconv_block.1} parent=11 // pred_fallthru
        _
      // Predicated region
      $region21: #{mbconv_block.1} parent=11 // pred_check
        %p410 = pneg %p111
      $region22: #{mbconv_block.1} parent=11 // pred_check_branch
        %412 = sbr.rel (%p410) target = $region24
      $region23: #{mbconv_block.1} parent=11 // pred_region
        _
      $region24: #{mbconv_block.1} parent=11 // pred_fallthru
        _
      // Predicated region
      $region25: #{mbconv_block.1} parent=11 // pred_check
        %p413 = pneg %p132
      $region26: #{mbconv_block.1} parent=11 // pred_check_branch
        %415 = sbr.rel (%p413) target = $region28
      $region27: #{mbconv_block.1} parent=11 // pred_region
        _
      $region28: #{mbconv_block.1} parent=11 // pred_fallthru
        _
      // Predicated region
      $region29: #{mbconv_block.1} parent=11 // pred_check
        %p416 = pneg %p153
      $region30: #{mbconv_block.1} parent=11 // pred_check_branch
        %418 = sbr.rel (%p416) target = $region32
      $region31: #{mbconv_block.1} parent=11 // pred_region
        _
      $region32: #{mbconv_block.1} parent=11 // pred_fallthru
        _
      // Predicated region
      $region33: #{mbconv_block.1} parent=11 // pred_check
        %p419 = pneg %p174
      $region34: #{mbconv_block.1} parent=11 // pred_check_branch
        %421 = sbr.rel (%p419) target = $region36
      $region35: #{mbconv_block.1} parent=11 // pred_region
        _
      $region36: #{mbconv_block.1} parent=11 // pred_fallthru
        _
      // Predicated region
      $region37: #{mbconv_block.1} parent=11 // pred_check
        %p422 = pneg %p195
      $region38: #{mbconv_block.1} parent=11 // pred_check_branch
        %424 = sbr.rel (%p422) target = $region40
      $region39: #{mbconv_block.1} parent=11 // pred_region
        _
      $region40: #{mbconv_block.1} parent=11 // pred_fallthru
        _
      // Predicated region
      $region41: #{mbconv_block.1} parent=11 // pred_check
        %p425 = pneg %p216
      $region42: #{mbconv_block.1} parent=11 // pred_check_branch
        %427 = sbr.rel (%p425) target = $region44
      $region43: #{mbconv_block.1} parent=11 // pred_region
        _
      $region44: #{mbconv_block.1} parent=11 // pred_fallthru
        _
      // Predicated region
      $region45: #{mbconv_block.1} parent=11 // pred_check
        %p428 = pneg %p237
      $region46: #{mbconv_block.1} parent=11 // pred_check_branch
        %430 = sbr.rel (%p428) target = $region48
      $region47: #{mbconv_block.1} parent=11 // pred_region
        _
      $region48: #{mbconv_block.1} parent=11 // pred_fallthru
        _
      // Predicated region
      $region49: #{mbconv_block.1} parent=11 // pred_check
        %p431 = pneg %p258
      $region50: #{mbconv_block.1} parent=11 // pred_check_branch
        %433 = sbr.rel (%p431) target = $region52
      $region51: #{mbconv_block.1} parent=11 // pred_region
        _
      $region52: #{mbconv_block.1} parent=11 // pred_fallthru
        _
      // Predicated region
      $region53: #{mbconv_block.1} parent=11 // pred_check
        %p434 = pneg %p279
      $region54: #{mbconv_block.1} parent=11 // pred_check_branch
        %436 = sbr.rel (%p434) target = $region56
      $region55: #{mbconv_block.1} parent=11 // pred_region
        _
      $region56: #{mbconv_block.1} parent=11 // pred_fallthru
        _
      // Predicated region
      $region57: #{mbconv_block.1} parent=11 // pred_check
        %p437 = pneg %p300
      $region58: #{mbconv_block.1} parent=11 // pred_check_branch
        %439 = sbr.rel (%p437) target = $region60
      $region59: #{mbconv_block.1} parent=11 // pred_region
        _
      $region60: #{mbconv_block.1} parent=11 // pred_fallthru
        _
      // Predicated region
      $region61: #{mbconv_block.1} parent=11 // pred_check
        %p440 = pneg %p321
      $region62: #{mbconv_block.1} parent=11 // pred_check_branch
        %442 = sbr.rel (%p440) target = $region64
      $region63: #{mbconv_block.1} parent=11 // pred_region
        _
      $region64: #{mbconv_block.1} parent=11 // pred_fallthru
        _
      // Predicated region
      $region65: #{mbconv_block.1} parent=11 // pred_check
        %p443 = pneg %p342
      $region66: #{mbconv_block.1} parent=11 // pred_check_branch
        %445 = sbr.rel (%p443) target = $region68
      $region67: #{mbconv_block.1} parent=11 // pred_region
        _
      $region68: #{mbconv_block.1} parent=11 // pred_fallthru
        _
      // Predicated region
      $region69: #{mbconv_block.1} parent=11 // pred_check
        %p446 = pneg %p363
      $region70: #{mbconv_block.1} parent=11 // pred_check_branch
        %448 = sbr.rel (%p446) target = $region72
      $region71: #{mbconv_block.1} parent=11 // pred_region
        _
      $region72: #{mbconv_block.1} parent=11 // pred_fallthru
        _
    $region12: #{mbconv_block.1} parent=5 // pred_fallthru
      _
    %p449 = scmp.lt.s32.totalorder %s22, 2
    // Predicated region
    $region73: #{mbconv_block.1} parent=5 // pred_check
      %p450 = pneg %p449
    $region74: #{mbconv_block.1} parent=5 // pred_check_branch
      %452 = sbr.rel (%p450) target = $region76
    $region75: #{mbconv_block.1} parent=5 // pred_region
      // Predicated region
      $region77: #{mbconv_block.1} parent=75 // pred_check
        %p453 = pneg %p42
      $region78: #{mbconv_block.1} parent=75 // pred_check_branch
        %455 = sbr.rel (%p453) target = $region80
      $region79: #{mbconv_block.1} parent=75 // pred_region
        %p456 = scmp.lt.s32.totalorder %s22, 1
        %s457 = scalar_select %p456, %s22, 1
        %s458 = smul.addr %s457, 41
        %s459 = smul.addr %s458, 8
        %s460 = scalar_lea.vmem %s0, %s459
      $region80: #{mbconv_block.1} parent=75 // pred_fallthru
        _
    $region76: #{mbconv_block.1} parent=5 // pred_fallthru
      _
    %p461 = scmp.le.s32.totalorder 1, %s22
    %p462 = scmp.lt.s32.totalorder %s22, 3
    %p463 = pnand %p461, %p462
    %p464 = pneg %p463
    // Predicated region
    $region81: #{mbconv_block.1} parent=5 // pred_check
      _
    $region82: #{mbconv_block.1} parent=5 // pred_check_branch
      %466 = sbr.rel (%p463) target = $region84
    $region83: #{mbconv_block.1} parent=5 // pred_region
      %s467 = ssub.s32 %s22, 1
      %p468 = scmp.lt.s32.totalorder %s27, 1
      %s469 = scalar_select %p468, %s27, 1
      %s470 = smul.addr %s469, 41
      %s471 = smul.addr %s470, 8
      %s472 = scalar_lea.vmem %s0, %s471
      %p473 = pneg %p48
      %p474 = pneg %p45
      %p475 = pneg %p69
      %p476 = pneg %p66
      %p477 = pneg %p90
      %p478 = pneg %p87
      %p479 = pneg %p111
      %p480 = pneg %p108
      %p481 = pneg %p132
      %p482 = pneg %p129
      %p483 = pneg %p153
      %p484 = pneg %p150
      %p485 = pneg %p174
      %p486 = pneg %p171
      %p487 = pneg %p195
      %p488 = pneg %p192
      %p489 = pneg %p216
      %p490 = pneg %p213
      %p491 = pneg %p237
      %p492 = pneg %p234
      %p493 = pneg %p258
      %p494 = pneg %p255
      %p495 = pneg %p279
      %p496 = pneg %p276
      %p497 = pneg %p300
      %p498 = pneg %p297
      %p499 = pneg %p321
      %p500 = pneg %p318
      %p501 = pneg %p342
      %p502 = pneg %p339
      %p503 = pneg %p363
      %p504 = pneg %p360
      %p505 = pneg %p389
      %p506 = pneg %p386
      %p507 = scmp.lt.s32.totalorder %s27, 1
      %s508 = scalar_select %p507, %s27, 1
      %s509 = smul.addr %s508, 36
      %s510 = smul.addr %s509, 8
      %s511 = scalar_lea.vmem %s16, %s510
      %p512 = scmp.lt.s32.totalorder %s27, 1
      %s513 = scalar_select %p512, %s27, 1
      %s514 = smul.addr %s513, 41
      %s515 = smul.addr %s514, 8
      %s516 = scalar_lea.vmem %s0, %s515
      %p517 = scmp.lt.s32.totalorder %s27, 1
      %s518 = scalar_select %p517, %s27, 1
      %s519 = smul.addr %s518, 36
      %s520 = smul.addr %s519, 8
      %s521 = scalar_lea.vmem %s16, %s520
      %v523 = vld [vmem:[%s516] sm:$0xff]
      %v524 = vld [vmem:[%s516 + $0x8] sm:$0xff]
      %v525 = vld [vmem:[%s516 + $0x10] sm:$0xff]
      %v526 = vld [vmem:[%s516 + $0x18] sm:$0xff]
      %v527 = vld [vmem:[%s516 + $0x20] sm:$0xff]
      %v528 = vld [vmem:[%s516 + $0x28] sm:$0xff]
      %v529 = vld [vmem:[%s516 + $0x30] sm:$0xff]
      %v530 = vld [vmem:[%s516 + $0x38] sm:$0xff]
      %v531 = vld [vmem:[%s516 + $0x40] sm:$0xff]
      %v532 = vld [vmem:[%s516 + $0x48] sm:$0xff]
      %v533 = vld [vmem:[%s516 + $0x50] sm:$0xff]
      %v534 = vld [vmem:[%s516 + $0x58] sm:$0xff]
      %v535 = vld [vmem:[%s516 + $0x60] sm:$0xff]
      %v536 = vld [vmem:[%s516 + $0x68] sm:$0xff]
      %v537 = vld [vmem:[%s516 + $0x70] sm:$0xff]
      %v538 = vld [vmem:[%s516 + $0x78] sm:$0xff]
      %v539 = vld [vmem:[%s516 + $0x80] sm:$0xff]
      %v540 = vld [vmem:[%s516 + $0x88] sm:$0xff]
      %v541 = vld [vmem:[%s516 + $0x90] sm:$0xff]
      %v542 = vld [vmem:[%s516 + $0x98] sm:$0xff]
      %v543 = vld [vmem:[%s516 + $0xa0] sm:$0xff]
      %v544 = vld [vmem:[%s516 + $0xa8] sm:$0xff]
      %v545 = vld [vmem:[%s516 + $0xb0] sm:$0xff]
      %v546 = vld [vmem:[%s516 + $0xb8] sm:$0xff]
      %v547 = vld [vmem:[%s516 + $0xc0] sm:$0xff]
      %v548 = vld [vmem:[%s516 + $0xc8] sm:$0xff]
      %v549 = vld [vmem:[%s516 + $0xd0] sm:$0xff]
      %v550 = vld [vmem:[%s516 + $0xd8] sm:$0xff]
      %v551 = vld [vmem:[%s516 + $0xe0] sm:$0xff]
      %v552 = vld [vmem:[%s516 + $0xe8] sm:$0xff]
      %v553 = vld [vmem:[%s516 + $0xf0] sm:$0xff]
      %v554 = vld [vmem:[%s516 + $0xf8] sm:$0xff]
      %v555 = vld [vmem:[%s516 + $0x100] sm:$0xff]
      %v556 = vld [vmem:[%s516 + $0x108] sm:$0xff]
      %v557 = vld [vmem:[%s516 + $0x110] sm:$0xff]
      %v558 = vld [vmem:[%s516 + $0x118] sm:$0xff]
      %v559 = vld [vmem:[%s516 + $0x120] sm:$0xff]
      %v560 = vld [vmem:[%s516 + $0x128] sm:$0xff]
      %v561 = vld [vmem:[%s516 + $0x130] sm:$0xff]
      %v562 = vld [vmem:[%s516 + $0x138] sm:$0xff]
      %v563 = vld [vmem:[%s516 + $0x140] sm:$0xf]
      %v564 = vpack.c.bf16 %v524, %v523
      %v565 = vpack.c.bf16 %v526, %v525
      %v566 = vpack.c.bf16 %v528, %v527
      %v567 = vpack.c.bf16 %v530, %v529
      %v568 = vpack.c.bf16 %v532, %v531
      %v569 = vpack.c.bf16 %v534, %v533
      %v570 = vpack.c.bf16 %v536, %v535
      %v571 = vpack.c.bf16 %v538, %v537
      %v572 = vpack.c.bf16 %v540, %v539
      %v573 = vpack.c.bf16 %v542, %v541
      %v574 = vpack.c.bf16 %v544, %v543
      %v575 = vpack.c.bf16 %v546, %v545
      %v576 = vpack.c.bf16 %v548, %v547
      %v577 = vpack.c.bf16 %v550, %v549
      %v578 = vpack.c.bf16 %v552, %v551
      %v579 = vpack.c.bf16 %v554, %v553
      %v580 = vpack.c.bf16 %v556, %v555
      %v581 = vpack.c.bf16 %v558, %v557
      %v582 = vpack.c.bf16 %v560, %v559
      %v583 = vpack.c.bf16 %v562, %v561
      %v584 = vpack.c.bf16 %v563, %v563
      %v585 = vld [vmem:[%s3] sm:$0xff]
      %v586 = vld [vmem:[%s3 + $0x8] sm:$0xff]
      %v587 = vld [vmem:[%s3 + $0x10] sm:$0xff]
      %v588 = vld [vmem:[%s3 + $0x18] sm:$0xff]
      %v593 = vunpack.c.l.b16 %v585
      %v594 = vunpack.c.h.b16 %v585
      %v595 = vunpack.c.l.b16 %v586
      %v596 = vunpack.c.h.b16 %v586
      %v597 = vunpack.c.l.b16 %v587
      %v598 = vunpack.c.h.b16 %v587
      %v599 = vunpack.c.l.b16 %v588
      %v600 = vunpack.c.h.b16 %v588
      %v601 = vpack.c.b16 %v595, %v593
      %v602 = vpack.c.b16 %v596, %v594
      %v603 = vpack.c.b16 %v599, %v597
      %v604 = vpack.c.b16 %v600, %v598
      %vm609 = vcmask 261120
      %v611 = vsel %vm609, %v564, 0
      %v614 = vsel %vm609, %v565, 0
      %v617 = vsel %vm609, %v566, 0
      %v620 = vsel %vm609, %v567, 0
      %v623 = vsel %vm609, %v568, 0
      %v626 = vsel %vm609, %v569, 0
      %v629 = vsel %vm609, %v570, 0
      %v632 = vsel %vm609, %v571, 0
      %v635 = vsel %vm609, %v572, 0
      %v638 = vsel %vm609, %v573, 0
      %v641 = vsel %vm609, %v574, 0
      %v644 = vsel %vm609, %v575, 0
      %v647 = vsel %vm609, %v576, 0
      %v650 = vsel %vm609, %v577, 0
      %v653 = vsel %vm609, %v578, 0
      %v656 = vsel %vm609, %v579, 0
      %v659 = vsel %vm609, %v580, 0
      %v662 = vsel %vm609, %v581, 0
      %v665 = vsel %vm609, %v582, 0
      %v668 = vsel %vm609, %v583, 0
      %v671 = vsel %vm609, %v584, 0
      %673 = vmatprep.subr.bf16.mxu0 0
      %674 = vmatpush1.bf16.msra.mxu0 0
      %675 = vmatprep.subr.bf16.mxu0 0
      %676 = vmatpush1.bf16.msra.mxu0 0
      %677 = vmatprep.subr.bf16.mxu0 0
      %678 = vmatpush1.bf16.msra.mxu0 0
      %679 = vmatprep.subr.bf16.mxu0 0
      %680 = vmatpush1.bf16.msra.mxu0 0
      %681 = vmatprep.subr.bf16.mxu0 0
      %682 = vmatpush1.bf16.msra.mxu0 0
      %683 = vmatprep.subr.bf16.mxu0 0
      %684 = vmatpush1.bf16.msra.mxu0 0
      %685 = vmatprep.subr.bf16.mxu0 %v604
      %686 = vmatpush1.bf16.msra.mxu0 %v603
      %687 = vmatprep.subr.bf16.mxu0 %v602
      %688 = vmatpush1.bf16.msra.mxu0 %v601
      %689 = vmatprep.subr.bf16.mxu0 0
      %690 = vmatpush2.bf16.msra.mxu0 0
      %691 = vmatprep.subr.bf16.mxu0 0
      %692 = vmatpush2.bf16.msra.mxu0 0
      %693 = vmatprep.subr.bf16.mxu0 0
      %694 = vmatpush2.bf16.msra.mxu0 0
      %695 = vmatprep.subr.bf16.mxu0 0
      %696 = vmatpush2.bf16.msra.mxu0 0
      %697 = vmatprep.subr.bf16.mxu0 0
      %698 = vmatpush2.bf16.msra.mxu0 0
      %699 = vmatprep.subr.bf16.mxu0 0
      %700 = vmatpush2.bf16.msra.mxu0 0
      %701 = vmatprep.subr.bf16.mxu0 0
      %702 = vmatpush2.bf16.msra.mxu0 0
      %703 = vmatprep.subr.bf16.mxu0 0
      %704 = vmatpush2.bf16.msra.mxu0 0
      %705 = vmatprep.mubr.bf16.mxu0 0
      %706 = vmatmul.mubr.bf16.gmra.mxu0 %v611
      %v707 = vpop.f32.mrf.mxu0
      %v708 = vadd.f32 0.0, %v707
      %v709 = vpop.f32.mrf.mxu0
      %v710 = vadd.f32 0.0, %v709
      %v711 = vpop.f32.mrf.mxu0
      %v712 = vadd.f32 0.0, %v711
      %v713 = vpop.f32.mrf.mxu0
      %v714 = vadd.f32 0.0, %v713
      %715 = vmatprep.mubr.bf16.mxu0 0
      %716 = vmatmul.mubr.bf16.gmra.mxu0 %v614
      %v717 = vpop.f32.mrf.mxu0
      %v718 = vadd.f32 0.0, %v717
      %v719 = vpop.f32.mrf.mxu0
      %v720 = vadd.f32 0.0, %v719
      %v721 = vpop.f32.mrf.mxu0
      %v722 = vadd.f32 0.0, %v721
      %v723 = vpop.f32.mrf.mxu0
      %v724 = vadd.f32 0.0, %v723
      %725 = vmatprep.mubr.bf16.mxu0 0
      %726 = vmatmul.mubr.bf16.gmra.mxu0 %v617
      %v727 = vpop.f32.mrf.mxu0
      %v728 = vadd.f32 0.0, %v727
      %v729 = vpop.f32.mrf.mxu0
      %v730 = vadd.f32 0.0, %v729
      %v731 = vpop.f32.mrf.mxu0
      %v732 = vadd.f32 0.0, %v731
      %v733 = vpop.f32.mrf.mxu0
      %v734 = vadd.f32 0.0, %v733
      %735 = vmatprep.mubr.bf16.mxu0 0
      %736 = vmatmul.mubr.bf16.gmra.mxu0 %v620
      %v737 = vpop.f32.mrf.mxu0
      %v738 = vadd.f32 0.0, %v737
      %v739 = vpop.f32.mrf.mxu0
      %v740 = vadd.f32 0.0, %v739
      %v741 = vpop.f32.mrf.mxu0
      %v742 = vadd.f32 0.0, %v741
      %v743 = vpop.f32.mrf.mxu0
      %v744 = vadd.f32 0.0, %v743
      %745 = vmatprep.mubr.bf16.mxu0 0
      %746 = vmatmul.mubr.bf16.gmra.mxu0 %v623
      %v747 = vpop.f32.mrf.mxu0
      %v748 = vadd.f32 0.0, %v747
      %v749 = vpop.f32.mrf.mxu0
      %v750 = vadd.f32 0.0, %v749
      %v751 = vpop.f32.mrf.mxu0
      %v752 = vadd.f32 0.0, %v751
      %v753 = vpop.f32.mrf.mxu0
      %v754 = vadd.f32 0.0, %v753
      %755 = vmatprep.mubr.bf16.mxu0 0
      %756 = vmatmul.mubr.bf16.gmra.mxu0 %v626
      %v757 = vpop.f32.mrf.mxu0
      %v758 = vadd.f32 0.0, %v757
      %v759 = vpop.f32.mrf.mxu0
      %v760 = vadd.f32 0.0, %v759
      %v761 = vpop.f32.mrf.mxu0
      %v762 = vadd.f32 0.0, %v761
      %v763 = vpop.f32.mrf.mxu0
      %v764 = vadd.f32 0.0, %v763
      %765 = vmatprep.mubr.bf16.mxu0 0
      %766 = vmatmul.mubr.bf16.gmra.mxu0 %v629
      %v767 = vpop.f32.mrf.mxu0
      %v768 = vadd.f32 0.0, %v767
      %v769 = vpop.f32.mrf.mxu0
      %v770 = vadd.f32 0.0, %v769
      %v771 = vpop.f32.mrf.mxu0
      %v772 = vadd.f32 0.0, %v771
      %v773 = vpop.f32.mrf.mxu0
      %v774 = vadd.f32 0.0, %v773
      %775 = vmatprep.mubr.bf16.mxu0 0
      %776 = vmatmul.mubr.bf16.gmra.mxu0 %v632
      %v777 = vpop.f32.mrf.mxu0
      %v778 = vadd.f32 0.0, %v777
      %v779 = vpop.f32.mrf.mxu0
      %v780 = vadd.f32 0.0, %v779
      %v781 = vpop.f32.mrf.mxu0
      %v782 = vadd.f32 0.0, %v781
      %v783 = vpop.f32.mrf.mxu0
      %v784 = vadd.f32 0.0, %v783
      %785 = vmatprep.mubr.bf16.mxu0 0
      %786 = vmatmul.mubr.bf16.gmra.mxu0 %v635
      %v787 = vpop.f32.mrf.mxu0
      %v788 = vadd.f32 0.0, %v787
      %v789 = vpop.f32.mrf.mxu0
      %v790 = vadd.f32 0.0, %v789
      %v791 = vpop.f32.mrf.mxu0
      %v792 = vadd.f32 0.0, %v791
      %v793 = vpop.f32.mrf.mxu0
      %v794 = vadd.f32 0.0, %v793
      %795 = vmatprep.mubr.bf16.mxu0 0
      %796 = vmatmul.mubr.bf16.gmra.mxu0 %v638
      %v797 = vpop.f32.mrf.mxu0
      %v798 = vadd.f32 0.0, %v797
      %v799 = vpop.f32.mrf.mxu0
      %v800 = vadd.f32 0.0, %v799
      %v801 = vpop.f32.mrf.mxu0
      %v802 = vadd.f32 0.0, %v801
      %v803 = vpop.f32.mrf.mxu0
      %v804 = vadd.f32 0.0, %v803
      %805 = vmatprep.mubr.bf16.mxu0 0
      %806 = vmatmul.mubr.bf16.gmra.mxu0 %v641
      %v807 = vpop.f32.mrf.mxu0
      %v808 = vadd.f32 0.0, %v807
      %v809 = vpop.f32.mrf.mxu0
      %v810 = vadd.f32 0.0, %v809
      %v811 = vpop.f32.mrf.mxu0
      %v812 = vadd.f32 0.0, %v811
      %v813 = vpop.f32.mrf.mxu0
      %v814 = vadd.f32 0.0, %v813
      %815 = vmatprep.mubr.bf16.mxu0 0
      %816 = vmatmul.mubr.bf16.gmra.mxu0 %v644
      %v817 = vpop.f32.mrf.mxu0
      %v818 = vadd.f32 0.0, %v817
      %v819 = vpop.f32.mrf.mxu0
      %v820 = vadd.f32 0.0, %v819
      %v821 = vpop.f32.mrf.mxu0
      %v822 = vadd.f32 0.0, %v821
      %v823 = vpop.f32.mrf.mxu0
      %v824 = vadd.f32 0.0, %v823
      %825 = vmatprep.mubr.bf16.mxu0 0
      %826 = vmatmul.mubr.bf16.gmra.mxu0 %v647
      %v827 = vpop.f32.mrf.mxu0
      %v828 = vadd.f32 0.0, %v827
      %v829 = vpop.f32.mrf.mxu0
      %v830 = vadd.f32 0.0, %v829
      %v831 = vpop.f32.mrf.mxu0
      %v832 = vadd.f32 0.0, %v831
      %v833 = vpop.f32.mrf.mxu0
      %v834 = vadd.f32 0.0, %v833
      %835 = vmatprep.mubr.bf16.mxu0 0
      %836 = vmatmul.mubr.bf16.gmra.mxu0 %v650
      %v837 = vpop.f32.mrf.mxu0
      %v838 = vadd.f32 0.0, %v837
      %v839 = vpop.f32.mrf.mxu0
      %v840 = vadd.f32 0.0, %v839
      %v841 = vpop.f32.mrf.mxu0
      %v842 = vadd.f32 0.0, %v841
      %v843 = vpop.f32.mrf.mxu0
      %v844 = vadd.f32 0.0, %v843
      %845 = vmatprep.mubr.bf16.mxu0 0
      %846 = vmatmul.mubr.bf16.gmra.mxu0 %v653
      %v847 = vpop.f32.mrf.mxu0
      %v848 = vadd.f32 0.0, %v847
      %v849 = vpop.f32.mrf.mxu0
      %v850 = vadd.f32 0.0, %v849
      %v851 = vpop.f32.mrf.mxu0
      %v852 = vadd.f32 0.0, %v851
      %v853 = vpop.f32.mrf.mxu0
      %v854 = vadd.f32 0.0, %v853
      %855 = vmatprep.mubr.bf16.mxu0 0
      %856 = vmatmul.mubr.bf16.gmra.mxu0 %v656
      %v857 = vpop.f32.mrf.mxu0
      %v858 = vadd.f32 0.0, %v857
      %v859 = vpop.f32.mrf.mxu0
      %v860 = vadd.f32 0.0, %v859
      %v861 = vpop.f32.mrf.mxu0
      %v862 = vadd.f32 0.0, %v861
      %v863 = vpop.f32.mrf.mxu0
      %v864 = vadd.f32 0.0, %v863
      %865 = vmatprep.mubr.bf16.mxu0 0
      %866 = vmatmul.mubr.bf16.gmra.mxu0 %v659
      %v867 = vpop.f32.mrf.mxu0
      %v868 = vadd.f32 0.0, %v867
      %v869 = vpop.f32.mrf.mxu0
      %v870 = vadd.f32 0.0, %v869
      %v871 = vpop.f32.mrf.mxu0
      %v872 = vadd.f32 0.0, %v871
      %v873 = vpop.f32.mrf.mxu0
      %v874 = vadd.f32 0.0, %v873
      %875 = vmatprep.mubr.bf16.mxu0 0
      %876 = vmatmul.mubr.bf16.gmra.mxu0 %v662
      %v877 = vpop.f32.mrf.mxu0
      %v878 = vadd.f32 0.0, %v877
      %v879 = vpop.f32.mrf.mxu0
      %v880 = vadd.f32 0.0, %v879
      %v881 = vpop.f32.mrf.mxu0
      %v882 = vadd.f32 0.0, %v881
      %v883 = vpop.f32.mrf.mxu0
      %v884 = vadd.f32 0.0, %v883
      %885 = vmatprep.mubr.bf16.mxu0 0
      %886 = vmatmul.mubr.bf16.gmra.mxu0 %v665
      %v887 = vpop.f32.mrf.mxu0
      %v888 = vadd.f32 0.0, %v887
      %v889 = vpop.f32.mrf.mxu0
      %v890 = vadd.f32 0.0, %v889
      %v891 = vpop.f32.mrf.mxu0
      %v892 = vadd.f32 0.0, %v891
      %v893 = vpop.f32.mrf.mxu0
      %v894 = vadd.f32 0.0, %v893
      %895 = vmatprep.mubr.bf16.mxu0 0
      %896 = vmatmul.mubr.bf16.gmra.mxu0 %v668
      %v897 = vpop.f32.mrf.mxu0
      %v898 = vadd.f32 0.0, %v897
      %v899 = vpop.f32.mrf.mxu0
      %v900 = vadd.f32 0.0, %v899
      %v901 = vpop.f32.mrf.mxu0
      %v902 = vadd.f32 0.0, %v901
      %v903 = vpop.f32.mrf.mxu0
      %v904 = vadd.f32 0.0, %v903
      %905 = vmatprep.mubr.bf16.mxu0 0
      %906 = vmatmul.mubr.bf16.gmra.mxu0 %v671
      %v907 = vpop.f32.mrf.mxu0
      %v908 = vadd.f32 0.0, %v907
      %v909 = vpop.f32.mrf.mxu0
      %v910 = vadd.f32 0.0, %v909
      %v911 = vpop.f32.mrf.mxu0
      %v912 = vpop.f32.mrf.mxu0
      %913 = vdwg.mxu0
      %v914 = vld [vmem:[%s4] sm:$0x3]
      %v916 = vlaneseq
      %v917 = vshrl.u32 %v916, 7
      %v918 = vsub.s32 0, %v917
      %v919 = vrot.slane %v914, %v918
      %v920 = vlaneseq
      %v921 = vshrl.u32 %v920, 7
      %v922 = vsub.s32 1, %v921
      %v923 = vrot.slane %v914, %v922
      %v926 = vmul.f32 %v708, %v919
      %v927 = vmul.f32 %v710, %v923
      %v928 = vmul.f32 %v712, %v919
      %v929 = vmul.f32 %v714, %v923
      %v930 = vmul.f32 %v718, %v919
      %v931 = vmul.f32 %v720, %v923
      %v932 = vmul.f32 %v722, %v919
      %v933 = vmul.f32 %v724, %v923
      %v934 = vmul.f32 %v728, %v919
      %v935 = vmul.f32 %v730, %v923
      %v936 = vmul.f32 %v732, %v919
      %v937 = vmul.f32 %v734, %v923
      %v938 = vmul.f32 %v738, %v919
      %v939 = vmul.f32 %v740, %v923
      %v940 = vmul.f32 %v742, %v919
      %v941 = vmul.f32 %v744, %v923
      %v942 = vmul.f32 %v748, %v919
      %v943 = vmul.f32 %v750, %v923
      %v944 = vmul.f32 %v752, %v919
      %v945 = vmul.f32 %v754, %v923
      %v946 = vmul.f32 %v758, %v919
      %v947 = vmul.f32 %v760, %v923
      %v948 = vmul.f32 %v762, %v919
      %v949 = vmul.f32 %v764, %v923
      %v950 = vmul.f32 %v768, %v919
      %v951 = vmul.f32 %v770, %v923
      %v952 = vmul.f32 %v772, %v919
      %v953 = vmul.f32 %v774, %v923
      %v954 = vmul.f32 %v778, %v919
      %v955 = vmul.f32 %v780, %v923
      %v956 = vmul.f32 %v782, %v919
      %v957 = vmul.f32 %v784, %v923
      %v958 = vmul.f32 %v788, %v919
      %v959 = vmul.f32 %v790, %v923
      %v960 = vmul.f32 %v792, %v919
      %v961 = vmul.f32 %v794, %v923
      %v962 = vmul.f32 %v798, %v919
      %v963 = vmul.f32 %v800, %v923
      %v964 = vmul.f32 %v802, %v919
      %v965 = vmul.f32 %v804, %v923
      %v966 = vmul.f32 %v808, %v919
      %v967 = vmul.f32 %v810, %v923
      %v968 = vmul.f32 %v812, %v919
      %v969 = vmul.f32 %v814, %v923
      %v970 = vmul.f32 %v818, %v919
      %v971 = vmul.f32 %v820, %v923
      %v972 = vmul.f32 %v822, %v919
      %v973 = vmul.f32 %v824, %v923
      %v974 = vmul.f32 %v828, %v919
      %v975 = vmul.f32 %v830, %v923
      %v976 = vmul.f32 %v832, %v919
      %v977 = vmul.f32 %v834, %v923
      %v978 = vmul.f32 %v838, %v919
      %v979 = vmul.f32 %v840, %v923
      %v980 = vmul.f32 %v842, %v919
      %v981 = vmul.f32 %v844, %v923
      %v982 = vmul.f32 %v848, %v919
      %v983 = vmul.f32 %v850, %v923
      %v984 = vmul.f32 %v852, %v919
      %v985 = vmul.f32 %v854, %v923
      %v986 = vmul.f32 %v858, %v919
      %v987 = vmul.f32 %v860, %v923
      %v988 = vmul.f32 %v862, %v919
      %v989 = vmul.f32 %v864, %v923
      %v990 = vmul.f32 %v868, %v919
      %v991 = vmul.f32 %v870, %v923
      %v992 = vmul.f32 %v872, %v919
      %v993 = vmul.f32 %v874, %v923
      %v994 = vmul.f32 %v878, %v919
      %v995 = vmul.f32 %v880, %v923
      %v996 = vmul.f32 %v882, %v919
      %v997 = vmul.f32 %v884, %v923
      %v998 = vmul.f32 %v888, %v919
      %v999 = vmul.f32 %v890, %v923
      %v1000 = vmul.f32 %v892, %v919
      %v1001 = vmul.f32 %v894, %v923
      %v1002 = vmul.f32 %v898, %v919
      %v1003 = vmul.f32 %v900, %v923
      %v1004 = vmul.f32 %v902, %v919
      %v1005 = vmul.f32 %v904, %v923
      %v1006 = vmul.f32 %v908, %v919
      %v1007 = vmul.f32 %v910, %v923
      %v1008 = vld [vmem:[%s5] sm:$0x3]
      %v1010 = vlaneseq
      %v1011 = vshrl.u32 %v1010, 7
      %v1012 = vsub.s32 0, %v1011
      %v1013 = vrot.slane %v1008, %v1012
      %v1014 = vlaneseq
      %v1015 = vshrl.u32 %v1014, 7
      %v1016 = vsub.s32 1, %v1015
      %v1017 = vrot.slane %v1008, %v1016
      %v1020 = vadd.f32 %v926, %v1013
      %v1021 = vadd.f32 %v927, %v1017
      %v1022 = vadd.f32 %v928, %v1013
      %v1023 = vadd.f32 %v929, %v1017
      %v1024 = vadd.f32 %v930, %v1013
      %v1025 = vadd.f32 %v931, %v1017
      %v1026 = vadd.f32 %v932, %v1013
      %v1027 = vadd.f32 %v933, %v1017
      %v1028 = vadd.f32 %v934, %v1013
      %v1029 = vadd.f32 %v935, %v1017
      %v1030 = vadd.f32 %v936, %v1013
      %v1031 = vadd.f32 %v937, %v1017
      %v1032 = vadd.f32 %v938, %v1013
      %v1033 = vadd.f32 %v939, %v1017
      %v1034 = vadd.f32 %v940, %v1013
      %v1035 = vadd.f32 %v941, %v1017
      %v1036 = vadd.f32 %v942, %v1013
      %v1037 = vadd.f32 %v943, %v1017
      %v1038 = vadd.f32 %v944, %v1013
      %v1039 = vadd.f32 %v945, %v1017
      %v1040 = vadd.f32 %v946, %v1013
      %v1041 = vadd.f32 %v947, %v1017
      %v1042 = vadd.f32 %v948, %v1013
      %v1043 = vadd.f32 %v949, %v1017
      %v1044 = vadd.f32 %v950, %v1013
      %v1045 = vadd.f32 %v951, %v1017
      %v1046 = vadd.f32 %v952, %v1013
      %v1047 = vadd.f32 %v953, %v1017
      %v1048 = vadd.f32 %v954, %v1013
      %v1049 = vadd.f32 %v955, %v1017
      %v1050 = vadd.f32 %v956, %v1013
      %v1051 = vadd.f32 %v957, %v1017
      %v1052 = vadd.f32 %v958, %v1013
      %v1053 = vadd.f32 %v959, %v1017
      %v1054 = vadd.f32 %v960, %v1013
      %v1055 = vadd.f32 %v961, %v1017
      %v1056 = vadd.f32 %v962, %v1013
      %v1057 = vadd.f32 %v963, %v1017
      %v1058 = vadd.f32 %v964, %v1013
      %v1059 = vadd.f32 %v965, %v1017
      %v1060 = vadd.f32 %v966, %v1013
      %v1061 = vadd.f32 %v967, %v1017
      %v1062 = vadd.f32 %v968, %v1013
      %v1063 = vadd.f32 %v969, %v1017
      %v1064 = vadd.f32 %v970, %v1013
      %v1065 = vadd.f32 %v971, %v1017
      %v1066 = vadd.f32 %v972, %v1013
      %v1067 = vadd.f32 %v973, %v1017
      %v1068 = vadd.f32 %v974, %v1013
      %v1069 = vadd.f32 %v975, %v1017
      %v1070 = vadd.f32 %v976, %v1013
      %v1071 = vadd.f32 %v977, %v1017
      %v1072 = vadd.f32 %v978, %v1013
      %v1073 = vadd.f32 %v979, %v1017
      %v1074 = vadd.f32 %v980, %v1013
      %v1075 = vadd.f32 %v981, %v1017
      %v1076 = vadd.f32 %v982, %v1013
      %v1077 = vadd.f32 %v983, %v1017
      %v1078 = vadd.f32 %v984, %v1013
      %v1079 = vadd.f32 %v985, %v1017
      %v1080 = vadd.f32 %v986, %v1013
      %v1081 = vadd.f32 %v987, %v1017
      %v1082 = vadd.f32 %v988, %v1013
      %v1083 = vadd.f32 %v989, %v1017
      %v1084 = vadd.f32 %v990, %v1013
      %v1085 = vadd.f32 %v991, %v1017
      %v1086 = vadd.f32 %v992, %v1013
      %v1087 = vadd.f32 %v993, %v1017
      %v1088 = vadd.f32 %v994, %v1013
      %v1089 = vadd.f32 %v995, %v1017
      %v1090 = vadd.f32 %v996, %v1013
      %v1091 = vadd.f32 %v997, %v1017
      %v1092 = vadd.f32 %v998, %v1013
      %v1093 = vadd.f32 %v999, %v1017
      %v1094 = vadd.f32 %v1000, %v1013
      %v1095 = vadd.f32 %v1001, %v1017
      %v1096 = vadd.f32 %v1002, %v1013
      %v1097 = vadd.f32 %v1003, %v1017
      %v1098 = vadd.f32 %v1004, %v1013
      %v1099 = vadd.f32 %v1005, %v1017
      %v1100 = vadd.f32 %v1006, %v1013
      %v1101 = vadd.f32 %v1007, %v1017
      %v1102 = vmax.f32 %v1020, 0.0
      %v1103 = vmax.f32 %v1021, 0.0
      %v1104 = vmax.f32 %v1022, 0.0
      %v1105 = vmax.f32 %v1023, 0.0
      %v1106 = vmax.f32 %v1024, 0.0
      %v1107 = vmax.f32 %v1025, 0.0
      %v1108 = vmax.f32 %v1026, 0.0
      %v1109 = vmax.f32 %v1027, 0.0
      %v1110 = vmax.f32 %v1028, 0.0
      %v1111 = vmax.f32 %v1029, 0.0
      %v1112 = vmax.f32 %v1030, 0.0
      %v1113 = vmax.f32 %v1031, 0.0
      %v1114 = vmax.f32 %v1032, 0.0
      %v1115 = vmax.f32 %v1033, 0.0
      %v1116 = vmax.f32 %v1034, 0.0
      %v1117 = vmax.f32 %v1035, 0.0
      %v1118 = vmax.f32 %v1036, 0.0
      %v1119 = vmax.f32 %v1037, 0.0
      %v1120 = vmax.f32 %v1038, 0.0
      %v1121 = vmax.f32 %v1039, 0.0
      %v1122 = vmax.f32 %v1040, 0.0
      %v1123 = vmax.f32 %v1041, 0.0
      %v1124 = vmax.f32 %v1042, 0.0
      %v1125 = vmax.f32 %v1043, 0.0
      %v1126 = vmax.f32 %v1044, 0.0
      %v1127 = vmax.f32 %v1045, 0.0
      %v1128 = vmax.f32 %v1046, 0.0
      %v1129 = vmax.f32 %v1047, 0.0
      %v1130 = vmax.f32 %v1048, 0.0
      %v1131 = vmax.f32 %v1049, 0.0
      %v1132 = vmax.f32 %v1050, 0.0
      %v1133 = vmax.f32 %v1051, 0.0
      %v1134 = vmax.f32 %v1052, 0.0
      %v1135 = vmax.f32 %v1053, 0.0
      %v1136 = vmax.f32 %v1054, 0.0
      %v1137 = vmax.f32 %v1055, 0.0
      %v1138 = vmax.f32 %v1056, 0.0
      %v1139 = vmax.f32 %v1057, 0.0
      %v1140 = vmax.f32 %v1058, 0.0
      %v1141 = vmax.f32 %v1059, 0.0
      %v1142 = vmax.f32 %v1060, 0.0
      %v1143 = vmax.f32 %v1061, 0.0
      %v1144 = vmax.f32 %v1062, 0.0
      %v1145 = vmax.f32 %v1063, 0.0
      %v1146 = vmax.f32 %v1064, 0.0
      %v1147 = vmax.f32 %v1065, 0.0
      %v1148 = vmax.f32 %v1066, 0.0
      %v1149 = vmax.f32 %v1067, 0.0
      %v1150 = vmax.f32 %v1068, 0.0
      %v1151 = vmax.f32 %v1069, 0.0
      %v1152 = vmax.f32 %v1070, 0.0
      %v1153 = vmax.f32 %v1071, 0.0
      %v1154 = vmax.f32 %v1072, 0.0
      %v1155 = vmax.f32 %v1073, 0.0
      %v1156 = vmax.f32 %v1074, 0.0
      %v1157 = vmax.f32 %v1075, 0.0
      %v1158 = vmax.f32 %v1076, 0.0
      %v1159 = vmax.f32 %v1077, 0.0
      %v1160 = vmax.f32 %v1078, 0.0
      %v1161 = vmax.f32 %v1079, 0.0
      %v1162 = vmax.f32 %v1080, 0.0
      %v1163 = vmax.f32 %v1081, 0.0
      %v1164 = vmax.f32 %v1082, 0.0
      %v1165 = vmax.f32 %v1083, 0.0
      %v1166 = vmax.f32 %v1084, 0.0
      %v1167 = vmax.f32 %v1085, 0.0
      %v1168 = vmax.f32 %v1086, 0.0
      %v1169 = vmax.f32 %v1087, 0.0
      %v1170 = vmax.f32 %v1088, 0.0
      %v1171 = vmax.f32 %v1089, 0.0
      %v1172 = vmax.f32 %v1090, 0.0
      %v1173 = vmax.f32 %v1091, 0.0
      %v1174 = vmax.f32 %v1092, 0.0
      %v1175 = vmax.f32 %v1093, 0.0
      %v1176 = vmax.f32 %v1094, 0.0
      %v1177 = vmax.f32 %v1095, 0.0
      %v1178 = vmax.f32 %v1096, 0.0
      %v1179 = vmax.f32 %v1097, 0.0
      %v1180 = vmax.f32 %v1098, 0.0
      %v1181 = vmax.f32 %v1099, 0.0
      %v1182 = vmax.f32 %v1100, 0.0
      %v1183 = vmax.f32 %v1101, 0.0
      %v1184 = vmin.f32 %v1102, 6.0
      %v1185 = vmin.f32 %v1103, 6.0
      %v1186 = vmin.f32 %v1104, 6.0
      %v1187 = vmin.f32 %v1105, 6.0
      %v1188 = vmin.f32 %v1106, 6.0
      %v1189 = vmin.f32 %v1107, 6.0
      %v1190 = vmin.f32 %v1108, 6.0
      %v1191 = vmin.f32 %v1109, 6.0
      %v1192 = vmin.f32 %v1110, 6.0
      %v1193 = vmin.f32 %v1111, 6.0
      %v1194 = vmin.f32 %v1112, 6.0
      %v1195 = vmin.f32 %v1113, 6.0
      %v1196 = vmin.f32 %v1114, 6.0
      %v1197 = vmin.f32 %v1115, 6.0
      %v1198 = vmin.f32 %v1116, 6.0
      %v1199 = vmin.f32 %v1117, 6.0
      %v1200 = vmin.f32 %v1118, 6.0
      %v1201 = vmin.f32 %v1119, 6.0
      %v1202 = vmin.f32 %v1120, 6.0
      %v1203 = vmin.f32 %v1121, 6.0
      %v1204 = vmin.f32 %v1122, 6.0
      %v1205 = vmin.f32 %v1123, 6.0
      %v1206 = vmin.f32 %v1124, 6.0
      %v1207 = vmin.f32 %v1125, 6.0
      %v1208 = vmin.f32 %v1126, 6.0
      %v1209 = vmin.f32 %v1127, 6.0
      %v1210 = vmin.f32 %v1128, 6.0
      %v1211 = vmin.f32 %v1129, 6.0
      %v1212 = vmin.f32 %v1130, 6.0
      %v1213 = vmin.f32 %v1131, 6.0
      %v1214 = vmin.f32 %v1132, 6.0
      %v1215 = vmin.f32 %v1133, 6.0
      %v1216 = vmin.f32 %v1134, 6.0
      %v1217 = vmin.f32 %v1135, 6.0
      %v1218 = vmin.f32 %v1136, 6.0
      %v1219 = vmin.f32 %v1137, 6.0
      %v1220 = vmin.f32 %v1138, 6.0
      %v1221 = vmin.f32 %v1139, 6.0
      %v1222 = vmin.f32 %v1140, 6.0
      %v1223 = vmin.f32 %v1141, 6.0
      %v1224 = vmin.f32 %v1142, 6.0
      %v1225 = vmin.f32 %v1143, 6.0
      %v1226 = vmin.f32 %v1144, 6.0
      %v1227 = vmin.f32 %v1145, 6.0
      %v1228 = vmin.f32 %v1146, 6.0
      %v1229 = vmin.f32 %v1147, 6.0
      %v1230 = vmin.f32 %v1148, 6.0
      %v1231 = vmin.f32 %v1149, 6.0
      %v1232 = vmin.f32 %v1150, 6.0
      %v1233 = vmin.f32 %v1151, 6.0
      %v1234 = vmin.f32 %v1152, 6.0
      %v1235 = vmin.f32 %v1153, 6.0
      %v1236 = vmin.f32 %v1154, 6.0
      %v1237 = vmin.f32 %v1155, 6.0
      %v1238 = vmin.f32 %v1156, 6.0
      %v1239 = vmin.f32 %v1157, 6.0
      %v1240 = vmin.f32 %v1158, 6.0
      %v1241 = vmin.f32 %v1159, 6.0
      %v1242 = vmin.f32 %v1160, 6.0
      %v1243 = vmin.f32 %v1161, 6.0
      %v1244 = vmin.f32 %v1162, 6.0
      %v1245 = vmin.f32 %v1163, 6.0
      %v1246 = vmin.f32 %v1164, 6.0
      %v1247 = vmin.f32 %v1165, 6.0
      %v1248 = vmin.f32 %v1166, 6.0
      %v1249 = vmin.f32 %v1167, 6.0
      %v1250 = vmin.f32 %v1168, 6.0
      %v1251 = vmin.f32 %v1169, 6.0
      %v1252 = vmin.f32 %v1170, 6.0
      %v1253 = vmin.f32 %v1171, 6.0
      %v1254 = vmin.f32 %v1172, 6.0
      %v1255 = vmin.f32 %v1173, 6.0
      %v1256 = vmin.f32 %v1174, 6.0
      %v1257 = vmin.f32 %v1175, 6.0
      %v1258 = vmin.f32 %v1176, 6.0
      %v1259 = vmin.f32 %v1177, 6.0
      %v1260 = vmin.f32 %v1178, 6.0
      %v1261 = vmin.f32 %v1179, 6.0
      %v1262 = vmin.f32 %v1180, 6.0
      %v1263 = vmin.f32 %v1181, 6.0
      %v1264 = vmin.f32 %v1182, 6.0
      %v1265 = vmin.f32 %v1183, 6.0
      %v1266 = vld [vmem:[%s1] sm:$0xff]
      %v1267 = vld [vmem:[%s1 + $0x8] sm:$0xff]
      %v1268 = vld [vmem:[%s1 + $0x10] sm:$0xff]
      %v1269 = vld [vmem:[%s1 + $0x18] sm:$0xff]
      %v1270 = vld [vmem:[%s1 + $0x20] sm:$0xff]
      %v1271 = vld [vmem:[%s1 + $0x28] sm:$0xff]
      %v1272 = vld [vmem:[%s1 + $0x30] sm:$0xff]
      %v1273 = vld [vmem:[%s1 + $0x38] sm:$0xff]
      %v1274 = vld [vmem:[%s1 + $0x40] sm:$0xff]
      %v1275 = vld [vmem:[%s1 + $0x48] sm:$0xff]
      %v1276 = vld [vmem:[%s1 + $0x50] sm:$0xff]
      %v1277 = vld [vmem:[%s1 + $0x58] sm:$0xff]
      %v1278 = vld [vmem:[%s1 + $0x60] sm:$0xff]
      %v1279 = vld [vmem:[%s1 + $0x68] sm:$0xff]
      %v1280 = vld [vmem:[%s1 + $0x70] sm:$0xff]
      %v1281 = vld [vmem:[%s1 + $0x78] sm:$0xff]
      %v1282 = vld [vmem:[%s1 + $0x80] sm:$0xff]
      %v1283 = vld [vmem:[%s1 + $0x88] sm:$0xff]
      %v1284 = vld [vmem:[%s1 + $0x90] sm:$0xff]
      %v1285 = vld [vmem:[%s1 + $0x98] sm:$0xff]
      %v1286 = vld [vmem:[%s1 + $0xa0] sm:$0xff]
      %v1287 = vld [vmem:[%s1 + $0xa8] sm:$0xff]
      %v1288 = vld [vmem:[%s1 + $0xb0] sm:$0xff]
      %v1289 = vld [vmem:[%s1 + $0xb8] sm:$0xff]
      %v1290 = vld [vmem:[%s1 + $0xc0] sm:$0xff]
      %v1291 = vld [vmem:[%s1 + $0xc8] sm:$0xff]
      %v1292 = vld [vmem:[%s1 + $0xd0] sm:$0xff]
      %v1293 = vld [vmem:[%s1 + $0xd8] sm:$0xff]
      %v1294 = vld [vmem:[%s1 + $0xe0] sm:$0xff]
      %v1295 = vld [vmem:[%s1 + $0xe8] sm:$0xff]
      %v1296 = vld [vmem:[%s1 + $0xf0] sm:$0xff]
      %v1297 = vld [vmem:[%s1 + $0xf8] sm:$0xff]
      %v1298 = vld [vmem:[%s1 + $0x100] sm:$0xff]
      %v1299 = vld [vmem:[%s1 + $0x108] sm:$0xff]
      %v1300 = vld [vmem:[%s1 + $0x110] sm:$0xff]
      %v1301 = vld [vmem:[%s1 + $0x118] sm:$0xff]
      %v1302 = vld [vmem:[%s1 + $0x120] sm:$0xff]
      %v1303 = vld [vmem:[%s1 + $0x128] sm:$0xff]
      %v1304 = vld [vmem:[%s1 + $0x130] sm:$0xff]
      %v1305 = vld [vmem:[%s1 + $0x138] sm:$0xff]
      %v1306 = vld [vmem:[%s1 + $0x140] sm:$0xf]
      %1308 = vset.pattern.permute.xlu0 0
      %1309 = vperm.xlu0 %1308, %v1266
      %v1310 = vpop.permute.xlu0 %1309
      %1313 = vset.pattern.permute.xlu0 0
      %1314 = vperm.xlu0 %1313, %v1267
      %v1315 = vpop.permute.xlu0 %1314
      %1318 = vset.pattern.permute.xlu0 0
      %1319 = vperm.xlu0 %1318, %v1268
      %v1320 = vpop.permute.xlu0 %1319
      %1323 = vset.pattern.permute.xlu0 0
      %1324 = vperm.xlu0 %1323, %v1269
      %v1325 = vpop.permute.xlu0 %1324
      %1328 = vset.pattern.permute.xlu0 0
      %1329 = vperm.xlu0 %1328, %v1270
      %v1330 = vpop.permute.xlu0 %1329
      %1333 = vset.pattern.permute.xlu0 0
      %1334 = vperm.xlu0 %1333, %v1271
      %v1335 = vpop.permute.xlu0 %1334
      %1338 = vset.pattern.permute.xlu0 0
      %1339 = vperm.xlu0 %1338, %v1272
      %v1340 = vpop.permute.xlu0 %1339
      %1343 = vset.pattern.permute.xlu0 0
      %1344 = vperm.xlu0 %1343, %v1273
      %v1345 = vpop.permute.xlu0 %1344
      %1348 = vset.pattern.permute.xlu0 0
      %1349 = vperm.xlu0 %1348, %v1274
      %v1350 = vpop.permute.xlu0 %1349
      %1353 = vset.pattern.permute.xlu0 0
      %1354 = vperm.xlu0 %1353, %v1275
      %v1355 = vpop.permute.xlu0 %1354
      %1358 = vset.pattern.permute.xlu0 0
      %1359 = vperm.xlu0 %1358, %v1276
      %v1360 = vpop.permute.xlu0 %1359
      %1363 = vset.pattern.permute.xlu0 0
      %1364 = vperm.xlu0 %1363, %v1277
      %v1365 = vpop.permute.xlu0 %1364
      %1368 = vset.pattern.permute.xlu0 0
      %1369 = vperm.xlu0 %1368, %v1278
      %v1370 = vpop.permute.xlu0 %1369
      %1373 = vset.pattern.permute.xlu0 0
      %1374 = vperm.xlu0 %1373, %v1279
      %v1375 = vpop.permute.xlu0 %1374
      %1378 = vset.pattern.permute.xlu0 0
      %1379 = vperm.xlu0 %1378, %v1280
      %v1380 = vpop.permute.xlu0 %1379
      %1383 = vset.pattern.permute.xlu0 0
      %1384 = vperm.xlu0 %1383, %v1281
      %v1385 = vpop.permute.xlu0 %1384
      %1388 = vset.pattern.permute.xlu0 0
      %1389 = vperm.xlu0 %1388, %v1282
      %v1390 = vpop.permute.xlu0 %1389
      %1393 = vset.pattern.permute.xlu0 0
      %1394 = vperm.xlu0 %1393, %v1283
      %v1395 = vpop.permute.xlu0 %1394
      %1398 = vset.pattern.permute.xlu0 0
      %1399 = vperm.xlu0 %1398, %v1284
      %v1400 = vpop.permute.xlu0 %1399
      %1403 = vset.pattern.permute.xlu0 0
      %1404 = vperm.xlu0 %1403, %v1285
      %v1405 = vpop.permute.xlu0 %1404
      %1408 = vset.pattern.permute.xlu0 0
      %1409 = vperm.xlu0 %1408, %v1286
      %v1410 = vpop.permute.xlu0 %1409
      %1413 = vset.pattern.permute.xlu0 0
      %1414 = vperm.xlu0 %1413, %v1287
      %v1415 = vpop.permute.xlu0 %1414
      %1418 = vset.pattern.permute.xlu0 0
      %1419 = vperm.xlu0 %1418, %v1288
      %v1420 = vpop.permute.xlu0 %1419
      %1423 = vset.pattern.permute.xlu0 0
      %1424 = vperm.xlu0 %1423, %v1289
      %v1425 = vpop.permute.xlu0 %1424
      %1428 = vset.pattern.permute.xlu0 0
      %1429 = vperm.xlu0 %1428, %v1290
      %v1430 = vpop.permute.xlu0 %1429
      %1433 = vset.pattern.permute.xlu0 0
      %1434 = vperm.xlu0 %1433, %v1291
      %v1435 = vpop.permute.xlu0 %1434
      %1438 = vset.pattern.permute.xlu0 0
      %1439 = vperm.xlu0 %1438, %v1292
      %v1440 = vpop.permute.xlu0 %1439
      %1443 = vset.pattern.permute.xlu0 0
      %1444 = vperm.xlu0 %1443, %v1293
      %v1445 = vpop.permute.xlu0 %1444
      %1448 = vset.pattern.permute.xlu0 0
      %1449 = vperm.xlu0 %1448, %v1294
      %v1450 = vpop.permute.xlu0 %1449
      %1453 = vset.pattern.permute.xlu0 0
      %1454 = vperm.xlu0 %1453, %v1295
      %v1455 = vpop.permute.xlu0 %1454
      %1458 = vset.pattern.permute.xlu0 0
      %1459 = vperm.xlu0 %1458, %v1296
      %v1460 = vpop.permute.xlu0 %1459
      %1463 = vset.pattern.permute.xlu0 0
      %1464 = vperm.xlu0 %1463, %v1297
      %v1465 = vpop.permute.xlu0 %1464
      %1468 = vset.pattern.permute.xlu0 0
      %1469 = vperm.xlu0 %1468, %v1298
      %v1470 = vpop.permute.xlu0 %1469
      %1473 = vset.pattern.permute.xlu0 0
      %1474 = vperm.xlu0 %1473, %v1299
      %v1475 = vpop.permute.xlu0 %1474
      %1478 = vset.pattern.permute.xlu0 0
      %1479 = vperm.xlu0 %1478, %v1300
      %v1480 = vpop.permute.xlu0 %1479
      %1483 = vset.pattern.permute.xlu0 0
      %1484 = vperm.xlu0 %1483, %v1301
      %v1485 = vpop.permute.xlu0 %1484
      %1488 = vset.pattern.permute.xlu0 0
      %1489 = vperm.xlu0 %1488, %v1302
      %v1490 = vpop.permute.xlu0 %1489
      %1493 = vset.pattern.permute.xlu0 0
      %1494 = vperm.xlu0 %1493, %v1303
      %v1495 = vpop.permute.xlu0 %1494
      %1498 = vset.pattern.permute.xlu0 0
      %1499 = vperm.xlu0 %1498, %v1304
      %v1500 = vpop.permute.xlu0 %1499
      %1503 = vset.pattern.permute.xlu0 0
      %1504 = vperm.xlu0 %1503, %v1305
      %v1505 = vpop.permute.xlu0 %1504
      %1508 = vset.pattern.permute.xlu0 0
      %1509 = vperm.xlu0 %1508, %v1306
      %v1510 = vpop.permute.xlu0 %1509
      %v1512 = vmul.f32 %v1184, %v1310
      %v1513 = vmul.f32 %v1185, %v1310
      %v1514 = vmul.f32 %v1186, %v1315
      %v1515 = vmul.f32 %v1187, %v1315
      %v1516 = vmul.f32 %v1188, %v1320
      %v1517 = vmul.f32 %v1189, %v1320
      %v1518 = vmul.f32 %v1190, %v1325
      %v1519 = vmul.f32 %v1191, %v1325
      %v1520 = vmul.f32 %v1192, %v1330
      %v1521 = vmul.f32 %v1193, %v1330
      %v1522 = vmul.f32 %v1194, %v1335
      %v1523 = vmul.f32 %v1195, %v1335
      %v1524 = vmul.f32 %v1196, %v1340
      %v1525 = vmul.f32 %v1197, %v1340
      %v1526 = vmul.f32 %v1198, %v1345
      %v1527 = vmul.f32 %v1199, %v1345
      %v1528 = vmul.f32 %v1200, %v1350
      %v1529 = vmul.f32 %v1201, %v1350
      %v1530 = vmul.f32 %v1202, %v1355
      %v1531 = vmul.f32 %v1203, %v1355
      %v1532 = vmul.f32 %v1204, %v1360
      %v1533 = vmul.f32 %v1205, %v1360
      %v1534 = vmul.f32 %v1206, %v1365
      %v1535 = vmul.f32 %v1207, %v1365
      %v1536 = vmul.f32 %v1208, %v1370
      %v1537 = vmul.f32 %v1209, %v1370
      %v1538 = vmul.f32 %v1210, %v1375
      %v1539 = vmul.f32 %v1211, %v1375
      %v1540 = vmul.f32 %v1212, %v1380
      %v1541 = vmul.f32 %v1213, %v1380
      %v1542 = vmul.f32 %v1214, %v1385
      %v1543 = vmul.f32 %v1215, %v1385
      %v1544 = vmul.f32 %v1216, %v1390
      %v1545 = vmul.f32 %v1217, %v1390
      %v1546 = vmul.f32 %v1218, %v1395
      %v1547 = vmul.f32 %v1219, %v1395
      %v1548 = vmul.f32 %v1220, %v1400
      %v1549 = vmul.f32 %v1221, %v1400
      %v1550 = vmul.f32 %v1222, %v1405
      %v1551 = vmul.f32 %v1223, %v1405
      %v1552 = vmul.f32 %v1224, %v1410
      %v1553 = vmul.f32 %v1225, %v1410
      %v1554 = vmul.f32 %v1226, %v1415
      %v1555 = vmul.f32 %v1227, %v1415
      %v1556 = vmul.f32 %v1228, %v1420
      %v1557 = vmul.f32 %v1229, %v1420
      %v1558 = vmul.f32 %v1230, %v1425
      %v1559 = vmul.f32 %v1231, %v1425
      %v1560 = vmul.f32 %v1232, %v1430
      %v1561 = vmul.f32 %v1233, %v1430
      %v1562 = vmul.f32 %v1234, %v1435
      %v1563 = vmul.f32 %v1235, %v1435
      %v1564 = vmul.f32 %v1236, %v1440
      %v1565 = vmul.f32 %v1237, %v1440
      %v1566 = vmul.f32 %v1238, %v1445
      %v1567 = vmul.f32 %v1239, %v1445
      %v1568 = vmul.f32 %v1240, %v1450
      %v1569 = vmul.f32 %v1241, %v1450
      %v1570 = vmul.f32 %v1242, %v1455
      %v1571 = vmul.f32 %v1243, %v1455
      %v1572 = vmul.f32 %v1244, %v1460
      %v1573 = vmul.f32 %v1245, %v1460
      %v1574 = vmul.f32 %v1246, %v1465
      %v1575 = vmul.f32 %v1247, %v1465
      %v1576 = vmul.f32 %v1248, %v1470
      %v1577 = vmul.f32 %v1249, %v1470
      %v1578 = vmul.f32 %v1250, %v1475
      %v1579 = vmul.f32 %v1251, %v1475
      %v1580 = vmul.f32 %v1252, %v1480
      %v1581 = vmul.f32 %v1253, %v1480
      %v1582 = vmul.f32 %v1254, %v1485
      %v1583 = vmul.f32 %v1255, %v1485
      %v1584 = vmul.f32 %v1256, %v1490
      %v1585 = vmul.f32 %v1257, %v1490
      %v1586 = vmul.f32 %v1258, %v1495
      %v1587 = vmul.f32 %v1259, %v1495
      %v1588 = vmul.f32 %v1260, %v1500
      %v1589 = vmul.f32 %v1261, %v1500
      %v1590 = vmul.f32 %v1262, %v1505
      %v1591 = vmul.f32 %v1263, %v1505
      %v1592 = vmul.f32 %v1264, %v1510
      %v1593 = vmul.f32 %v1265, %v1510
      %1594 = vst [vmem:[#allocation2] sm:$0xff] %v1512
      %vm1595 = vcmask 523264
      %1596 = vst.msk [vmem:[#allocation2 + $0x8] sm:$0xff] %vm1595, %v1513
      %1597 = vst [vmem:[#allocation2 + $0x10] sm:$0xff] %v1514
      %1598 = vst.msk [vmem:[#allocation2 + $0x18] sm:$0xff] %vm1595, %v1515
      %1599 = vst [vmem:[#allocation2 + $0x20] sm:$0xff] %v1516
      %1600 = vst.msk [vmem:[#allocation2 + $0x28] sm:$0xff] %vm1595, %v1517
      %1601 = vst [vmem:[#allocation2 + $0x30] sm:$0xff] %v1518
      %1602 = vst.msk [vmem:[#allocation2 + $0x38] sm:$0xff] %vm1595, %v1519
      %1603 = vst [vmem:[#allocation2 + $0x40] sm:$0xff] %v1520
      %1604 = vst.msk [vmem:[#allocation2 + $0x48] sm:$0xff] %vm1595, %v1521
      %1605 = vst [vmem:[#allocation2 + $0x50] sm:$0xff] %v1522
      %1606 = vst.msk [vmem:[#allocation2 + $0x58] sm:$0xff] %vm1595, %v1523
      %1607 = vst [vmem:[#allocation2 + $0x60] sm:$0xff] %v1524
      %1608 = vst.msk [vmem:[#allocation2 + $0x68] sm:$0xff] %vm1595, %v1525
      %1609 = vst [vmem:[#allocation2 + $0x70] sm:$0xff] %v1526
      %1610 = vst.msk [vmem:[#allocation2 + $0x78] sm:$0xff] %vm1595, %v1527
      %1611 = vst [vmem:[#allocation2 + $0x80] sm:$0xff] %v1528
      %1612 = vst.msk [vmem:[#allocation2 + $0x88] sm:$0xff] %vm1595, %v1529
      %1613 = vst [vmem:[#allocation2 + $0x90] sm:$0xff] %v1530
      %1614 = vst.msk [vmem:[#allocation2 + $0x98] sm:$0xff] %vm1595, %v1531
      %1615 = vst [vmem:[#allocation2 + $0xa0] sm:$0xff] %v1532
      %1616 = vst.msk [vmem:[#allocation2 + $0xa8] sm:$0xff] %vm1595, %v1533
      %1617 = vst [vmem:[#allocation2 + $0xb0] sm:$0xff] %v1534
      %1618 = vst.msk [vmem:[#allocation2 + $0xb8] sm:$0xff] %vm1595, %v1535
      %1619 = vst [vmem:[#allocation2 + $0xc0] sm:$0xff] %v1536
      %1620 = vst.msk [vmem:[#allocation2 + $0xc8] sm:$0xff] %vm1595, %v1537
      %1621 = vst [vmem:[#allocation2 + $0xd0] sm:$0xff] %v1538
      %1622 = vst.msk [vmem:[#allocation2 + $0xd8] sm:$0xff] %vm1595, %v1539
      %1623 = vst [vmem:[#allocation2 + $0xe0] sm:$0xff] %v1540
      %1624 = vst.msk [vmem:[#allocation2 + $0xe8] sm:$0xff] %vm1595, %v1541
      %1625 = vst [vmem:[#allocation2 + $0xf0] sm:$0xff] %v1542
      %1626 = vst.msk [vmem:[#allocation2 + $0xf8] sm:$0xff] %vm1595, %v1543
      %1627 = vst [vmem:[#allocation2 + $0x100] sm:$0xff] %v1544
      %1628 = vst.msk [vmem:[#allocation2 + $0x108] sm:$0xff] %vm1595, %v1545
      %1629 = vst [vmem:[#allocation2 + $0x110] sm:$0xff] %v1546
      %1630 = vst.msk [vmem:[#allocation2 + $0x118] sm:$0xff] %vm1595, %v1547
      %1631 = vst [vmem:[#allocation2 + $0x120] sm:$0xff] %v1548
      %1632 = vst.msk [vmem:[#allocation2 + $0x128] sm:$0xff] %vm1595, %v1549
      %1633 = vst [vmem:[#allocation2 + $0x130] sm:$0xff] %v1550
      %1634 = vst.msk [vmem:[#allocation2 + $0x138] sm:$0xff] %vm1595, %v1551
      %1635 = vst [vmem:[#allocation2 + $0x140] sm:$0xff] %v1552
      %1636 = vst.msk [vmem:[#allocation2 + $0x148] sm:$0xff] %vm1595, %v1553
      %1637 = vst [vmem:[#allocation2 + $0x150] sm:$0xff] %v1554
      %1638 = vst.msk [vmem:[#allocation2 + $0x158] sm:$0xff] %vm1595, %v1555
      %1639 = vst [vmem:[#allocation2 + $0x160] sm:$0xff] %v1556
      %1640 = vst.msk [vmem:[#allocation2 + $0x168] sm:$0xff] %vm1595, %v1557
      %1641 = vst [vmem:[#allocation2 + $0x170] sm:$0xff] %v1558
      %1642 = vst.msk [vmem:[#allocation2 + $0x178] sm:$0xff] %vm1595, %v1559
      %1643 = vst [vmem:[#allocation2 + $0x180] sm:$0xff] %v1560
      %1644 = vst.msk [vmem:[#allocation2 + $0x188] sm:$0xff] %vm1595, %v1561
      %1645 = vst [vmem:[#allocation2 + $0x190] sm:$0xff] %v1562
      %1646 = vst.msk [vmem:[#allocation2 + $0x198] sm:$0xff] %vm1595, %v1563
      %1647 = vst [vmem:[#allocation2 + $0x1a0] sm:$0xff] %v1564
      %1648 = vst.msk [vmem:[#allocation2 + $0x1a8] sm:$0xff] %vm1595, %v1565
      %1649 = vst [vmem:[#allocation2 + $0x1b0] sm:$0xff] %v1566
      %1650 = vst.msk [vmem:[#allocation2 + $0x1b8] sm:$0xff] %vm1595, %v1567
      %1651 = vst [vmem:[#allocation2 + $0x1c0] sm:$0xff] %v1568
      %1652 = vst.msk [vmem:[#allocation2 + $0x1c8] sm:$0xff] %vm1595, %v1569
      %1653 = vst [vmem:[#allocation2 + $0x1d0] sm:$0xff] %v1570
      %1654 = vst.msk [vmem:[#allocation2 + $0x1d8] sm:$0xff] %vm1595, %v1571
      %1655 = vst [vmem:[#allocation2 + $0x1e0] sm:$0xff] %v1572
      %1656 = vst.msk [vmem:[#allocation2 + $0x1e8] sm:$0xff] %vm1595, %v1573
      %1657 = vst [vmem:[#allocation2 + $0x1f0] sm:$0xff] %v1574
      %1658 = vst.msk [vmem:[#allocation2 + $0x1f8] sm:$0xff] %vm1595, %v1575
      %1659 = vst [vmem:[#allocation2 + $0x200] sm:$0xff] %v1576
      %1660 = vst.msk [vmem:[#allocation2 + $0x208] sm:$0xff] %vm1595, %v1577
      %1661 = vst [vmem:[#allocation2 + $0x210] sm:$0xff] %v1578
      %1662 = vst.msk [vmem:[#allocation2 + $0x218] sm:$0xff] %vm1595, %v1579
      %1663 = vst [vmem:[#allocation2 + $0x220] sm:$0xff] %v1580
      %1664 = vst.msk [vmem:[#allocation2 + $0x228] sm:$0xff] %vm1595, %v1581
      %1665 = vst [vmem:[#allocation2 + $0x230] sm:$0xff] %v1582
      %1666 = vst.msk [vmem:[#allocation2 + $0x238] sm:$0xff] %vm1595, %v1583
      %1667 = vst [vmem:[#allocation2 + $0x240] sm:$0xff] %v1584
      %1668 = vst.msk [vmem:[#allocation2 + $0x248] sm:$0xff] %vm1595, %v1585
      %1669 = vst [vmem:[#allocation2 + $0x250] sm:$0xff] %v1586
      %1670 = vst.msk [vmem:[#allocation2 + $0x258] sm:$0xff] %vm1595, %v1587
      %1671 = vst [vmem:[#allocation2 + $0x260] sm:$0xff] %v1588
      %1672 = vst.msk [vmem:[#allocation2 + $0x268] sm:$0xff] %vm1595, %v1589
      %1673 = vst [vmem:[#allocation2 + $0x270] sm:$0xff] %v1590
      %1674 = vst.msk [vmem:[#allocation2 + $0x278] sm:$0xff] %vm1595, %v1591
      %1675 = vst [vmem:[#allocation2 + $0x280] sm:$0xf] %v1592
      %vm1676 = vcmask 519168
      %1677 = vst.msk [vmem:[#allocation2 + $0x288] sm:$0xf] %vm1676, %v1593
      %v1678 = vld [vmem:[%s6] sm:$0x3]
      %v1679 = vld [vmem:[%s6 + $0x2] sm:$0x3]
      %v1680 = vld [vmem:[%s6 + $0x4] sm:$0x3]
      %v1681 = vld [vmem:[%s6 + $0x6] sm:$0x3]
      %v1682 = vld [vmem:[%s6 + $0x8] sm:$0x3]
      %v1683 = vld [vmem:[%s6 + $0xa] sm:$0x3]
      %v1684 = vld [vmem:[%s6 + $0xc] sm:$0x3]
      %v1685 = vld [vmem:[%s6 + $0xe] sm:$0x3]
      %v1686 = vld [vmem:[%s6 + $0x10] sm:$0x3]
      %v1687 = vld [vmem:[#allocation2] sm:$0xff]
      %v1688 = vld [vmem:[#allocation2 + $0x8] sm:$0xff]
      %v1689 = vld [vmem:[#allocation2 + $0x10] sm:$0xff]
      %v1690 = vld [vmem:[#allocation2 + $0x18] sm:$0xff]
      %v1691 = vld [vmem:[#allocation2 + $0x20] sm:$0xff]
      %v1692 = vld [vmem:[#allocation2 + $0x28] sm:$0xff]
      %v1693 = vld [vmem:[#allocation2 + $0x30] sm:$0xff]
      %v1694 = vld [vmem:[#allocation2 + $0x38] sm:$0xff]
      %v1695 = vld [vmem:[#allocation2 + $0x40] sm:$0xff]
      %v1696 = vld [vmem:[#allocation2 + $0x48] sm:$0xff]
      %v1697 = vld [vmem:[#allocation2 + $0x50] sm:$0xff]
      %v1698 = vld [vmem:[#allocation2 + $0x58] sm:$0xff]
      %v1699 = vld [vmem:[#allocation2 + $0x60] sm:$0xff]
      %v1700 = vld [vmem:[#allocation2 + $0x68] sm:$0xff]
      %v1701 = vld [vmem:[#allocation2 + $0x70] sm:$0xff]
      %v1702 = vld [vmem:[#allocation2 + $0x78] sm:$0xff]
      %v1703 = vld [vmem:[#allocation2 + $0x80] sm:$0xff]
      %v1704 = vld [vmem:[#allocation2 + $0x88] sm:$0xff]
      %v1705 = vld [vmem:[#allocation2 + $0x90] sm:$0xff]
      %v1706 = vld [vmem:[#allocation2 + $0x98] sm:$0xff]
      %v1707 = vld [vmem:[#allocation2 + $0xa0] sm:$0xff]
      %v1708 = vld [vmem:[#allocation2 + $0xa8] sm:$0xff]
      %v1709 = vld [vmem:[#allocation2 + $0xb0] sm:$0xff]
      %v1710 = vld [vmem:[#allocation2 + $0xb8] sm:$0xff]
      %v1711 = vld [vmem:[#allocation2 + $0xc0] sm:$0xff]
      %v1712 = vld [vmem:[#allocation2 + $0xc8] sm:$0xff]
      %v1713 = vld [vmem:[#allocation2 + $0xd0] sm:$0xff]
      %v1714 = vld [vmem:[#allocation2 + $0xd8] sm:$0xff]
      %v1715 = vld [vmem:[#allocation2 + $0xe0] sm:$0xff]
      %v1716 = vld [vmem:[#allocation2 + $0xe8] sm:$0xff]
      %v1717 = vld [vmem:[#allocation2 + $0xf0] sm:$0xff]
      %v1718 = vld [vmem:[#allocation2 + $0xf8] sm:$0xff]
      %v1719 = vld [vmem:[#allocation2 + $0x100] sm:$0xff]
      %v1720 = vld [vmem:[#allocation2 + $0x108] sm:$0xff]
      %v1721 = vld [vmem:[#allocation2 + $0x110] sm:$0xff]
      %v1722 = vld [vmem:[#allocation2 + $0x118] sm:$0xff]
      %v1723 = vld [vmem:[#allocation2 + $0x120] sm:$0xff]
      %v1724 = vld [vmem:[#allocation2 + $0x128] sm:$0xff]
      %v1725 = vld [vmem:[#allocation2 + $0x130] sm:$0xff]
      %v1726 = vld [vmem:[#allocation2 + $0x138] sm:$0xff]
      %v1727 = vld [vmem:[#allocation2 + $0x140] sm:$0xff]
      %v1728 = vld [vmem:[#allocation2 + $0x148] sm:$0xff]
      %v1729 = vld [vmem:[#allocation2 + $0x150] sm:$0xff]
      %v1730 = vld [vmem:[#allocation2 + $0x158] sm:$0xff]
      %v1731 = vld [vmem:[#allocation2 + $0x160] sm:$0xff]
      %v1732 = vld [vmem:[#allocation2 + $0x168] sm:$0xff]
      %v1733 = vld [vmem:[#allocation2 + $0x170] sm:$0xff]
      %v1734 = vld [vmem:[#allocation2 + $0x178] sm:$0xff]
      %v1735 = vld [vmem:[#allocation2 + $0x180] sm:$0xff]
      %v1736 = vld [vmem:[#allocation2 + $0x188] sm:$0xff]
      %v1737 = vld [vmem:[#allocation2 + $0x190] sm:$0xff]
      %v1738 = vld [vmem:[#allocation2 + $0x198] sm:$0xff]
      %v1739 = vld [vmem:[#allocation2 + $0x1a0] sm:$0xff]
      %v1740 = vld [vmem:[#allocation2 + $0x1a8] sm:$0xff]
      %v1741 = vld [vmem:[#allocation2 + $0x1b0] sm:$0xff]
      %v1742 = vld [vmem:[#allocation2 + $0x1b8] sm:$0xff]
      %v1743 = vld [vmem:[#allocation2 + $0x1c0] sm:$0xff]
      %v1744 = vld [vmem:[#allocation2 + $0x1c8] sm:$0xff]
      %v1745 = vld [vmem:[#allocation2 + $0x1d0] sm:$0xff]
      %v1746 = vld [vmem:[#allocation2 + $0x1d8] sm:$0xff]
      %v1747 = vld [vmem:[#allocation2 + $0x1e0] sm:$0xff]
      %v1748 = vld [vmem:[#allocation2 + $0x1e8] sm:$0xff]
      %v1749 = vld [vmem:[#allocation2 + $0x1f0] sm:$0xff]
      %v1750 = vld [vmem:[#allocation2 + $0x1f8] sm:$0xff]
      %v1751 = vld [vmem:[#allocation2 + $0x200] sm:$0xff]
      %v1752 = vld [vmem:[#allocation2 + $0x208] sm:$0xff]
      %v1753 = vld [vmem:[#allocation2 + $0x210] sm:$0xff]
      %v1754 = vld [vmem:[#allocation2 + $0x218] sm:$0xff]
      %v1755 = vld [vmem:[#allocation2 + $0x220] sm:$0xff]
      %v1756 = vld [vmem:[#allocation2 + $0x228] sm:$0xff]
      %v1757 = vld [vmem:[#allocation2 + $0x230] sm:$0x3f]
      %v1758 = vld [vmem:[#allocation2 + $0x238] sm:$0x3f]
      %v1760 = vlaneseq
      %v1761 = vshrl.u32 %v1760, 7
      %v1762 = vsub.s32 0, %v1761
      %v1763 = vrot.slane %v1678, %v1762
      %v1764 = vlaneseq
      %v1765 = vshrl.u32 %v1764, 7
      %v1766 = vsub.s32 1, %v1765
      %v1767 = vrot.slane %v1678, %v1766
      %v1770 = vmul.f32 %v1687, %v1763
      %v1771 = vmul.f32 %v1688, %v1767
      %v1772 = vmul.f32 %v1689, %v1763
      %v1773 = vmul.f32 %v1690, %v1767
      %v1774 = vmul.f32 %v1691, %v1763
      %v1775 = vmul.f32 %v1692, %v1767
      %v1776 = vmul.f32 %v1693, %v1763
      %v1777 = vmul.f32 %v1694, %v1767
      %v1778 = vmul.f32 %v1695, %v1763
      %v1779 = vmul.f32 %v1696, %v1767
      %v1780 = vmul.f32 %v1697, %v1763
      %v1781 = vmul.f32 %v1698, %v1767
      %v1782 = vmul.f32 %v1699, %v1763
      %v1783 = vmul.f32 %v1700, %v1767
      %v1784 = vmul.f32 %v1701, %v1763
      %v1785 = vmul.f32 %v1702, %v1767
      %v1786 = vmul.f32 %v1703, %v1763
      %v1787 = vmul.f32 %v1704, %v1767
      %v1788 = vmul.f32 %v1705, %v1763
      %v1789 = vmul.f32 %v1706, %v1767
      %v1790 = vmul.f32 %v1707, %v1763
      %v1791 = vmul.f32 %v1708, %v1767
      %v1792 = vmul.f32 %v1709, %v1763
      %v1793 = vmul.f32 %v1710, %v1767
      %v1794 = vmul.f32 %v1711, %v1763
      %v1795 = vmul.f32 %v1712, %v1767
      %v1796 = vmul.f32 %v1713, %v1763
      %v1797 = vmul.f32 %v1714, %v1767
      %v1798 = vmul.f32 %v1715, %v1763
      %v1799 = vmul.f32 %v1716, %v1767
      %v1800 = vmul.f32 %v1717, %v1763
      %v1801 = vmul.f32 %v1718, %v1767
      %v1802 = vmul.f32 %v1719, %v1763
      %v1803 = vmul.f32 %v1720, %v1767
      %v1804 = vmul.f32 %v1721, %v1763
      %v1805 = vmul.f32 %v1722, %v1767
      %v1806 = vmul.f32 %v1723, %v1763
      %v1807 = vmul.f32 %v1724, %v1767
      %v1808 = vmul.f32 %v1725, %v1763
      %v1809 = vmul.f32 %v1726, %v1767
      %v1810 = vmul.f32 %v1727, %v1763
      %v1811 = vmul.f32 %v1728, %v1767
      %v1812 = vmul.f32 %v1729, %v1763
      %v1813 = vmul.f32 %v1730, %v1767
      %v1814 = vmul.f32 %v1731, %v1763
      %v1815 = vmul.f32 %v1732, %v1767
      %v1816 = vmul.f32 %v1733, %v1763
      %v1817 = vmul.f32 %v1734, %v1767
      %v1818 = vmul.f32 %v1735, %v1763
      %v1819 = vmul.f32 %v1736, %v1767
      %v1820 = vmul.f32 %v1737, %v1763
      %v1821 = vmul.f32 %v1738, %v1767
      %v1822 = vmul.f32 %v1739, %v1763
      %v1823 = vmul.f32 %v1740, %v1767
      %v1824 = vmul.f32 %v1741, %v1763
      %v1825 = vmul.f32 %v1742, %v1767
      %v1826 = vmul.f32 %v1743, %v1763
      %v1827 = vmul.f32 %v1744, %v1767
      %v1828 = vmul.f32 %v1745, %v1763
      %v1829 = vmul.f32 %v1746, %v1767
      %v1830 = vmul.f32 %v1747, %v1763
      %v1831 = vmul.f32 %v1748, %v1767
      %v1832 = vmul.f32 %v1749, %v1763
      %v1833 = vmul.f32 %v1750, %v1767
      %v1834 = vmul.f32 %v1751, %v1763
      %v1835 = vmul.f32 %v1752, %v1767
      %v1836 = vmul.f32 %v1753, %v1763
      %v1837 = vmul.f32 %v1754, %v1767
      %v1838 = vmul.f32 %v1755, %v1763
      %v1839 = vmul.f32 %v1756, %v1767
      %v1840 = vmul.f32 %v1757, %v1763
      %v1841 = vmul.f32 %v1758, %v1767
      %v1842 = vadd.f32 %v1770, 0.0
      %v1843 = vadd.f32 %v1771, 0.0
      %v1844 = vadd.f32 %v1772, 0.0
      %v1845 = vadd.f32 %v1773, 0.0
      %v1846 = vadd.f32 %v1774, 0.0
      %v1847 = vadd.f32 %v1775, 0.0
      %v1848 = vadd.f32 %v1776, 0.0
      %v1849 = vadd.f32 %v1777, 0.0
      %v1850 = vadd.f32 %v1778, 0.0
      %v1851 = vadd.f32 %v1779, 0.0
      %v1852 = vadd.f32 %v1780, 0.0
      %v1853 = vadd.f32 %v1781, 0.0
      %v1854 = vadd.f32 %v1782, 0.0
      %v1855 = vadd.f32 %v1783, 0.0
      %v1856 = vadd.f32 %v1784, 0.0
      %v1857 = vadd.f32 %v1785, 0.0
      %v1858 = vadd.f32 %v1786, 0.0
      %v1859 = vadd.f32 %v1787, 0.0
      %v1860 = vadd.f32 %v1788, 0.0
      %v1861 = vadd.f32 %v1789, 0.0
      %v1862 = vadd.f32 %v1790, 0.0
      %v1863 = vadd.f32 %v1791, 0.0
      %v1864 = vadd.f32 %v1792, 0.0
      %v1865 = vadd.f32 %v1793, 0.0
      %v1866 = vadd.f32 %v1794, 0.0
      %v1867 = vadd.f32 %v1795, 0.0
      %v1868 = vadd.f32 %v1796, 0.0
      %v1869 = vadd.f32 %v1797, 0.0
      %v1870 = vadd.f32 %v1798, 0.0
      %v1871 = vadd.f32 %v1799, 0.0
      %v1872 = vadd.f32 %v1800, 0.0
      %v1873 = vadd.f32 %v1801, 0.0
      %v1874 = vadd.f32 %v1802, 0.0
      %v1875 = vadd.f32 %v1803, 0.0
      %v1876 = vadd.f32 %v1804, 0.0
      %v1877 = vadd.f32 %v1805, 0.0
      %v1878 = vadd.f32 %v1806, 0.0
      %v1879 = vadd.f32 %v1807, 0.0
      %v1880 = vadd.f32 %v1808, 0.0
      %v1881 = vadd.f32 %v1809, 0.0
      %v1882 = vadd.f32 %v1810, 0.0
      %v1883 = vadd.f32 %v1811, 0.0
      %v1884 = vadd.f32 %v1812, 0.0
      %v1885 = vadd.f32 %v1813, 0.0
      %v1886 = vadd.f32 %v1814, 0.0
      %v1887 = vadd.f32 %v1815, 0.0
      %v1888 = vadd.f32 %v1816, 0.0
      %v1889 = vadd.f32 %v1817, 0.0
      %v1890 = vadd.f32 %v1818, 0.0
      %v1891 = vadd.f32 %v1819, 0.0
      %v1892 = vadd.f32 %v1820, 0.0
      %v1893 = vadd.f32 %v1821, 0.0
      %v1894 = vadd.f32 %v1822, 0.0
      %v1895 = vadd.f32 %v1823, 0.0
      %v1896 = vadd.f32 %v1824, 0.0
      %v1897 = vadd.f32 %v1825, 0.0
      %v1898 = vadd.f32 %v1826, 0.0
      %v1899 = vadd.f32 %v1827, 0.0
      %v1900 = vadd.f32 %v1828, 0.0
      %v1901 = vadd.f32 %v1829, 0.0
      %v1902 = vadd.f32 %v1830, 0.0
      %v1903 = vadd.f32 %v1831, 0.0
      %v1904 = vadd.f32 %v1832, 0.0
      %v1905 = vadd.f32 %v1833, 0.0
      %v1906 = vadd.f32 %v1834, 0.0
      %v1907 = vadd.f32 %v1835, 0.0
      %v1908 = vadd.f32 %v1836, 0.0
      %v1909 = vadd.f32 %v1837, 0.0
      %v1910 = vadd.f32 %v1838, 0.0
      %v1911 = vadd.f32 %v1839, 0.0
      %v1912 = vadd.f32 %v1840, 0.0
      %v1913 = vadd.f32 %v1841, 0.0
      %v1914 = vld [vmem:[#allocation2] sm:$0xfe]
      %v1915 = vld [vmem:[#allocation2 + $0x8] sm:$0xfe]
      %v1916 = vld [vmem:[#allocation2 + $0x230] sm:$0x7f]
      %v1917 = vld [vmem:[#allocation2 + $0x238] sm:$0x7f]
      %v1919 = vlaneseq
      %v1920 = vshrl.u32 %v1919, 7
      %v1921 = vsub.s32 0, %v1920
      %v1922 = vrot.slane %v1679, %v1921
      %v1923 = vlaneseq
      %v1924 = vshrl.u32 %v1923, 7
      %v1925 = vsub.s32 1, %v1924
      %v1926 = vrot.slane %v1679, %v1925
      %v1929 = vmul.f32 %v1914, %v1922
      %v1930 = vmul.f32 %v1915, %v1926
      %v1931 = vmul.f32 %v1689, %v1922
      %v1932 = vmul.f32 %v1690, %v1926
      %v1933 = vmul.f32 %v1691, %v1922
      %v1934 = vmul.f32 %v1692, %v1926
      %v1935 = vmul.f32 %v1693, %v1922
      %v1936 = vmul.f32 %v1694, %v1926
      %v1937 = vmul.f32 %v1695, %v1922
      %v1938 = vmul.f32 %v1696, %v1926
      %v1939 = vmul.f32 %v1697, %v1922
      %v1940 = vmul.f32 %v1698, %v1926
      %v1941 = vmul.f32 %v1699, %v1922
      %v1942 = vmul.f32 %v1700, %v1926
      %v1943 = vmul.f32 %v1701, %v1922
      %v1944 = vmul.f32 %v1702, %v1926
      %v1945 = vmul.f32 %v1703, %v1922
      %v1946 = vmul.f32 %v1704, %v1926
      %v1947 = vmul.f32 %v1705, %v1922
      %v1948 = vmul.f32 %v1706, %v1926
      %v1949 = vmul.f32 %v1707, %v1922
      %v1950 = vmul.f32 %v1708, %v1926
      %v1951 = vmul.f32 %v1709, %v1922
      %v1952 = vmul.f32 %v1710, %v1926
      %v1953 = vmul.f32 %v1711, %v1922
      %v1954 = vmul.f32 %v1712, %v1926
      %v1955 = vmul.f32 %v1713, %v1922
      %v1956 = vmul.f32 %v1714, %v1926
      %v1957 = vmul.f32 %v1715, %v1922
      %v1958 = vmul.f32 %v1716, %v1926
      %v1959 = vmul.f32 %v1717, %v1922
      %v1960 = vmul.f32 %v1718, %v1926
      %v1961 = vmul.f32 %v1719, %v1922
      %v1962 = vmul.f32 %v1720, %v1926
      %v1963 = vmul.f32 %v1721, %v1922
      %v1964 = vmul.f32 %v1722, %v1926
      %v1965 = vmul.f32 %v1723, %v1922
      %v1966 = vmul.f32 %v1724, %v1926
      %v1967 = vmul.f32 %v1725, %v1922
      %v1968 = vmul.f32 %v1726, %v1926
      %v1969 = vmul.f32 %v1727, %v1922
      %v1970 = vmul.f32 %v1728, %v1926
      %v1971 = vmul.f32 %v1729, %v1922
      %v1972 = vmul.f32 %v1730, %v1926
      %v1973 = vmul.f32 %v1731, %v1922
      %v1974 = vmul.f32 %v1732, %v1926
      %v1975 = vmul.f32 %v1733, %v1922
      %v1976 = vmul.f32 %v1734, %v1926
      %v1977 = vmul.f32 %v1735, %v1922
      %v1978 = vmul.f32 %v1736, %v1926
      %v1979 = vmul.f32 %v1737, %v1922
      %v1980 = vmul.f32 %v1738, %v1926
      %v1981 = vmul.f32 %v1739, %v1922
      %v1982 = vmul.f32 %v1740, %v1926
      %v1983 = vmul.f32 %v1741, %v1922
      %v1984 = vmul.f32 %v1742, %v1926
      %v1985 = vmul.f32 %v1743, %v1922
      %v1986 = vmul.f32 %v1744, %v1926
      %v1987 = vmul.f32 %v1745, %v1922
      %v1988 = vmul.f32 %v1746, %v1926
      %v1989 = vmul.f32 %v1747, %v1922
      %v1990 = vmul.f32 %v1748, %v1926
      %v1991 = vmul.f32 %v1749, %v1922
      %v1992 = vmul.f32 %v1750, %v1926
      %v1993 = vmul.f32 %v1751, %v1922
      %v1994 = vmul.f32 %v1752, %v1926
      %v1995 = vmul.f32 %v1753, %v1922
      %v1996 = vmul.f32 %v1754, %v1926
      %v1997 = vmul.f32 %v1755, %v1922
      %v1998 = vmul.f32 %v1756, %v1926
      %v1999 = vmul.f32 %v1916, %v1922
      %v2000 = vmul.f32 %v1917, %v1926
      %vm2073 = vcmask 1046528
      %v2074 = vrot.slane %v1929, 1
      %v2075 = vrot.slane %v1931, 1
      %v2076 = vsel %vm2073, %v2074, %v2075
      %v2077 = vrot.slane %v1930, 1
      %v2078 = vrot.slane %v1932, 1
      %v2079 = vsel %vm2073, %v2077, %v2078
      %v2080 = vrot.slane %v1933, 1
      %v2081 = vsel %vm2073, %v2075, %v2080
      %v2082 = vrot.slane %v1934, 1
      %v2083 = vsel %vm2073, %v2078, %v2082
      %v2084 = vrot.slane %v1935, 1
      %v2085 = vsel %vm2073, %v2080, %v2084
      %v2086 = vrot.slane %v1936, 1
      %v2087 = vsel %vm2073, %v2082, %v2086
      %v2088 = vrot.slane %v1937, 1
      %v2089 = vsel %vm2073, %v2084, %v2088
      %v2090 = vrot.slane %v1938, 1
      %v2091 = vsel %vm2073, %v2086, %v2090
      %v2092 = vrot.slane %v1939, 1
      %v2093 = vsel %vm2073, %v2088, %v2092
      %v2094 = vrot.slane %v1940, 1
      %v2095 = vsel %vm2073, %v2090, %v2094
      %v2096 = vrot.slane %v1941, 1
      %v2097 = vsel %vm2073, %v2092, %v2096
      %v2098 = vrot.slane %v1942, 1
      %v2099 = vsel %vm2073, %v2094, %v2098
      %v2100 = vrot.slane %v1943, 1
      %v2101 = vsel %vm2073, %v2096, %v2100
      %v2102 = vrot.slane %v1944, 1
      %v2103 = vsel %vm2073, %v2098, %v2102
      %v2104 = vrot.slane %v1945, 1
      %v2105 = vsel %vm2073, %v2100, %v2104
      %v2106 = vrot.slane %v1946, 1
      %v2107 = vsel %vm2073, %v2102, %v2106
      %v2108 = vrot.slane %v1947, 1
      %v2109 = vsel %vm2073, %v2104, %v2108
      %v2110 = vrot.slane %v1948, 1
      %v2111 = vsel %vm2073, %v2106, %v2110
      %v2112 = vrot.slane %v1949, 1
      %v2113 = vsel %vm2073, %v2108, %v2112
      %v2114 = vrot.slane %v1950, 1
      %v2115 = vsel %vm2073, %v2110, %v2114
      %v2116 = vrot.slane %v1951, 1
      %v2117 = vsel %vm2073, %v2112, %v2116
      %v2118 = vrot.slane %v1952, 1
      %v2119 = vsel %vm2073, %v2114, %v2118
      %v2120 = vrot.slane %v1953, 1
      %v2121 = vsel %vm2073, %v2116, %v2120
      %v2122 = vrot.slane %v1954, 1
      %v2123 = vsel %vm2073, %v2118, %v2122
      %v2124 = vrot.slane %v1955, 1
      %v2125 = vsel %vm2073, %v2120, %v2124
      %v2126 = vrot.slane %v1956, 1
      %v2127 = vsel %vm2073, %v2122, %v2126
      %v2128 = vrot.slane %v1957, 1
      %v2129 = vsel %vm2073, %v2124, %v2128
      %v2130 = vrot.slane %v1958, 1
      %v2131 = vsel %vm2073, %v2126, %v2130
      %v2132 = vrot.slane %v1959, 1
      %v2133 = vsel %vm2073, %v2128, %v2132
      %v2134 = vrot.slane %v1960, 1
      %v2135 = vsel %vm2073, %v2130, %v2134
      %v2136 = vrot.slane %v1961, 1
      %v2137 = vsel %vm2073, %v2132, %v2136
      %v2138 = vrot.slane %v1962, 1
      %v2139 = vsel %vm2073, %v2134, %v2138
      %v2140 = vrot.slane %v1963, 1
      %v2141 = vsel %vm2073, %v2136, %v2140
      %v2142 = vrot.slane %v1964, 1
      %v2143 = vsel %vm2073, %v2138, %v2142
      %v2144 = vrot.slane %v1965, 1
      %v2145 = vsel %vm2073, %v2140, %v2144
      %v2146 = vrot.slane %v1966, 1
      %v2147 = vsel %vm2073, %v2142, %v2146
      %v2148 = vrot.slane %v1967, 1
      %v2149 = vsel %vm2073, %v2144, %v2148
      %v2150 = vrot.slane %v1968, 1
      %v2151 = vsel %vm2073, %v2146, %v2150
      %v2152 = vrot.slane %v1969, 1
      %v2153 = vsel %vm2073, %v2148, %v2152
      %v2154 = vrot.slane %v1970, 1
      %v2155 = vsel %vm2073, %v2150, %v2154
      %v2156 = vrot.slane %v1971, 1
      %v2157 = vsel %vm2073, %v2152, %v2156
      %v2158 = vrot.slane %v1972, 1
      %v2159 = vsel %vm2073, %v2154, %v2158
      %v2160 = vrot.slane %v1973, 1
      %v2161 = vsel %vm2073, %v2156, %v2160
      %v2162 = vrot.slane %v1974, 1
      %v2163 = vsel %vm2073, %v2158, %v2162
      %v2164 = vrot.slane %v1975, 1
      %v2165 = vsel %vm2073, %v2160, %v2164
      %v2166 = vrot.slane %v1976, 1
      %v2167 = vsel %vm2073, %v2162, %v2166
      %v2168 = vrot.slane %v1977, 1
      %v2169 = vsel %vm2073, %v2164, %v2168
      %v2170 = vrot.slane %v1978, 1
      %v2171 = vsel %vm2073, %v2166, %v2170
      %v2172 = vrot.slane %v1979, 1
      %v2173 = vsel %vm2073, %v2168, %v2172
      %v2174 = vrot.slane %v1980, 1
      %v2175 = vsel %vm2073, %v2170, %v2174
      %v2176 = vrot.slane %v1981, 1
      %v2177 = vsel %vm2073, %v2172, %v2176
      %v2178 = vrot.slane %v1982, 1
      %v2179 = vsel %vm2073, %v2174, %v2178
      %v2180 = vrot.slane %v1983, 1
      %v2181 = vsel %vm2073, %v2176, %v2180
      %v2182 = vrot.slane %v1984, 1
      %v2183 = vsel %vm2073, %v2178, %v2182
      %v2184 = vrot.slane %v1985, 1
      %v2185 = vsel %vm2073, %v2180, %v2184
      %v2186 = vrot.slane %v1986, 1
      %v2187 = vsel %vm2073, %v2182, %v2186
      %v2188 = vrot.slane %v1987, 1
      %v2189 = vsel %vm2073, %v2184, %v2188
      %v2190 = vrot.slane %v1988, 1
      %v2191 = vsel %vm2073, %v2186, %v2190
      %v2192 = vrot.slane %v1989, 1
      %v2193 = vsel %vm2073, %v2188, %v2192
      %v2194 = vrot.slane %v1990, 1
      %v2195 = vsel %vm2073, %v2190, %v2194
      %v2196 = vrot.slane %v1991, 1
      %v2197 = vsel %vm2073, %v2192, %v2196
      %v2198 = vrot.slane %v1992, 1
      %v2199 = vsel %vm2073, %v2194, %v2198
      %v2200 = vrot.slane %v1993, 1
      %v2201 = vsel %vm2073, %v2196, %v2200
      %v2202 = vrot.slane %v1994, 1
      %v2203 = vsel %vm2073, %v2198, %v2202
      %v2204 = vrot.slane %v1995, 1
      %v2205 = vsel %vm2073, %v2200, %v2204
      %v2206 = vrot.slane %v1996, 1
      %v2207 = vsel %vm2073, %v2202, %v2206
      %v2208 = vrot.slane %v1997, 1
      %v2209 = vsel %vm2073, %v2204, %v2208
      %v2210 = vrot.slane %v1998, 1
      %v2211 = vsel %vm2073, %v2206, %v2210
      %v2212 = vrot.slane %v1999, 1
      %v2213 = vsel %vm2073, %v2208, %v2212
      %v2214 = vrot.slane %v2000, 1
      %v2215 = vsel %vm2073, %v2210, %v2214
      %v2288 = vadd.f32 %v1842, %v2076
      %v2289 = vadd.f32 %v1843, %v2079
      %v2290 = vadd.f32 %v1844, %v2081
      %v2291 = vadd.f32 %v1845, %v2083
      %v2292 = vadd.f32 %v1846, %v2085
      %v2293 = vadd.f32 %v1847, %v2087
      %v2294 = vadd.f32 %v1848, %v2089
      %v2295 = vadd.f32 %v1849, %v2091
      %v2296 = vadd.f32 %v1850, %v2093
      %v2297 = vadd.f32 %v1851, %v2095
      %v2298 = vadd.f32 %v1852, %v2097
      %v2299 = vadd.f32 %v1853, %v2099
      %v2300 = vadd.f32 %v1854, %v2101
      %v2301 = vadd.f32 %v1855, %v2103
      %v2302 = vadd.f32 %v1856, %v2105
      %v2303 = vadd.f32 %v1857, %v2107
      %v2304 = vadd.f32 %v1858, %v2109
      %v2305 = vadd.f32 %v1859, %v2111
      %v2306 = vadd.f32 %v1860, %v2113
      %v2307 = vadd.f32 %v1861, %v2115
      %v2308 = vadd.f32 %v1862, %v2117
      %v2309 = vadd.f32 %v1863, %v2119
      %v2310 = vadd.f32 %v1864, %v2121
      %v2311 = vadd.f32 %v1865, %v2123
      %v2312 = vadd.f32 %v1866, %v2125
      %v2313 = vadd.f32 %v1867, %v2127
      %v2314 = vadd.f32 %v1868, %v2129
      %v2315 = vadd.f32 %v1869, %v2131
      %v2316 = vadd.f32 %v1870, %v2133
      %v2317 = vadd.f32 %v1871, %v2135
      %v2318 = vadd.f32 %v1872, %v2137
      %v2319 = vadd.f32 %v1873, %v2139
      %v2320 = vadd.f32 %v1874, %v2141
      %v2321 = vadd.f32 %v1875, %v2143
      %v2322 = vadd.f32 %v1876, %v2145
      %v2323 = vadd.f32 %v1877, %v2147
      %v2324 = vadd.f32 %v1878, %v2149
      %v2325 = vadd.f32 %v1879, %v2151
      %v2326 = vadd.f32 %v1880, %v2153
      %v2327 = vadd.f32 %v1881, %v2155
      %v2328 = vadd.f32 %v1882, %v2157
      %v2329 = vadd.f32 %v1883, %v2159
      %v2330 = vadd.f32 %v1884, %v2161
      %v2331 = vadd.f32 %v1885, %v2163
      %v2332 = vadd.f32 %v1886, %v2165
      %v2333 = vadd.f32 %v1887, %v2167
      %v2334 = vadd.f32 %v1888, %v2169
      %v2335 = vadd.f32 %v1889, %v2171
      %v2336 = vadd.f32 %v1890, %v2173
      %v2337 = vadd.f32 %v1891, %v2175
      %v2338 = vadd.f32 %v1892, %v2177
      %v2339 = vadd.f32 %v1893, %v2179
      %v2340 = vadd.f32 %v1894, %v2181
      %v2341 = vadd.f32 %v1895, %v2183
      %v2342 = vadd.f32 %v1896, %v2185
      %v2343 = vadd.f32 %v1897, %v2187
      %v2344 = vadd.f32 %v1898, %v2189
      %v2345 = vadd.f32 %v1899, %v2191
      %v2346 = vadd.f32 %v1900, %v2193
      %v2347 = vadd.f32 %v1901, %v2195
      %v2348 = vadd.f32 %v1902, %v2197
      %v2349 = vadd.f32 %v1903, %v2199
      %v2350 = vadd.f32 %v1904, %v2201
      %v2351 = vadd.f32 %v1905, %v2203
      %v2352 = vadd.f32 %v1906, %v2205
      %v2353 = vadd.f32 %v1907, %v2207
      %v2354 = vadd.f32 %v1908, %v2209
      %v2355 = vadd.f32 %v1909, %v2211
      %v2356 = vadd.f32 %v1910, %v2213
      %v2357 = vadd.f32 %v1911, %v2215
      %v2358 = vadd.f32 %v1912, %v2212
      %v2359 = vadd.f32 %v1913, %v2214
      %v2360 = vld [vmem:[#allocation2] sm:$0xfc]
      %v2361 = vld [vmem:[#allocation2 + $0x8] sm:$0xfc]
      %v2362 = vld [vmem:[#allocation2 + $0x230] sm:$0xff]
      %v2363 = vld [vmem:[#allocation2 + $0x238] sm:$0xff]
      %v2365 = vlaneseq
      %v2366 = vshrl.u32 %v2365, 7
      %v2367 = vsub.s32 0, %v2366
      %v2368 = vrot.slane %v1680, %v2367
      %v2369 = vlaneseq
      %v2370 = vshrl.u32 %v2369, 7
      %v2371 = vsub.s32 1, %v2370
      %v2372 = vrot.slane %v1680, %v2371
      %v2375 = vmul.f32 %v2360, %v2368
      %v2376 = vmul.f32 %v2361, %v2372
      %v2377 = vmul.f32 %v1689, %v2368
      %v2378 = vmul.f32 %v1690, %v2372
      %v2379 = vmul.f32 %v1691, %v2368
      %v2380 = vmul.f32 %v1692, %v2372
      %v2381 = vmul.f32 %v1693, %v2368
      %v2382 = vmul.f32 %v1694, %v2372
      %v2383 = vmul.f32 %v1695, %v2368
      %v2384 = vmul.f32 %v1696, %v2372
      %v2385 = vmul.f32 %v1697, %v2368
      %v2386 = vmul.f32 %v1698, %v2372
      %v2387 = vmul.f32 %v1699, %v2368
      %v2388 = vmul.f32 %v1700, %v2372
      %v2389 = vmul.f32 %v1701, %v2368
      %v2390 = vmul.f32 %v1702, %v2372
      %v2391 = vmul.f32 %v1703, %v2368
      %v2392 = vmul.f32 %v1704, %v2372
      %v2393 = vmul.f32 %v1705, %v2368
      %v2394 = vmul.f32 %v1706, %v2372
      %v2395 = vmul.f32 %v1707, %v2368
      %v2396 = vmul.f32 %v1708, %v2372
      %v2397 = vmul.f32 %v1709, %v2368
      %v2398 = vmul.f32 %v1710, %v2372
      %v2399 = vmul.f32 %v1711, %v2368
      %v2400 = vmul.f32 %v1712, %v2372
      %v2401 = vmul.f32 %v1713, %v2368
      %v2402 = vmul.f32 %v1714, %v2372
      %v2403 = vmul.f32 %v1715, %v2368
      %v2404 = vmul.f32 %v1716, %v2372
      %v2405 = vmul.f32 %v1717, %v2368
      %v2406 = vmul.f32 %v1718, %v2372
      %v2407 = vmul.f32 %v1719, %v2368
      %v2408 = vmul.f32 %v1720, %v2372
      %v2409 = vmul.f32 %v1721, %v2368
      %v2410 = vmul.f32 %v1722, %v2372
      %v2411 = vmul.f32 %v1723, %v2368
      %v2412 = vmul.f32 %v1724, %v2372
      %v2413 = vmul.f32 %v1725, %v2368
      %v2414 = vmul.f32 %v1726, %v2372
      %v2415 = vmul.f32 %v1727, %v2368
      %v2416 = vmul.f32 %v1728, %v2372
      %v2417 = vmul.f32 %v1729, %v2368
      %v2418 = vmul.f32 %v1730, %v2372
      %v2419 = vmul.f32 %v1731, %v2368
      %v2420 = vmul.f32 %v1732, %v2372
      %v2421 = vmul.f32 %v1733, %v2368
      %v2422 = vmul.f32 %v1734, %v2372
      %v2423 = vmul.f32 %v1735, %v2368
      %v2424 = vmul.f32 %v1736, %v2372
      %v2425 = vmul.f32 %v1737, %v2368
      %v2426 = vmul.f32 %v1738, %v2372
      %v2427 = vmul.f32 %v1739, %v2368
      %v2428 = vmul.f32 %v1740, %v2372
      %v2429 = vmul.f32 %v1741, %v2368
      %v2430 = vmul.f32 %v1742, %v2372
      %v2431 = vmul.f32 %v1743, %v2368
      %v2432 = vmul.f32 %v1744, %v2372
      %v2433 = vmul.f32 %v1745, %v2368
      %v2434 = vmul.f32 %v1746, %v2372
      %v2435 = vmul.f32 %v1747, %v2368
      %v2436 = vmul.f32 %v1748, %v2372
      %v2437 = vmul.f32 %v1749, %v2368
      %v2438 = vmul.f32 %v1750, %v2372
      %v2439 = vmul.f32 %v1751, %v2368
      %v2440 = vmul.f32 %v1752, %v2372
      %v2441 = vmul.f32 %v1753, %v2368
      %v2442 = vmul.f32 %v1754, %v2372
      %v2443 = vmul.f32 %v1755, %v2368
      %v2444 = vmul.f32 %v1756, %v2372
      %v2445 = vmul.f32 %v2362, %v2368
      %v2446 = vmul.f32 %v2363, %v2372
      %vm2519 = vcmask 1045504
      %v2520 = vrot.slane %v2375, 2
      %v2521 = vrot.slane %v2377, 2
      %v2522 = vsel %vm2519, %v2520, %v2521
      %v2523 = vrot.slane %v2376, 2
      %v2524 = vrot.slane %v2378, 2
      %v2525 = vsel %vm2519, %v2523, %v2524
      %v2526 = vrot.slane %v2379, 2
      %v2527 = vsel %vm2519, %v2521, %v2526
      %v2528 = vrot.slane %v2380, 2
      %v2529 = vsel %vm2519, %v2524, %v2528
      %v2530 = vrot.slane %v2381, 2
      %v2531 = vsel %vm2519, %v2526, %v2530
      %v2532 = vrot.slane %v2382, 2
      %v2533 = vsel %vm2519, %v2528, %v2532
      %v2534 = vrot.slane %v2383, 2
      %v2535 = vsel %vm2519, %v2530, %v2534
      %v2536 = vrot.slane %v2384, 2
      %v2537 = vsel %vm2519, %v2532, %v2536
      %v2538 = vrot.slane %v2385, 2
      %v2539 = vsel %vm2519, %v2534, %v2538
      %v2540 = vrot.slane %v2386, 2
      %v2541 = vsel %vm2519, %v2536, %v2540
      %v2542 = vrot.slane %v2387, 2
      %v2543 = vsel %vm2519, %v2538, %v2542
      %v2544 = vrot.slane %v2388, 2
      %v2545 = vsel %vm2519, %v2540, %v2544
      %v2546 = vrot.slane %v2389, 2
      %v2547 = vsel %vm2519, %v2542, %v2546
      %v2548 = vrot.slane %v2390, 2
      %v2549 = vsel %vm2519, %v2544, %v2548
      %v2550 = vrot.slane %v2391, 2
      %v2551 = vsel %vm2519, %v2546, %v2550
      %v2552 = vrot.slane %v2392, 2
      %v2553 = vsel %vm2519, %v2548, %v2552
      %v2554 = vrot.slane %v2393, 2
      %v2555 = vsel %vm2519, %v2550, %v2554
      %v2556 = vrot.slane %v2394, 2
      %v2557 = vsel %vm2519, %v2552, %v2556
      %v2558 = vrot.slane %v2395, 2
      %v2559 = vsel %vm2519, %v2554, %v2558
      %v2560 = vrot.slane %v2396, 2
      %v2561 = vsel %vm2519, %v2556, %v2560
      %v2562 = vrot.slane %v2397, 2
      %v2563 = vsel %vm2519, %v2558, %v2562
      %v2564 = vrot.slane %v2398, 2
      %v2565 = vsel %vm2519, %v2560, %v2564
      %v2566 = vrot.slane %v2399, 2
      %v2567 = vsel %vm2519, %v2562, %v2566
      %v2568 = vrot.slane %v2400, 2
      %v2569 = vsel %vm2519, %v2564, %v2568
      %v2570 = vrot.slane %v2401, 2
      %v2571 = vsel %vm2519, %v2566, %v2570
      %v2572 = vrot.slane %v2402, 2
      %v2573 = vsel %vm2519, %v2568, %v2572
      %v2574 = vrot.slane %v2403, 2
      %v2575 = vsel %vm2519, %v2570, %v2574
      %v2576 = vrot.slane %v2404, 2
      %v2577 = vsel %vm2519, %v2572, %v2576
      %v2578 = vrot.slane %v2405, 2
      %v2579 = vsel %vm2519, %v2574, %v2578
      %v2580 = vrot.slane %v2406, 2
      %v2581 = vsel %vm2519, %v2576, %v2580
      %v2582 = vrot.slane %v2407, 2
      %v2583 = vsel %vm2519, %v2578, %v2582
      %v2584 = vrot.slane %v2408, 2
      %v2585 = vsel %vm2519, %v2580, %v2584
      %v2586 = vrot.slane %v2409, 2
      %v2587 = vsel %vm2519, %v2582, %v2586
      %v2588 = vrot.slane %v2410, 2
      %v2589 = vsel %vm2519, %v2584, %v2588
      %v2590 = vrot.slane %v2411, 2
      %v2591 = vsel %vm2519, %v2586, %v2590
      %v2592 = vrot.slane %v2412, 2
      %v2593 = vsel %vm2519, %v2588, %v2592
      %v2594 = vrot.slane %v2413, 2
      %v2595 = vsel %vm2519, %v2590, %v2594
      %v2596 = vrot.slane %v2414, 2
      %v2597 = vsel %vm2519, %v2592, %v2596
      %v2598 = vrot.slane %v2415, 2
      %v2599 = vsel %vm2519, %v2594, %v2598
      %v2600 = vrot.slane %v2416, 2
      %v2601 = vsel %vm2519, %v2596, %v2600
      %v2602 = vrot.slane %v2417, 2
      %v2603 = vsel %vm2519, %v2598, %v2602
      %v2604 = vrot.slane %v2418, 2
      %v2605 = vsel %vm2519, %v2600, %v2604
      %v2606 = vrot.slane %v2419, 2
      %v2607 = vsel %vm2519, %v2602, %v2606
      %v2608 = vrot.slane %v2420, 2
      %v2609 = vsel %vm2519, %v2604, %v2608
      %v2610 = vrot.slane %v2421, 2
      %v2611 = vsel %vm2519, %v2606, %v2610
      %v2612 = vrot.slane %v2422, 2
      %v2613 = vsel %vm2519, %v2608, %v2612
      %v2614 = vrot.slane %v2423, 2
      %v2615 = vsel %vm2519, %v2610, %v2614
      %v2616 = vrot.slane %v2424, 2
      %v2617 = vsel %vm2519, %v2612, %v2616
      %v2618 = vrot.slane %v2425, 2
      %v2619 = vsel %vm2519, %v2614, %v2618
      %v2620 = vrot.slane %v2426, 2
      %v2621 = vsel %vm2519, %v2616, %v2620
      %v2622 = vrot.slane %v2427, 2
      %v2623 = vsel %vm2519, %v2618, %v2622
      %v2624 = vrot.slane %v2428, 2
      %v2625 = vsel %vm2519, %v2620, %v2624
      %v2626 = vrot.slane %v2429, 2
      %v2627 = vsel %vm2519, %v2622, %v2626
      %v2628 = vrot.slane %v2430, 2
      %v2629 = vsel %vm2519, %v2624, %v2628
      %v2630 = vrot.slane %v2431, 2
      %v2631 = vsel %vm2519, %v2626, %v2630
      %v2632 = vrot.slane %v2432, 2
      %v2633 = vsel %vm2519, %v2628, %v2632
      %v2634 = vrot.slane %v2433, 2
      %v2635 = vsel %vm2519, %v2630, %v2634
      %v2636 = vrot.slane %v2434, 2
      %v2637 = vsel %vm2519, %v2632, %v2636
      %v2638 = vrot.slane %v2435, 2
      %v2639 = vsel %vm2519, %v2634, %v2638
      %v2640 = vrot.slane %v2436, 2
      %v2641 = vsel %vm2519, %v2636, %v2640
      %v2642 = vrot.slane %v2437, 2
      %v2643 = vsel %vm2519, %v2638, %v2642
      %v2644 = vrot.slane %v2438, 2
      %v2645 = vsel %vm2519, %v2640, %v2644
      %v2646 = vrot.slane %v2439, 2
      %v2647 = vsel %vm2519, %v2642, %v2646
      %v2648 = vrot.slane %v2440, 2
      %v2649 = vsel %vm2519, %v2644, %v2648
      %v2650 = vrot.slane %v2441, 2
      %v2651 = vsel %vm2519, %v2646, %v2650
      %v2652 = vrot.slane %v2442, 2
      %v2653 = vsel %vm2519, %v2648, %v2652
      %v2654 = vrot.slane %v2443, 2
      %v2655 = vsel %vm2519, %v2650, %v2654
      %v2656 = vrot.slane %v2444, 2
      %v2657 = vsel %vm2519, %v2652, %v2656
      %v2658 = vrot.slane %v2445, 2
      %v2659 = vsel %vm2519, %v2654, %v2658
      %v2660 = vrot.slane %v2446, 2
      %v2661 = vsel %vm2519, %v2656, %v2660
      %v2734 = vadd.f32 %v2288, %v2522
      %v2735 = vadd.f32 %v2289, %v2525
      %v2736 = vadd.f32 %v2290, %v2527
      %v2737 = vadd.f32 %v2291, %v2529
      %v2738 = vadd.f32 %v2292, %v2531
      %v2739 = vadd.f32 %v2293, %v2533
      %v2740 = vadd.f32 %v2294, %v2535
      %v2741 = vadd.f32 %v2295, %v2537
      %v2742 = vadd.f32 %v2296, %v2539
      %v2743 = vadd.f32 %v2297, %v2541
      %v2744 = vadd.f32 %v2298, %v2543
      %v2745 = vadd.f32 %v2299, %v2545
      %v2746 = vadd.f32 %v2300, %v2547
      %v2747 = vadd.f32 %v2301, %v2549
      %v2748 = vadd.f32 %v2302, %v2551
      %v2749 = vadd.f32 %v2303, %v2553
      %v2750 = vadd.f32 %v2304, %v2555
      %v2751 = vadd.f32 %v2305, %v2557
      %v2752 = vadd.f32 %v2306, %v2559
      %v2753 = vadd.f32 %v2307, %v2561
      %v2754 = vadd.f32 %v2308, %v2563
      %v2755 = vadd.f32 %v2309, %v2565
      %v2756 = vadd.f32 %v2310, %v2567
      %v2757 = vadd.f32 %v2311, %v2569
      %v2758 = vadd.f32 %v2312, %v2571
      %v2759 = vadd.f32 %v2313, %v2573
      %v2760 = vadd.f32 %v2314, %v2575
      %v2761 = vadd.f32 %v2315, %v2577
      %v2762 = vadd.f32 %v2316, %v2579
      %v2763 = vadd.f32 %v2317, %v2581
      %v2764 = vadd.f32 %v2318, %v2583
      %v2765 = vadd.f32 %v2319, %v2585
      %v2766 = vadd.f32 %v2320, %v2587
      %v2767 = vadd.f32 %v2321, %v2589
      %v2768 = vadd.f32 %v2322, %v2591
      %v2769 = vadd.f32 %v2323, %v2593
      %v2770 = vadd.f32 %v2324, %v2595
      %v2771 = vadd.f32 %v2325, %v2597
      %v2772 = vadd.f32 %v2326, %v2599
      %v2773 = vadd.f32 %v2327, %v2601
      %v2774 = vadd.f32 %v2328, %v2603
      %v2775 = vadd.f32 %v2329, %v2605
      %v2776 = vadd.f32 %v2330, %v2607
      %v2777 = vadd.f32 %v2331, %v2609
      %v2778 = vadd.f32 %v2332, %v2611
      %v2779 = vadd.f32 %v2333, %v2613
      %v2780 = vadd.f32 %v2334, %v2615
      %v2781 = vadd.f32 %v2335, %v2617
      %v2782 = vadd.f32 %v2336, %v2619
      %v2783 = vadd.f32 %v2337, %v2621
      %v2784 = vadd.f32 %v2338, %v2623
      %v2785 = vadd.f32 %v2339, %v2625
      %v2786 = vadd.f32 %v2340, %v2627
      %v2787 = vadd.f32 %v2341, %v2629
      %v2788 = vadd.f32 %v2342, %v2631
      %v2789 = vadd.f32 %v2343, %v2633
      %v2790 = vadd.f32 %v2344, %v2635
      %v2791 = vadd.f32 %v2345, %v2637
      %v2792 = vadd.f32 %v2346, %v2639
      %v2793 = vadd.f32 %v2347, %v2641
      %v2794 = vadd.f32 %v2348, %v2643
      %v2795 = vadd.f32 %v2349, %v2645
      %v2796 = vadd.f32 %v2350, %v2647
      %v2797 = vadd.f32 %v2351, %v2649
      %v2798 = vadd.f32 %v2352, %v2651
      %v2799 = vadd.f32 %v2353, %v2653
      %v2800 = vadd.f32 %v2354, %v2655
      %v2801 = vadd.f32 %v2355, %v2657
      %v2802 = vadd.f32 %v2356, %v2659
      %v2803 = vadd.f32 %v2357, %v2661
      %v2804 = vadd.f32 %v2358, %v2658
      %v2805 = vadd.f32 %v2359, %v2660
      %v2806 = vld [vmem:[#allocation2 + $0x20] sm:$0xfc]
      %v2807 = vld [vmem:[#allocation2 + $0x28] sm:$0xfc]
      %v2808 = vld [vmem:[#allocation2 + $0x240] sm:$0xff]
      %v2809 = vld [vmem:[#allocation2 + $0x248] sm:$0xff]
      %v2810 = vld [vmem:[#allocation2 + $0x250] sm:$0xff]
      %v2811 = vld [vmem:[#allocation2 + $0x258] sm:$0xff]
      %v2813 = vlaneseq
      %v2814 = vshrl.u32 %v2813, 7
      %v2815 = vsub.s32 0, %v2814
      %v2816 = vrot.slane %v1681, %v2815
      %v2817 = vlaneseq
      %v2818 = vshrl.u32 %v2817, 7
      %v2819 = vsub.s32 1, %v2818
      %v2820 = vrot.slane %v1681, %v2819
      %v2823 = vmul.f32 %v2806, %v2816
      %v2824 = vmul.f32 %v2807, %v2820
      %v2825 = vmul.f32 %v1693, %v2816
      %v2826 = vmul.f32 %v1694, %v2820
      %v2827 = vmul.f32 %v1695, %v2816
      %v2828 = vmul.f32 %v1696, %v2820
      %v2829 = vmul.f32 %v1697, %v2816
      %v2830 = vmul.f32 %v1698, %v2820
      %v2831 = vmul.f32 %v1699, %v2816
      %v2832 = vmul.f32 %v1700, %v2820
      %v2833 = vmul.f32 %v1701, %v2816
      %v2834 = vmul.f32 %v1702, %v2820
      %v2835 = vmul.f32 %v1703, %v2816
      %v2836 = vmul.f32 %v1704, %v2820
      %v2837 = vmul.f32 %v1705, %v2816
      %v2838 = vmul.f32 %v1706, %v2820
      %v2839 = vmul.f32 %v1707, %v2816
      %v2840 = vmul.f32 %v1708, %v2820
      %v2841 = vmul.f32 %v1709, %v2816
      %v2842 = vmul.f32 %v1710, %v2820
      %v2843 = vmul.f32 %v1711, %v2816
      %v2844 = vmul.f32 %v1712, %v2820
      %v2845 = vmul.f32 %v1713, %v2816
      %v2846 = vmul.f32 %v1714, %v2820
      %v2847 = vmul.f32 %v1715, %v2816
      %v2848 = vmul.f32 %v1716, %v2820
      %v2849 = vmul.f32 %v1717, %v2816
      %v2850 = vmul.f32 %v1718, %v2820
      %v2851 = vmul.f32 %v1719, %v2816
      %v2852 = vmul.f32 %v1720, %v2820
      %v2853 = vmul.f32 %v1721, %v2816
      %v2854 = vmul.f32 %v1722, %v2820
      %v2855 = vmul.f32 %v1723, %v2816
      %v2856 = vmul.f32 %v1724, %v2820
      %v2857 = vmul.f32 %v1725, %v2816
      %v2858 = vmul.f32 %v1726, %v2820
      %v2859 = vmul.f32 %v1727, %v2816
      %v2860 = vmul.f32 %v1728, %v2820
      %v2861 = vmul.f32 %v1729, %v2816
      %v2862 = vmul.f32 %v1730, %v2820
      %v2863 = vmul.f32 %v1731, %v2816
      %v2864 = vmul.f32 %v1732, %v2820
      %v2865 = vmul.f32 %v1733, %v2816
      %v2866 = vmul.f32 %v1734, %v2820
      %v2867 = vmul.f32 %v1735, %v2816
      %v2868 = vmul.f32 %v1736, %v2820
      %v2869 = vmul.f32 %v1737, %v2816
      %v2870 = vmul.f32 %v1738, %v2820
      %v2871 = vmul.f32 %v1739, %v2816
      %v2872 = vmul.f32 %v1740, %v2820
      %v2873 = vmul.f32 %v1741, %v2816
      %v2874 = vmul.f32 %v1742, %v2820
      %v2875 = vmul.f32 %v1743, %v2816
      %v2876 = vmul.f32 %v1744, %v2820
      %v2877 = vmul.f32 %v1745, %v2816
      %v2878 = vmul.f32 %v1746, %v2820
      %v2879 = vmul.f32 %v1747, %v2816
      %v2880 = vmul.f32 %v1748, %v2820
      %v2881 = vmul.f32 %v1749, %v2816
      %v2882 = vmul.f32 %v1750, %v2820
      %v2883 = vmul.f32 %v1751, %v2816
      %v2884 = vmul.f32 %v1752, %v2820
      %v2885 = vmul.f32 %v1753, %v2816
      %v2886 = vmul.f32 %v1754, %v2820
      %v2887 = vmul.f32 %v1755, %v2816
      %v2888 = vmul.f32 %v1756, %v2820
      %v2889 = vmul.f32 %v2362, %v2816
      %v2890 = vmul.f32 %v2363, %v2820
      %v2891 = vmul.f32 %v2808, %v2816
      %v2892 = vmul.f32 %v2809, %v2820
      %v2893 = vmul.f32 %v2810, %v2816
      %v2894 = vmul.f32 %v2811, %v2820
      %v2967 = vrot.slane %v2823, 2
      %v2968 = vrot.slane %v2825, 2
      %v2969 = vsel %vm2519, %v2967, %v2968
      %v2970 = vrot.slane %v2824, 2
      %v2971 = vrot.slane %v2826, 2
      %v2972 = vsel %vm2519, %v2970, %v2971
      %v2973 = vrot.slane %v2827, 2
      %v2974 = vsel %vm2519, %v2968, %v2973
      %v2975 = vrot.slane %v2828, 2
      %v2976 = vsel %vm2519, %v2971, %v2975
      %v2977 = vrot.slane %v2829, 2
      %v2978 = vsel %vm2519, %v2973, %v2977
      %v2979 = vrot.slane %v2830, 2
      %v2980 = vsel %vm2519, %v2975, %v2979
      %v2981 = vrot.slane %v2831, 2
      %v2982 = vsel %vm2519, %v2977, %v2981
      %v2983 = vrot.slane %v2832, 2
      %v2984 = vsel %vm2519, %v2979, %v2983
      %v2985 = vrot.slane %v2833, 2
      %v2986 = vsel %vm2519, %v2981, %v2985
      %v2987 = vrot.slane %v2834, 2
      %v2988 = vsel %vm2519, %v2983, %v2987
      %v2989 = vrot.slane %v2835, 2
      %v2990 = vsel %vm2519, %v2985, %v2989
      %v2991 = vrot.slane %v2836, 2
      %v2992 = vsel %vm2519, %v2987, %v2991
      %v2993 = vrot.slane %v2837, 2
      %v2994 = vsel %vm2519, %v2989, %v2993
      %v2995 = vrot.slane %v2838, 2
      %v2996 = vsel %vm2519, %v2991, %v2995
      %v2997 = vrot.slane %v2839, 2
      %v2998 = vsel %vm2519, %v2993, %v2997
      %v2999 = vrot.slane %v2840, 2
      %v3000 = vsel %vm2519, %v2995, %v2999
      %v3001 = vrot.slane %v2841, 2
      %v3002 = vsel %vm2519, %v2997, %v3001
      %v3003 = vrot.slane %v2842, 2
      %v3004 = vsel %vm2519, %v2999, %v3003
      %v3005 = vrot.slane %v2843, 2
      %v3006 = vsel %vm2519, %v3001, %v3005
      %v3007 = vrot.slane %v2844, 2
      %v3008 = vsel %vm2519, %v3003, %v3007
      %v3009 = vrot.slane %v2845, 2
      %v3010 = vsel %vm2519, %v3005, %v3009
      %v3011 = vrot.slane %v2846, 2
      %v3012 = vsel %vm2519, %v3007, %v3011
      %v3013 = vrot.slane %v2847, 2
      %v3014 = vsel %vm2519, %v3009, %v3013
      %v3015 = vrot.slane %v2848, 2
      %v3016 = vsel %vm2519, %v3011, %v3015
      %v3017 = vrot.slane %v2849, 2
      %v3018 = vsel %vm2519, %v3013, %v3017
      %v3019 = vrot.slane %v2850, 2
      %v3020 = vsel %vm2519, %v3015, %v3019
      %v3021 = vrot.slane %v2851, 2
      %v3022 = vsel %vm2519, %v3017, %v3021
      %v3023 = vrot.slane %v2852, 2
      %v3024 = vsel %vm2519, %v3019, %v3023
      %v3025 = vrot.slane %v2853, 2
      %v3026 = vsel %vm2519, %v3021, %v3025
      %v3027 = vrot.slane %v2854, 2
      %v3028 = vsel %vm2519, %v3023, %v3027
      %v3029 = vrot.slane %v2855, 2
      %v3030 = vsel %vm2519, %v3025, %v3029
      %v3031 = vrot.slane %v2856, 2
      %v3032 = vsel %vm2519, %v3027, %v3031
      %v3033 = vrot.slane %v2857, 2
      %v3034 = vsel %vm2519, %v3029, %v3033
      %v3035 = vrot.slane %v2858, 2
      %v3036 = vsel %vm2519, %v3031, %v3035
      %v3037 = vrot.slane %v2859, 2
      %v3038 = vsel %vm2519, %v3033, %v3037
      %v3039 = vrot.slane %v2860, 2
      %v3040 = vsel %vm2519, %v3035, %v3039
      %v3041 = vrot.slane %v2861, 2
      %v3042 = vsel %vm2519, %v3037, %v3041
      %v3043 = vrot.slane %v2862, 2
      %v3044 = vsel %vm2519, %v3039, %v3043
      %v3045 = vrot.slane %v2863, 2
      %v3046 = vsel %vm2519, %v3041, %v3045
      %v3047 = vrot.slane %v2864, 2
      %v3048 = vsel %vm2519, %v3043, %v3047
      %v3049 = vrot.slane %v2865, 2
      %v3050 = vsel %vm2519, %v3045, %v3049
      %v3051 = vrot.slane %v2866, 2
      %v3052 = vsel %vm2519, %v3047, %v3051
      %v3053 = vrot.slane %v2867, 2
      %v3054 = vsel %vm2519, %v3049, %v3053
      %v3055 = vrot.slane %v2868, 2
      %v3056 = vsel %vm2519, %v3051, %v3055
      %v3057 = vrot.slane %v2869, 2
      %v3058 = vsel %vm2519, %v3053, %v3057
      %v3059 = vrot.slane %v2870, 2
      %v3060 = vsel %vm2519, %v3055, %v3059
      %v3061 = vrot.slane %v2871, 2
      %v3062 = vsel %vm2519, %v3057, %v3061
      %v3063 = vrot.slane %v2872, 2
      %v3064 = vsel %vm2519, %v3059, %v3063
      %v3065 = vrot.slane %v2873, 2
      %v3066 = vsel %vm2519, %v3061, %v3065
      %v3067 = vrot.slane %v2874, 2
      %v3068 = vsel %vm2519, %v3063, %v3067
      %v3069 = vrot.slane %v2875, 2
      %v3070 = vsel %vm2519, %v3065, %v3069
      %v3071 = vrot.slane %v2876, 2
      %v3072 = vsel %vm2519, %v3067, %v3071
      %v3073 = vrot.slane %v2877, 2
      %v3074 = vsel %vm2519, %v3069, %v3073
      %v3075 = vrot.slane %v2878, 2
      %v3076 = vsel %vm2519, %v3071, %v3075
      %v3077 = vrot.slane %v2879, 2
      %v3078 = vsel %vm2519, %v3073, %v3077
      %v3079 = vrot.slane %v2880, 2
      %v3080 = vsel %vm2519, %v3075, %v3079
      %v3081 = vrot.slane %v2881, 2
      %v3082 = vsel %vm2519, %v3077, %v3081
      %v3083 = vrot.slane %v2882, 2
      %v3084 = vsel %vm2519, %v3079, %v3083
      %v3085 = vrot.slane %v2883, 2
      %v3086 = vsel %vm2519, %v3081, %v3085
      %v3087 = vrot.slane %v2884, 2
      %v3088 = vsel %vm2519, %v3083, %v3087
      %v3089 = vrot.slane %v2885, 2
      %v3090 = vsel %vm2519, %v3085, %v3089
      %v3091 = vrot.slane %v2886, 2
      %v3092 = vsel %vm2519, %v3087, %v3091
      %v3093 = vrot.slane %v2887, 2
      %v3094 = vsel %vm2519, %v3089, %v3093
      %v3095 = vrot.slane %v2888, 2
      %v3096 = vsel %vm2519, %v3091, %v3095
      %v3097 = vrot.slane %v2889, 2
      %v3098 = vsel %vm2519, %v3093, %v3097
      %v3099 = vrot.slane %v2890, 2
      %v3100 = vsel %vm2519, %v3095, %v3099
      %v3101 = vrot.slane %v2891, 2
      %v3102 = vsel %vm2519, %v3097, %v3101
      %v3103 = vrot.slane %v2892, 2
      %v3104 = vsel %vm2519, %v3099, %v3103
      %v3105 = vrot.slane %v2893, 2
      %v3106 = vsel %vm2519, %v3101, %v3105
      %v3107 = vrot.slane %v2894, 2
      %v3108 = vsel %vm2519, %v3103, %v3107
      %v3181 = vadd.f32 %v2734, %v2969
      %v3182 = vadd.f32 %v2735, %v2972
      %v3183 = vadd.f32 %v2736, %v2974
      %v3184 = vadd.f32 %v2737, %v2976
      %v3185 = vadd.f32 %v2738, %v2978
      %v3186 = vadd.f32 %v2739, %v2980
      %v3187 = vadd.f32 %v2740, %v2982
      %v3188 = vadd.f32 %v2741, %v2984
      %v3189 = vadd.f32 %v2742, %v2986
      %v3190 = vadd.f32 %v2743, %v2988
      %v3191 = vadd.f32 %v2744, %v2990
      %v3192 = vadd.f32 %v2745, %v2992
      %v3193 = vadd.f32 %v2746, %v2994
      %v3194 = vadd.f32 %v2747, %v2996
      %v3195 = vadd.f32 %v2748, %v2998
      %v3196 = vadd.f32 %v2749, %v3000
      %v3197 = vadd.f32 %v2750, %v3002
      %v3198 = vadd.f32 %v2751, %v3004
      %v3199 = vadd.f32 %v2752, %v3006
      %v3200 = vadd.f32 %v2753, %v3008
      %v3201 = vadd.f32 %v2754, %v3010
      %v3202 = vadd.f32 %v2755, %v3012
      %v3203 = vadd.f32 %v2756, %v3014
      %v3204 = vadd.f32 %v2757, %v3016
      %v3205 = vadd.f32 %v2758, %v3018
      %v3206 = vadd.f32 %v2759, %v3020
      %v3207 = vadd.f32 %v2760, %v3022
      %v3208 = vadd.f32 %v2761, %v3024
      %v3209 = vadd.f32 %v2762, %v3026
      %v3210 = vadd.f32 %v2763, %v3028
      %v3211 = vadd.f32 %v2764, %v3030
      %v3212 = vadd.f32 %v2765, %v3032
      %v3213 = vadd.f32 %v2766, %v3034
      %v3214 = vadd.f32 %v2767, %v3036
      %v3215 = vadd.f32 %v2768, %v3038
      %v3216 = vadd.f32 %v2769, %v3040
      %v3217 = vadd.f32 %v2770, %v3042
      %v3218 = vadd.f32 %v2771, %v3044
      %v3219 = vadd.f32 %v2772, %v3046
      %v3220 = vadd.f32 %v2773, %v3048
      %v3221 = vadd.f32 %v2774, %v3050
      %v3222 = vadd.f32 %v2775, %v3052
      %v3223 = vadd.f32 %v2776, %v3054
      %v3224 = vadd.f32 %v2777, %v3056
      %v3225 = vadd.f32 %v2778, %v3058
      %v3226 = vadd.f32 %v2779, %v3060
      %v3227 = vadd.f32 %v2780, %v3062
      %v3228 = vadd.f32 %v2781, %v3064
      %v3229 = vadd.f32 %v2782, %v3066
      %v3230 = vadd.f32 %v2783, %v3068
      %v3231 = vadd.f32 %v2784, %v3070
      %v3232 = vadd.f32 %v2785, %v3072
      %v3233 = vadd.f32 %v2786, %v3074
      %v3234 = vadd.f32 %v2787, %v3076
      %v3235 = vadd.f32 %v2788, %v3078
      %v3236 = vadd.f32 %v2789, %v3080
      %v3237 = vadd.f32 %v2790, %v3082
      %v3238 = vadd.f32 %v2791, %v3084
      %v3239 = vadd.f32 %v2792, %v3086
      %v3240 = vadd.f32 %v2793, %v3088
      %v3241 = vadd.f32 %v2794, %v3090
      %v3242 = vadd.f32 %v2795, %v3092
      %v3243 = vadd.f32 %v2796, %v3094
      %v3244 = vadd.f32 %v2797, %v3096
      %v3245 = vadd.f32 %v2798, %v3098
      %v3246 = vadd.f32 %v2799, %v3100
      %v3247 = vadd.f32 %v2800, %v3102
      %v3248 = vadd.f32 %v2801, %v3104
      %v3249 = vadd.f32 %v2802, %v3106
      %v3250 = vadd.f32 %v2803, %v3108
      %v3251 = vadd.f32 %v2804, %v3105
      %v3252 = vadd.f32 %v2805, %v3107
      %v3253 = vld [vmem:[#allocation2 + $0x20] sm:$0xf8]
      %v3254 = vld [vmem:[#allocation2 + $0x28] sm:$0xf8]
      %v3255 = vld [vmem:[#allocation2 + $0x260] sm:$0x1]
      %v3256 = vld [vmem:[#allocation2 + $0x268] sm:$0x1]
      %v3258 = vlaneseq
      %v3259 = vshrl.u32 %v3258, 7
      %v3260 = vsub.s32 0, %v3259
      %v3261 = vrot.slane %v1682, %v3260
      %v3262 = vlaneseq
      %v3263 = vshrl.u32 %v3262, 7
      %v3264 = vsub.s32 1, %v3263
      %v3265 = vrot.slane %v1682, %v3264
      %v3268 = vmul.f32 %v3253, %v3261
      %v3269 = vmul.f32 %v3254, %v3265
      %v3270 = vmul.f32 %v1693, %v3261
      %v3271 = vmul.f32 %v1694, %v3265
      %v3272 = vmul.f32 %v1695, %v3261
      %v3273 = vmul.f32 %v1696, %v3265
      %v3274 = vmul.f32 %v1697, %v3261
      %v3275 = vmul.f32 %v1698, %v3265
      %v3276 = vmul.f32 %v1699, %v3261
      %v3277 = vmul.f32 %v1700, %v3265
      %v3278 = vmul.f32 %v1701, %v3261
      %v3279 = vmul.f32 %v1702, %v3265
      %v3280 = vmul.f32 %v1703, %v3261
      %v3281 = vmul.f32 %v1704, %v3265
      %v3282 = vmul.f32 %v1705, %v3261
      %v3283 = vmul.f32 %v1706, %v3265
      %v3284 = vmul.f32 %v1707, %v3261
      %v3285 = vmul.f32 %v1708, %v3265
      %v3286 = vmul.f32 %v1709, %v3261
      %v3287 = vmul.f32 %v1710, %v3265
      %v3288 = vmul.f32 %v1711, %v3261
      %v3289 = vmul.f32 %v1712, %v3265
      %v3290 = vmul.f32 %v1713, %v3261
      %v3291 = vmul.f32 %v1714, %v3265
      %v3292 = vmul.f32 %v1715, %v3261
      %v3293 = vmul.f32 %v1716, %v3265
      %v3294 = vmul.f32 %v1717, %v3261
      %v3295 = vmul.f32 %v1718, %v3265
      %v3296 = vmul.f32 %v1719, %v3261
      %v3297 = vmul.f32 %v1720, %v3265
      %v3298 = vmul.f32 %v1721, %v3261
      %v3299 = vmul.f32 %v1722, %v3265
      %v3300 = vmul.f32 %v1723, %v3261
      %v3301 = vmul.f32 %v1724, %v3265
      %v3302 = vmul.f32 %v1725, %v3261
      %v3303 = vmul.f32 %v1726, %v3265
      %v3304 = vmul.f32 %v1727, %v3261
      %v3305 = vmul.f32 %v1728, %v3265
      %v3306 = vmul.f32 %v1729, %v3261
      %v3307 = vmul.f32 %v1730, %v3265
      %v3308 = vmul.f32 %v1731, %v3261
      %v3309 = vmul.f32 %v1732, %v3265
      %v3310 = vmul.f32 %v1733, %v3261
      %v3311 = vmul.f32 %v1734, %v3265
      %v3312 = vmul.f32 %v1735, %v3261
      %v3313 = vmul.f32 %v1736, %v3265
      %v3314 = vmul.f32 %v1737, %v3261
      %v3315 = vmul.f32 %v1738, %v3265
      %v3316 = vmul.f32 %v1739, %v3261
      %v3317 = vmul.f32 %v1740, %v3265
      %v3318 = vmul.f32 %v1741, %v3261
      %v3319 = vmul.f32 %v1742, %v3265
      %v3320 = vmul.f32 %v1743, %v3261
      %v3321 = vmul.f32 %v1744, %v3265
      %v3322 = vmul.f32 %v1745, %v3261
      %v3323 = vmul.f32 %v1746, %v3265
      %v3324 = vmul.f32 %v1747, %v3261
      %v3325 = vmul.f32 %v1748, %v3265
      %v3326 = vmul.f32 %v1749, %v3261
      %v3327 = vmul.f32 %v1750, %v3265
      %v3328 = vmul.f32 %v1751, %v3261
      %v3329 = vmul.f32 %v1752, %v3265
      %v3330 = vmul.f32 %v1753, %v3261
      %v3331 = vmul.f32 %v1754, %v3265
      %v3332 = vmul.f32 %v1755, %v3261
      %v3333 = vmul.f32 %v1756, %v3265
      %v3334 = vmul.f32 %v2362, %v3261
      %v3335 = vmul.f32 %v2363, %v3265
      %v3336 = vmul.f32 %v2808, %v3261
      %v3337 = vmul.f32 %v2809, %v3265
      %v3338 = vmul.f32 %v2810, %v3261
      %v3339 = vmul.f32 %v2811, %v3265
      %v3340 = vmul.f32 %v3255, %v3261
      %v3341 = vmul.f32 %v3256, %v3265
      %vm3416 = vcmask 1044480
      %v3417 = vrot.slane %v3268, 3
      %v3418 = vrot.slane %v3270, 3
      %v3419 = vsel %vm3416, %v3417, %v3418
      %v3420 = vrot.slane %v3269, 3
      %v3421 = vrot.slane %v3271, 3
      %v3422 = vsel %vm3416, %v3420, %v3421
      %v3423 = vrot.slane %v3272, 3
      %v3424 = vsel %vm3416, %v3418, %v3423
      %v3425 = vrot.slane %v3273, 3
      %v3426 = vsel %vm3416, %v3421, %v3425
      %v3427 = vrot.slane %v3274, 3
      %v3428 = vsel %vm3416, %v3423, %v3427
      %v3429 = vrot.slane %v3275, 3
      %v3430 = vsel %vm3416, %v3425, %v3429
      %v3431 = vrot.slane %v3276, 3
      %v3432 = vsel %vm3416, %v3427, %v3431
      %v3433 = vrot.slane %v3277, 3
      %v3434 = vsel %vm3416, %v3429, %v3433
      %v3435 = vrot.slane %v3278, 3
      %v3436 = vsel %vm3416, %v3431, %v3435
      %v3437 = vrot.slane %v3279, 3
      %v3438 = vsel %vm3416, %v3433, %v3437
      %v3439 = vrot.slane %v3280, 3
      %v3440 = vsel %vm3416, %v3435, %v3439
      %v3441 = vrot.slane %v3281, 3
      %v3442 = vsel %vm3416, %v3437, %v3441
      %v3443 = vrot.slane %v3282, 3
      %v3444 = vsel %vm3416, %v3439, %v3443
      %v3445 = vrot.slane %v3283, 3
      %v3446 = vsel %vm3416, %v3441, %v3445
      %v3447 = vrot.slane %v3284, 3
      %v3448 = vsel %vm3416, %v3443, %v3447
      %v3449 = vrot.slane %v3285, 3
      %v3450 = vsel %vm3416, %v3445, %v3449
      %v3451 = vrot.slane %v3286, 3
      %v3452 = vsel %vm3416, %v3447, %v3451
      %v3453 = vrot.slane %v3287, 3
      %v3454 = vsel %vm3416, %v3449, %v3453
      %v3455 = vrot.slane %v3288, 3
      %v3456 = vsel %vm3416, %v3451, %v3455
      %v3457 = vrot.slane %v3289, 3
      %v3458 = vsel %vm3416, %v3453, %v3457
      %v3459 = vrot.slane %v3290, 3
      %v3460 = vsel %vm3416, %v3455, %v3459
      %v3461 = vrot.slane %v3291, 3
      %v3462 = vsel %vm3416, %v3457, %v3461
      %v3463 = vrot.slane %v3292, 3
      %v3464 = vsel %vm3416, %v3459, %v3463
      %v3465 = vrot.slane %v3293, 3
      %v3466 = vsel %vm3416, %v3461, %v3465
      %v3467 = vrot.slane %v3294, 3
      %v3468 = vsel %vm3416, %v3463, %v3467
      %v3469 = vrot.slane %v3295, 3
      %v3470 = vsel %vm3416, %v3465, %v3469
      %v3471 = vrot.slane %v3296, 3
      %v3472 = vsel %vm3416, %v3467, %v3471
      %v3473 = vrot.slane %v3297, 3
      %v3474 = vsel %vm3416, %v3469, %v3473
      %v3475 = vrot.slane %v3298, 3
      %v3476 = vsel %vm3416, %v3471, %v3475
      %v3477 = vrot.slane %v3299, 3
      %v3478 = vsel %vm3416, %v3473, %v3477
      %v3479 = vrot.slane %v3300, 3
      %v3480 = vsel %vm3416, %v3475, %v3479
      %v3481 = vrot.slane %v3301, 3
      %v3482 = vsel %vm3416, %v3477, %v3481
      %v3483 = vrot.slane %v3302, 3
      %v3484 = vsel %vm3416, %v3479, %v3483
      %v3485 = vrot.slane %v3303, 3
      %v3486 = vsel %vm3416, %v3481, %v3485
      %v3487 = vrot.slane %v3304, 3
      %v3488 = vsel %vm3416, %v3483, %v3487
      %v3489 = vrot.slane %v3305, 3
      %v3490 = vsel %vm3416, %v3485, %v3489
      %v3491 = vrot.slane %v3306, 3
      %v3492 = vsel %vm3416, %v3487, %v3491
      %v3493 = vrot.slane %v3307, 3
      %v3494 = vsel %vm3416, %v3489, %v3493
      %v3495 = vrot.slane %v3308, 3
      %v3496 = vsel %vm3416, %v3491, %v3495
      %v3497 = vrot.slane %v3309, 3
      %v3498 = vsel %vm3416, %v3493, %v3497
      %v3499 = vrot.slane %v3310, 3
      %v3500 = vsel %vm3416, %v3495, %v3499
      %v3501 = vrot.slane %v3311, 3
      %v3502 = vsel %vm3416, %v3497, %v3501
      %v3503 = vrot.slane %v3312, 3
      %v3504 = vsel %vm3416, %v3499, %v3503
      %v3505 = vrot.slane %v3313, 3
      %v3506 = vsel %vm3416, %v3501, %v3505
      %v3507 = vrot.slane %v3314, 3
      %v3508 = vsel %vm3416, %v3503, %v3507
      %v3509 = vrot.slane %v3315, 3
      %v3510 = vsel %vm3416, %v3505, %v3509
      %v3511 = vrot.slane %v3316, 3
      %v3512 = vsel %vm3416, %v3507, %v3511
      %v3513 = vrot.slane %v3317, 3
      %v3514 = vsel %vm3416, %v3509, %v3513
      %v3515 = vrot.slane %v3318, 3
      %v3516 = vsel %vm3416, %v3511, %v3515
      %v3517 = vrot.slane %v3319, 3
      %v3518 = vsel %vm3416, %v3513, %v3517
      %v3519 = vrot.slane %v3320, 3
      %v3520 = vsel %vm3416, %v3515, %v3519
      %v3521 = vrot.slane %v3321, 3
      %v3522 = vsel %vm3416, %v3517, %v3521
      %v3523 = vrot.slane %v3322, 3
      %v3524 = vsel %vm3416, %v3519, %v3523
      %v3525 = vrot.slane %v3323, 3
      %v3526 = vsel %vm3416, %v3521, %v3525
      %v3527 = vrot.slane %v3324, 3
      %v3528 = vsel %vm3416, %v3523, %v3527
      %v3529 = vrot.slane %v3325, 3
      %v3530 = vsel %vm3416, %v3525, %v3529
      %v3531 = vrot.slane %v3326, 3
      %v3532 = vsel %vm3416, %v3527, %v3531
      %v3533 = vrot.slane %v3327, 3
      %v3534 = vsel %vm3416, %v3529, %v3533
      %v3535 = vrot.slane %v3328, 3
      %v3536 = vsel %vm3416, %v3531, %v3535
      %v3537 = vrot.slane %v3329, 3
      %v3538 = vsel %vm3416, %v3533, %v3537
      %v3539 = vrot.slane %v3330, 3
      %v3540 = vsel %vm3416, %v3535, %v3539
      %v3541 = vrot.slane %v3331, 3
      %v3542 = vsel %vm3416, %v3537, %v3541
      %v3543 = vrot.slane %v3332, 3
      %v3544 = vsel %vm3416, %v3539, %v3543
      %v3545 = vrot.slane %v3333, 3
      %v3546 = vsel %vm3416, %v3541, %v3545
      %v3547 = vrot.slane %v3334, 3
      %v3548 = vsel %vm3416, %v3543, %v3547
      %v3549 = vrot.slane %v3335, 3
      %v3550 = vsel %vm3416, %v3545, %v3549
      %v3551 = vrot.slane %v3336, 3
      %v3552 = vsel %vm3416, %v3547, %v3551
      %v3553 = vrot.slane %v3337, 3
      %v3554 = vsel %vm3416, %v3549, %v3553
      %v3555 = vrot.slane %v3338, 3
      %v3556 = vsel %vm3416, %v3551, %v3555
      %v3557 = vrot.slane %v3339, 3
      %v3558 = vsel %vm3416, %v3553, %v3557
      %v3559 = vrot.slane %v3340, 3
      %v3560 = vsel %vm3416, %v3555, %v3559
      %v3561 = vrot.slane %v3341, 3
      %v3562 = vsel %vm3416, %v3557, %v3561
      %v3635 = vadd.f32 %v3181, %v3419
      %v3636 = vadd.f32 %v3182, %v3422
      %v3637 = vadd.f32 %v3183, %v3424
      %v3638 = vadd.f32 %v3184, %v3426
      %v3639 = vadd.f32 %v3185, %v3428
      %v3640 = vadd.f32 %v3186, %v3430
      %v3641 = vadd.f32 %v3187, %v3432
      %v3642 = vadd.f32 %v3188, %v3434
      %v3643 = vadd.f32 %v3189, %v3436
      %v3644 = vadd.f32 %v3190, %v3438
      %v3645 = vadd.f32 %v3191, %v3440
      %v3646 = vadd.f32 %v3192, %v3442
      %v3647 = vadd.f32 %v3193, %v3444
      %v3648 = vadd.f32 %v3194, %v3446
      %v3649 = vadd.f32 %v3195, %v3448
      %v3650 = vadd.f32 %v3196, %v3450
      %v3651 = vadd.f32 %v3197, %v3452
      %v3652 = vadd.f32 %v3198, %v3454
      %v3653 = vadd.f32 %v3199, %v3456
      %v3654 = vadd.f32 %v3200, %v3458
      %v3655 = vadd.f32 %v3201, %v3460
      %v3656 = vadd.f32 %v3202, %v3462
      %v3657 = vadd.f32 %v3203, %v3464
      %v3658 = vadd.f32 %v3204, %v3466
      %v3659 = vadd.f32 %v3205, %v3468
      %v3660 = vadd.f32 %v3206, %v3470
      %v3661 = vadd.f32 %v3207, %v3472
      %v3662 = vadd.f32 %v3208, %v3474
      %v3663 = vadd.f32 %v3209, %v3476
      %v3664 = vadd.f32 %v3210, %v3478
      %v3665 = vadd.f32 %v3211, %v3480
      %v3666 = vadd.f32 %v3212, %v3482
      %v3667 = vadd.f32 %v3213, %v3484
      %v3668 = vadd.f32 %v3214, %v3486
      %v3669 = vadd.f32 %v3215, %v3488
      %v3670 = vadd.f32 %v3216, %v3490
      %v3671 = vadd.f32 %v3217, %v3492
      %v3672 = vadd.f32 %v3218, %v3494
      %v3673 = vadd.f32 %v3219, %v3496
      %v3674 = vadd.f32 %v3220, %v3498
      %v3675 = vadd.f32 %v3221, %v3500
      %v3676 = vadd.f32 %v3222, %v3502
      %v3677 = vadd.f32 %v3223, %v3504
      %v3678 = vadd.f32 %v3224, %v3506
      %v3679 = vadd.f32 %v3225, %v3508
      %v3680 = vadd.f32 %v3226, %v3510
      %v3681 = vadd.f32 %v3227, %v3512
      %v3682 = vadd.f32 %v3228, %v3514
      %v3683 = vadd.f32 %v3229, %v3516
      %v3684 = vadd.f32 %v3230, %v3518
      %v3685 = vadd.f32 %v3231, %v3520
      %v3686 = vadd.f32 %v3232, %v3522
      %v3687 = vadd.f32 %v3233, %v3524
      %v3688 = vadd.f32 %v3234, %v3526
      %v3689 = vadd.f32 %v3235, %v3528
      %v3690 = vadd.f32 %v3236, %v3530
      %v3691 = vadd.f32 %v3237, %v3532
      %v3692 = vadd.f32 %v3238, %v3534
      %v3693 = vadd.f32 %v3239, %v3536
      %v3694 = vadd.f32 %v3240, %v3538
      %v3695 = vadd.f32 %v3241, %v3540
      %v3696 = vadd.f32 %v3242, %v3542
      %v3697 = vadd.f32 %v3243, %v3544
      %v3698 = vadd.f32 %v3244, %v3546
      %v3699 = vadd.f32 %v3245, %v3548
      %v3700 = vadd.f32 %v3246, %v3550
      %v3701 = vadd.f32 %v3247, %v3552
      %v3702 = vadd.f32 %v3248, %v3554
      %v3703 = vadd.f32 %v3249, %v3556
      %v3704 = vadd.f32 %v3250, %v3558
      %v3705 = vadd.f32 %v3251, %v3560
      %v3706 = vadd.f32 %v3252, %v3562
      %v3707 = vld [vmem:[#allocation2 + $0x20] sm:$0xf0]
      %v3708 = vld [vmem:[#allocation2 + $0x28] sm:$0xf0]
      %v3709 = vld [vmem:[#allocation2 + $0x260] sm:$0x3]
      %v3710 = vld [vmem:[#allocation2 + $0x268] sm:$0x3]
      %v3712 = vlaneseq
      %v3713 = vshrl.u32 %v3712, 7
      %v3714 = vsub.s32 0, %v3713
      %v3715 = vrot.slane %v1683, %v3714
      %v3716 = vlaneseq
      %v3717 = vshrl.u32 %v3716, 7
      %v3718 = vsub.s32 1, %v3717
      %v3719 = vrot.slane %v1683, %v3718
      %v3722 = vmul.f32 %v3707, %v3715
      %v3723 = vmul.f32 %v3708, %v3719
      %v3724 = vmul.f32 %v1693, %v3715
      %v3725 = vmul.f32 %v1694, %v3719
      %v3726 = vmul.f32 %v1695, %v3715
      %v3727 = vmul.f32 %v1696, %v3719
      %v3728 = vmul.f32 %v1697, %v3715
      %v3729 = vmul.f32 %v1698, %v3719
      %v3730 = vmul.f32 %v1699, %v3715
      %v3731 = vmul.f32 %v1700, %v3719
      %v3732 = vmul.f32 %v1701, %v3715
      %v3733 = vmul.f32 %v1702, %v3719
      %v3734 = vmul.f32 %v1703, %v3715
      %v3735 = vmul.f32 %v1704, %v3719
      %v3736 = vmul.f32 %v1705, %v3715
      %v3737 = vmul.f32 %v1706, %v3719
      %v3738 = vmul.f32 %v1707, %v3715
      %v3739 = vmul.f32 %v1708, %v3719
      %v3740 = vmul.f32 %v1709, %v3715
      %v3741 = vmul.f32 %v1710, %v3719
      %v3742 = vmul.f32 %v1711, %v3715
      %v3743 = vmul.f32 %v1712, %v3719
      %v3744 = vmul.f32 %v1713, %v3715
      %v3745 = vmul.f32 %v1714, %v3719
      %v3746 = vmul.f32 %v1715, %v3715
      %v3747 = vmul.f32 %v1716, %v3719
      %v3748 = vmul.f32 %v1717, %v3715
      %v3749 = vmul.f32 %v1718, %v3719
      %v3750 = vmul.f32 %v1719, %v3715
      %v3751 = vmul.f32 %v1720, %v3719
      %v3752 = vmul.f32 %v1721, %v3715
      %v3753 = vmul.f32 %v1722, %v3719
      %v3754 = vmul.f32 %v1723, %v3715
      %v3755 = vmul.f32 %v1724, %v3719
      %v3756 = vmul.f32 %v1725, %v3715
      %v3757 = vmul.f32 %v1726, %v3719
      %v3758 = vmul.f32 %v1727, %v3715
      %v3759 = vmul.f32 %v1728, %v3719
      %v3760 = vmul.f32 %v1729, %v3715
      %v3761 = vmul.f32 %v1730, %v3719
      %v3762 = vmul.f32 %v1731, %v3715
      %v3763 = vmul.f32 %v1732, %v3719
      %v3764 = vmul.f32 %v1733, %v3715
      %v3765 = vmul.f32 %v1734, %v3719
      %v3766 = vmul.f32 %v1735, %v3715
      %v3767 = vmul.f32 %v1736, %v3719
      %v3768 = vmul.f32 %v1737, %v3715
      %v3769 = vmul.f32 %v1738, %v3719
      %v3770 = vmul.f32 %v1739, %v3715
      %v3771 = vmul.f32 %v1740, %v3719
      %v3772 = vmul.f32 %v1741, %v3715
      %v3773 = vmul.f32 %v1742, %v3719
      %v3774 = vmul.f32 %v1743, %v3715
      %v3775 = vmul.f32 %v1744, %v3719
      %v3776 = vmul.f32 %v1745, %v3715
      %v3777 = vmul.f32 %v1746, %v3719
      %v3778 = vmul.f32 %v1747, %v3715
      %v3779 = vmul.f32 %v1748, %v3719
      %v3780 = vmul.f32 %v1749, %v3715
      %v3781 = vmul.f32 %v1750, %v3719
      %v3782 = vmul.f32 %v1751, %v3715
      %v3783 = vmul.f32 %v1752, %v3719
      %v3784 = vmul.f32 %v1753, %v3715
      %v3785 = vmul.f32 %v1754, %v3719
      %v3786 = vmul.f32 %v1755, %v3715
      %v3787 = vmul.f32 %v1756, %v3719
      %v3788 = vmul.f32 %v2362, %v3715
      %v3789 = vmul.f32 %v2363, %v3719
      %v3790 = vmul.f32 %v2808, %v3715
      %v3791 = vmul.f32 %v2809, %v3719
      %v3792 = vmul.f32 %v2810, %v3715
      %v3793 = vmul.f32 %v2811, %v3719
      %v3794 = vmul.f32 %v3709, %v3715
      %v3795 = vmul.f32 %v3710, %v3719
      %vm3870 = vcmask 1043456
      %v3871 = vrot.slane %v3722, 4
      %v3872 = vrot.slane %v3724, 4
      %v3873 = vsel %vm3870, %v3871, %v3872
      %v3874 = vrot.slane %v3723, 4
      %v3875 = vrot.slane %v3725, 4
      %v3876 = vsel %vm3870, %v3874, %v3875
      %v3877 = vrot.slane %v3726, 4
      %v3878 = vsel %vm3870, %v3872, %v3877
      %v3879 = vrot.slane %v3727, 4
      %v3880 = vsel %vm3870, %v3875, %v3879
      %v3881 = vrot.slane %v3728, 4
      %v3882 = vsel %vm3870, %v3877, %v3881
      %v3883 = vrot.slane %v3729, 4
      %v3884 = vsel %vm3870, %v3879, %v3883
      %v3885 = vrot.slane %v3730, 4
      %v3886 = vsel %vm3870, %v3881, %v3885
      %v3887 = vrot.slane %v3731, 4
      %v3888 = vsel %vm3870, %v3883, %v3887
      %v3889 = vrot.slane %v3732, 4
      %v3890 = vsel %vm3870, %v3885, %v3889
      %v3891 = vrot.slane %v3733, 4
      %v3892 = vsel %vm3870, %v3887, %v3891
      %v3893 = vrot.slane %v3734, 4
      %v3894 = vsel %vm3870, %v3889, %v3893
      %v3895 = vrot.slane %v3735, 4
      %v3896 = vsel %vm3870, %v3891, %v3895
      %v3897 = vrot.slane %v3736, 4
      %v3898 = vsel %vm3870, %v3893, %v3897
      %v3899 = vrot.slane %v3737, 4
      %v3900 = vsel %vm3870, %v3895, %v3899
      %v3901 = vrot.slane %v3738, 4
      %v3902 = vsel %vm3870, %v3897, %v3901
      %v3903 = vrot.slane %v3739, 4
      %v3904 = vsel %vm3870, %v3899, %v3903
      %v3905 = vrot.slane %v3740, 4
      %v3906 = vsel %vm3870, %v3901, %v3905
      %v3907 = vrot.slane %v3741, 4
      %v3908 = vsel %vm3870, %v3903, %v3907
      %v3909 = vrot.slane %v3742, 4
      %v3910 = vsel %vm3870, %v3905, %v3909
      %v3911 = vrot.slane %v3743, 4
      %v3912 = vsel %vm3870, %v3907, %v3911
      %v3913 = vrot.slane %v3744, 4
      %v3914 = vsel %vm3870, %v3909, %v3913
      %v3915 = vrot.slane %v3745, 4
      %v3916 = vsel %vm3870, %v3911, %v3915
      %v3917 = vrot.slane %v3746, 4
      %v3918 = vsel %vm3870, %v3913, %v3917
      %v3919 = vrot.slane %v3747, 4
      %v3920 = vsel %vm3870, %v3915, %v3919
      %v3921 = vrot.slane %v3748, 4
      %v3922 = vsel %vm3870, %v3917, %v3921
      %v3923 = vrot.slane %v3749, 4
      %v3924 = vsel %vm3870, %v3919, %v3923
      %v3925 = vrot.slane %v3750, 4
      %v3926 = vsel %vm3870, %v3921, %v3925
      %v3927 = vrot.slane %v3751, 4
      %v3928 = vsel %vm3870, %v3923, %v3927
      %v3929 = vrot.slane %v3752, 4
      %v3930 = vsel %vm3870, %v3925, %v3929
      %v3931 = vrot.slane %v3753, 4
      %v3932 = vsel %vm3870, %v3927, %v3931
      %v3933 = vrot.slane %v3754, 4
      %v3934 = vsel %vm3870, %v3929, %v3933
      %v3935 = vrot.slane %v3755, 4
      %v3936 = vsel %vm3870, %v3931, %v3935
      %v3937 = vrot.slane %v3756, 4
      %v3938 = vsel %vm3870, %v3933, %v3937
      %v3939 = vrot.slane %v3757, 4
      %v3940 = vsel %vm3870, %v3935, %v3939
      %v3941 = vrot.slane %v3758, 4
      %v3942 = vsel %vm3870, %v3937, %v3941
      %v3943 = vrot.slane %v3759, 4
      %v3944 = vsel %vm3870, %v3939, %v3943
      %v3945 = vrot.slane %v3760, 4
      %v3946 = vsel %vm3870, %v3941, %v3945
      %v3947 = vrot.slane %v3761, 4
      %v3948 = vsel %vm3870, %v3943, %v3947
      %v3949 = vrot.slane %v3762, 4
      %v3950 = vsel %vm3870, %v3945, %v3949
      %v3951 = vrot.slane %v3763, 4
      %v3952 = vsel %vm3870, %v3947, %v3951
      %v3953 = vrot.slane %v3764, 4
      %v3954 = vsel %vm3870, %v3949, %v3953
      %v3955 = vrot.slane %v3765, 4
      %v3956 = vsel %vm3870, %v3951, %v3955
      %v3957 = vrot.slane %v3766, 4
      %v3958 = vsel %vm3870, %v3953, %v3957
      %v3959 = vrot.slane %v3767, 4
      %v3960 = vsel %vm3870, %v3955, %v3959
      %v3961 = vrot.slane %v3768, 4
      %v3962 = vsel %vm3870, %v3957, %v3961
      %v3963 = vrot.slane %v3769, 4
      %v3964 = vsel %vm3870, %v3959, %v3963
      %v3965 = vrot.slane %v3770, 4
      %v3966 = vsel %vm3870, %v3961, %v3965
      %v3967 = vrot.slane %v3771, 4
      %v3968 = vsel %vm3870, %v3963, %v3967
      %v3969 = vrot.slane %v3772, 4
      %v3970 = vsel %vm3870, %v3965, %v3969
      %v3971 = vrot.slane %v3773, 4
      %v3972 = vsel %vm3870, %v3967, %v3971
      %v3973 = vrot.slane %v3774, 4
      %v3974 = vsel %vm3870, %v3969, %v3973
      %v3975 = vrot.slane %v3775, 4
      %v3976 = vsel %vm3870, %v3971, %v3975
      %v3977 = vrot.slane %v3776, 4
      %v3978 = vsel %vm3870, %v3973, %v3977
      %v3979 = vrot.slane %v3777, 4
      %v3980 = vsel %vm3870, %v3975, %v3979
      %v3981 = vrot.slane %v3778, 4
      %v3982 = vsel %vm3870, %v3977, %v3981
      %v3983 = vrot.slane %v3779, 4
      %v3984 = vsel %vm3870, %v3979, %v3983
      %v3985 = vrot.slane %v3780, 4
      %v3986 = vsel %vm3870, %v3981, %v3985
      %v3987 = vrot.slane %v3781, 4
      %v3988 = vsel %vm3870, %v3983, %v3987
      %v3989 = vrot.slane %v3782, 4
      %v3990 = vsel %vm3870, %v3985, %v3989
      %v3991 = vrot.slane %v3783, 4
      %v3992 = vsel %vm3870, %v3987, %v3991
      %v3993 = vrot.slane %v3784, 4
      %v3994 = vsel %vm3870, %v3989, %v3993
      %v3995 = vrot.slane %v3785, 4
      %v3996 = vsel %vm3870, %v3991, %v3995
      %v3997 = vrot.slane %v3786, 4
      %v3998 = vsel %vm3870, %v3993, %v3997
      %v3999 = vrot.slane %v3787, 4
      %v4000 = vsel %vm3870, %v3995, %v3999
      %v4001 = vrot.slane %v3788, 4
      %v4002 = vsel %vm3870, %v3997, %v4001
      %v4003 = vrot.slane %v3789, 4
      %v4004 = vsel %vm3870, %v3999, %v4003
      %v4005 = vrot.slane %v3790, 4
      %v4006 = vsel %vm3870, %v4001, %v4005
      %v4007 = vrot.slane %v3791, 4
      %v4008 = vsel %vm3870, %v4003, %v4007
      %v4009 = vrot.slane %v3792, 4
      %v4010 = vsel %vm3870, %v4005, %v4009
      %v4011 = vrot.slane %v3793, 4
      %v4012 = vsel %vm3870, %v4007, %v4011
      %v4013 = vrot.slane %v3794, 4
      %v4014 = vsel %vm3870, %v4009, %v4013
      %v4015 = vrot.slane %v3795, 4
      %v4016 = vsel %vm3870, %v4011, %v4015
      %v4089 = vadd.f32 %v3635, %v3873
      %v4090 = vadd.f32 %v3636, %v3876
      %v4091 = vadd.f32 %v3637, %v3878
      %v4092 = vadd.f32 %v3638, %v3880
      %v4093 = vadd.f32 %v3639, %v3882
      %v4094 = vadd.f32 %v3640, %v3884
      %v4095 = vadd.f32 %v3641, %v3886
      %v4096 = vadd.f32 %v3642, %v3888
      %v4097 = vadd.f32 %v3643, %v3890
      %v4098 = vadd.f32 %v3644, %v3892
      %v4099 = vadd.f32 %v3645, %v3894
      %v4100 = vadd.f32 %v3646, %v3896
      %v4101 = vadd.f32 %v3647, %v3898
      %v4102 = vadd.f32 %v3648, %v3900
      %v4103 = vadd.f32 %v3649, %v3902
      %v4104 = vadd.f32 %v3650, %v3904
      %v4105 = vadd.f32 %v3651, %v3906
      %v4106 = vadd.f32 %v3652, %v3908
      %v4107 = vadd.f32 %v3653, %v3910
      %v4108 = vadd.f32 %v3654, %v3912
      %v4109 = vadd.f32 %v3655, %v3914
      %v4110 = vadd.f32 %v3656, %v3916
      %v4111 = vadd.f32 %v3657, %v3918
      %v4112 = vadd.f32 %v3658, %v3920
      %v4113 = vadd.f32 %v3659, %v3922
      %v4114 = vadd.f32 %v3660, %v3924
      %v4115 = vadd.f32 %v3661, %v3926
      %v4116 = vadd.f32 %v3662, %v3928
      %v4117 = vadd.f32 %v3663, %v3930
      %v4118 = vadd.f32 %v3664, %v3932
      %v4119 = vadd.f32 %v3665, %v3934
      %v4120 = vadd.f32 %v3666, %v3936
      %v4121 = vadd.f32 %v3667, %v3938
      %v4122 = vadd.f32 %v3668, %v3940
      %v4123 = vadd.f32 %v3669, %v3942
      %v4124 = vadd.f32 %v3670, %v3944
      %v4125 = vadd.f32 %v3671, %v3946
      %v4126 = vadd.f32 %v3672, %v3948
      %v4127 = vadd.f32 %v3673, %v3950
      %v4128 = vadd.f32 %v3674, %v3952
      %v4129 = vadd.f32 %v3675, %v3954
      %v4130 = vadd.f32 %v3676, %v3956
      %v4131 = vadd.f32 %v3677, %v3958
      %v4132 = vadd.f32 %v3678, %v3960
      %v4133 = vadd.f32 %v3679, %v3962
      %v4134 = vadd.f32 %v3680, %v3964
      %v4135 = vadd.f32 %v3681, %v3966
      %v4136 = vadd.f32 %v3682, %v3968
      %v4137 = vadd.f32 %v3683, %v3970
      %v4138 = vadd.f32 %v3684, %v3972
      %v4139 = vadd.f32 %v3685, %v3974
      %v4140 = vadd.f32 %v3686, %v3976
      %v4141 = vadd.f32 %v3687, %v3978
      %v4142 = vadd.f32 %v3688, %v3980
      %v4143 = vadd.f32 %v3689, %v3982
      %v4144 = vadd.f32 %v3690, %v3984
      %v4145 = vadd.f32 %v3691, %v3986
      %v4146 = vadd.f32 %v3692, %v3988
      %v4147 = vadd.f32 %v3693, %v3990
      %v4148 = vadd.f32 %v3694, %v3992
      %v4149 = vadd.f32 %v3695, %v3994
      %v4150 = vadd.f32 %v3696, %v3996
      %v4151 = vadd.f32 %v3697, %v3998
      %v4152 = vadd.f32 %v3698, %v4000
      %v4153 = vadd.f32 %v3699, %v4002
      %v4154 = vadd.f32 %v3700, %v4004
      %v4155 = vadd.f32 %v3701, %v4006
      %v4156 = vadd.f32 %v3702, %v4008
      %v4157 = vadd.f32 %v3703, %v4010
      %v4158 = vadd.f32 %v3704, %v4012
      %v4159 = vadd.f32 %v3705, %v4014
      %v4160 = vadd.f32 %v3706, %v4016
      %v4161 = vld [vmem:[#allocation2 + $0x40] sm:$0xf0]
      %v4162 = vld [vmem:[#allocation2 + $0x48] sm:$0xf0]
      %v4163 = vld [vmem:[#allocation2 + $0x260] sm:$0xff]
      %v4164 = vld [vmem:[#allocation2 + $0x268] sm:$0xff]
      %v4165 = vld [vmem:[#allocation2 + $0x270] sm:$0xff]
      %v4166 = vld [vmem:[#allocation2 + $0x278] sm:$0xff]
      %v4167 = vld [vmem:[#allocation2 + $0x280] sm:$0x3]
      %v4168 = vld [vmem:[#allocation2 + $0x288] sm:$0x3]
      %v4170 = vlaneseq
      %v4171 = vshrl.u32 %v4170, 7
      %v4172 = vsub.s32 0, %v4171
      %v4173 = vrot.slane %v1684, %v4172
      %v4174 = vlaneseq
      %v4175 = vshrl.u32 %v4174, 7
      %v4176 = vsub.s32 1, %v4175
      %v4177 = vrot.slane %v1684, %v4176
      %v4180 = vmul.f32 %v4161, %v4173
      %v4181 = vmul.f32 %v4162, %v4177
      %v4182 = vmul.f32 %v1697, %v4173
      %v4183 = vmul.f32 %v1698, %v4177
      %v4184 = vmul.f32 %v1699, %v4173
      %v4185 = vmul.f32 %v1700, %v4177
      %v4186 = vmul.f32 %v1701, %v4173
      %v4187 = vmul.f32 %v1702, %v4177
      %v4188 = vmul.f32 %v1703, %v4173
      %v4189 = vmul.f32 %v1704, %v4177
      %v4190 = vmul.f32 %v1705, %v4173
      %v4191 = vmul.f32 %v1706, %v4177
      %v4192 = vmul.f32 %v1707, %v4173
      %v4193 = vmul.f32 %v1708, %v4177
      %v4194 = vmul.f32 %v1709, %v4173
      %v4195 = vmul.f32 %v1710, %v4177
      %v4196 = vmul.f32 %v1711, %v4173
      %v4197 = vmul.f32 %v1712, %v4177
      %v4198 = vmul.f32 %v1713, %v4173
      %v4199 = vmul.f32 %v1714, %v4177
      %v4200 = vmul.f32 %v1715, %v4173
      %v4201 = vmul.f32 %v1716, %v4177
      %v4202 = vmul.f32 %v1717, %v4173
      %v4203 = vmul.f32 %v1718, %v4177
      %v4204 = vmul.f32 %v1719, %v4173
      %v4205 = vmul.f32 %v1720, %v4177
      %v4206 = vmul.f32 %v1721, %v4173
      %v4207 = vmul.f32 %v1722, %v4177
      %v4208 = vmul.f32 %v1723, %v4173
      %v4209 = vmul.f32 %v1724, %v4177
      %v4210 = vmul.f32 %v1725, %v4173
      %v4211 = vmul.f32 %v1726, %v4177
      %v4212 = vmul.f32 %v1727, %v4173
      %v4213 = vmul.f32 %v1728, %v4177
      %v4214 = vmul.f32 %v1729, %v4173
      %v4215 = vmul.f32 %v1730, %v4177
      %v4216 = vmul.f32 %v1731, %v4173
      %v4217 = vmul.f32 %v1732, %v4177
      %v4218 = vmul.f32 %v1733, %v4173
      %v4219 = vmul.f32 %v1734, %v4177
      %v4220 = vmul.f32 %v1735, %v4173
      %v4221 = vmul.f32 %v1736, %v4177
      %v4222 = vmul.f32 %v1737, %v4173
      %v4223 = vmul.f32 %v1738, %v4177
      %v4224 = vmul.f32 %v1739, %v4173
      %v4225 = vmul.f32 %v1740, %v4177
      %v4226 = vmul.f32 %v1741, %v4173
      %v4227 = vmul.f32 %v1742, %v4177
      %v4228 = vmul.f32 %v1743, %v4173
      %v4229 = vmul.f32 %v1744, %v4177
      %v4230 = vmul.f32 %v1745, %v4173
      %v4231 = vmul.f32 %v1746, %v4177
      %v4232 = vmul.f32 %v1747, %v4173
      %v4233 = vmul.f32 %v1748, %v4177
      %v4234 = vmul.f32 %v1749, %v4173
      %v4235 = vmul.f32 %v1750, %v4177
      %v4236 = vmul.f32 %v1751, %v4173
      %v4237 = vmul.f32 %v1752, %v4177
      %v4238 = vmul.f32 %v1753, %v4173
      %v4239 = vmul.f32 %v1754, %v4177
      %v4240 = vmul.f32 %v1755, %v4173
      %v4241 = vmul.f32 %v1756, %v4177
      %v4242 = vmul.f32 %v2362, %v4173
      %v4243 = vmul.f32 %v2363, %v4177
      %v4244 = vmul.f32 %v2808, %v4173
      %v4245 = vmul.f32 %v2809, %v4177
      %v4246 = vmul.f32 %v2810, %v4173
      %v4247 = vmul.f32 %v2811, %v4177
      %v4248 = vmul.f32 %v4163, %v4173
      %v4249 = vmul.f32 %v4164, %v4177
      %v4250 = vmul.f32 %v4165, %v4173
      %v4251 = vmul.f32 %v4166, %v4177
      %v4252 = vmul.f32 %v4167, %v4173
      %v4253 = vmul.f32 %v4168, %v4177
      %v4328 = vrot.slane %v4180, 4
      %v4329 = vrot.slane %v4182, 4
      %v4330 = vsel %vm3870, %v4328, %v4329
      %v4331 = vrot.slane %v4181, 4
      %v4332 = vrot.slane %v4183, 4
      %v4333 = vsel %vm3870, %v4331, %v4332
      %v4334 = vrot.slane %v4184, 4
      %v4335 = vsel %vm3870, %v4329, %v4334
      %v4336 = vrot.slane %v4185, 4
      %v4337 = vsel %vm3870, %v4332, %v4336
      %v4338 = vrot.slane %v4186, 4
      %v4339 = vsel %vm3870, %v4334, %v4338
      %v4340 = vrot.slane %v4187, 4
      %v4341 = vsel %vm3870, %v4336, %v4340
      %v4342 = vrot.slane %v4188, 4
      %v4343 = vsel %vm3870, %v4338, %v4342
      %v4344 = vrot.slane %v4189, 4
      %v4345 = vsel %vm3870, %v4340, %v4344
      %v4346 = vrot.slane %v4190, 4
      %v4347 = vsel %vm3870, %v4342, %v4346
      %v4348 = vrot.slane %v4191, 4
      %v4349 = vsel %vm3870, %v4344, %v4348
      %v4350 = vrot.slane %v4192, 4
      %v4351 = vsel %vm3870, %v4346, %v4350
      %v4352 = vrot.slane %v4193, 4
      %v4353 = vsel %vm3870, %v4348, %v4352
      %v4354 = vrot.slane %v4194, 4
      %v4355 = vsel %vm3870, %v4350, %v4354
      %v4356 = vrot.slane %v4195, 4
      %v4357 = vsel %vm3870, %v4352, %v4356
      %v4358 = vrot.slane %v4196, 4
      %v4359 = vsel %vm3870, %v4354, %v4358
      %v4360 = vrot.slane %v4197, 4
      %v4361 = vsel %vm3870, %v4356, %v4360
      %v4362 = vrot.slane %v4198, 4
      %v4363 = vsel %vm3870, %v4358, %v4362
      %v4364 = vrot.slane %v4199, 4
      %v4365 = vsel %vm3870, %v4360, %v4364
      %v4366 = vrot.slane %v4200, 4
      %v4367 = vsel %vm3870, %v4362, %v4366
      %v4368 = vrot.slane %v4201, 4
      %v4369 = vsel %vm3870, %v4364, %v4368
      %v4370 = vrot.slane %v4202, 4
      %v4371 = vsel %vm3870, %v4366, %v4370
      %v4372 = vrot.slane %v4203, 4
      %v4373 = vsel %vm3870, %v4368, %v4372
      %v4374 = vrot.slane %v4204, 4
      %v4375 = vsel %vm3870, %v4370, %v4374
      %v4376 = vrot.slane %v4205, 4
      %v4377 = vsel %vm3870, %v4372, %v4376
      %v4378 = vrot.slane %v4206, 4
      %v4379 = vsel %vm3870, %v4374, %v4378
      %v4380 = vrot.slane %v4207, 4
      %v4381 = vsel %vm3870, %v4376, %v4380
      %v4382 = vrot.slane %v4208, 4
      %v4383 = vsel %vm3870, %v4378, %v4382
      %v4384 = vrot.slane %v4209, 4
      %v4385 = vsel %vm3870, %v4380, %v4384
      %v4386 = vrot.slane %v4210, 4
      %v4387 = vsel %vm3870, %v4382, %v4386
      %v4388 = vrot.slane %v4211, 4
      %v4389 = vsel %vm3870, %v4384, %v4388
      %v4390 = vrot.slane %v4212, 4
      %v4391 = vsel %vm3870, %v4386, %v4390
      %v4392 = vrot.slane %v4213, 4
      %v4393 = vsel %vm3870, %v4388, %v4392
      %v4394 = vrot.slane %v4214, 4
      %v4395 = vsel %vm3870, %v4390, %v4394
      %v4396 = vrot.slane %v4215, 4
      %v4397 = vsel %vm3870, %v4392, %v4396
      %v4398 = vrot.slane %v4216, 4
      %v4399 = vsel %vm3870, %v4394, %v4398
      %v4400 = vrot.slane %v4217, 4
      %v4401 = vsel %vm3870, %v4396, %v4400
      %v4402 = vrot.slane %v4218, 4
      %v4403 = vsel %vm3870, %v4398, %v4402
      %v4404 = vrot.slane %v4219, 4
      %v4405 = vsel %vm3870, %v4400, %v4404
      %v4406 = vrot.slane %v4220, 4
      %v4407 = vsel %vm3870, %v4402, %v4406
      %v4408 = vrot.slane %v4221, 4
      %v4409 = vsel %vm3870, %v4404, %v4408
      %v4410 = vrot.slane %v4222, 4
      %v4411 = vsel %vm3870, %v4406, %v4410
      %v4412 = vrot.slane %v4223, 4
      %v4413 = vsel %vm3870, %v4408, %v4412
      %v4414 = vrot.slane %v4224, 4
      %v4415 = vsel %vm3870, %v4410, %v4414
      %v4416 = vrot.slane %v4225, 4
      %v4417 = vsel %vm3870, %v4412, %v4416
      %v4418 = vrot.slane %v4226, 4
      %v4419 = vsel %vm3870, %v4414, %v4418
      %v4420 = vrot.slane %v4227, 4
      %v4421 = vsel %vm3870, %v4416, %v4420
      %v4422 = vrot.slane %v4228, 4
      %v4423 = vsel %vm3870, %v4418, %v4422
      %v4424 = vrot.slane %v4229, 4
      %v4425 = vsel %vm3870, %v4420, %v4424
      %v4426 = vrot.slane %v4230, 4
      %v4427 = vsel %vm3870, %v4422, %v4426
      %v4428 = vrot.slane %v4231, 4
      %v4429 = vsel %vm3870, %v4424, %v4428
      %v4430 = vrot.slane %v4232, 4
      %v4431 = vsel %vm3870, %v4426, %v4430
      %v4432 = vrot.slane %v4233, 4
      %v4433 = vsel %vm3870, %v4428, %v4432
      %v4434 = vrot.slane %v4234, 4
      %v4435 = vsel %vm3870, %v4430, %v4434
      %v4436 = vrot.slane %v4235, 4
      %v4437 = vsel %vm3870, %v4432, %v4436
      %v4438 = vrot.slane %v4236, 4
      %v4439 = vsel %vm3870, %v4434, %v4438
      %v4440 = vrot.slane %v4237, 4
      %v4441 = vsel %vm3870, %v4436, %v4440
      %v4442 = vrot.slane %v4238, 4
      %v4443 = vsel %vm3870, %v4438, %v4442
      %v4444 = vrot.slane %v4239, 4
      %v4445 = vsel %vm3870, %v4440, %v4444
      %v4446 = vrot.slane %v4240, 4
      %v4447 = vsel %vm3870, %v4442, %v4446
      %v4448 = vrot.slane %v4241, 4
      %v4449 = vsel %vm3870, %v4444, %v4448
      %v4450 = vrot.slane %v4242, 4
      %v4451 = vsel %vm3870, %v4446, %v4450
      %v4452 = vrot.slane %v4243, 4
      %v4453 = vsel %vm3870, %v4448, %v4452
      %v4454 = vrot.slane %v4244, 4
      %v4455 = vsel %vm3870, %v4450, %v4454
      %v4456 = vrot.slane %v4245, 4
      %v4457 = vsel %vm3870, %v4452, %v4456
      %v4458 = vrot.slane %v4246, 4
      %v4459 = vsel %vm3870, %v4454, %v4458
      %v4460 = vrot.slane %v4247, 4
      %v4461 = vsel %vm3870, %v4456, %v4460
      %v4462 = vrot.slane %v4248, 4
      %v4463 = vsel %vm3870, %v4458, %v4462
      %v4464 = vrot.slane %v4249, 4
      %v4465 = vsel %vm3870, %v4460, %v4464
      %v4466 = vrot.slane %v4250, 4
      %v4467 = vsel %vm3870, %v4462, %v4466
      %v4468 = vrot.slane %v4251, 4
      %v4469 = vsel %vm3870, %v4464, %v4468
      %v4470 = vrot.slane %v4252, 4
      %v4471 = vsel %vm3870, %v4466, %v4470
      %v4472 = vrot.slane %v4253, 4
      %v4473 = vsel %vm3870, %v4468, %v4472
      %v4546 = vadd.f32 %v4089, %v4330
      %v4547 = vadd.f32 %v4090, %v4333
      %v4548 = vadd.f32 %v4091, %v4335
      %v4549 = vadd.f32 %v4092, %v4337
      %v4550 = vadd.f32 %v4093, %v4339
      %v4551 = vadd.f32 %v4094, %v4341
      %v4552 = vadd.f32 %v4095, %v4343
      %v4553 = vadd.f32 %v4096, %v4345
      %v4554 = vadd.f32 %v4097, %v4347
      %v4555 = vadd.f32 %v4098, %v4349
      %v4556 = vadd.f32 %v4099, %v4351
      %v4557 = vadd.f32 %v4100, %v4353
      %v4558 = vadd.f32 %v4101, %v4355
      %v4559 = vadd.f32 %v4102, %v4357
      %v4560 = vadd.f32 %v4103, %v4359
      %v4561 = vadd.f32 %v4104, %v4361
      %v4562 = vadd.f32 %v4105, %v4363
      %v4563 = vadd.f32 %v4106, %v4365
      %v4564 = vadd.f32 %v4107, %v4367
      %v4565 = vadd.f32 %v4108, %v4369
      %v4566 = vadd.f32 %v4109, %v4371
      %v4567 = vadd.f32 %v4110, %v4373
      %v4568 = vadd.f32 %v4111, %v4375
      %v4569 = vadd.f32 %v4112, %v4377
      %v4570 = vadd.f32 %v4113, %v4379
      %v4571 = vadd.f32 %v4114, %v4381
      %v4572 = vadd.f32 %v4115, %v4383
      %v4573 = vadd.f32 %v4116, %v4385
      %v4574 = vadd.f32 %v4117, %v4387
      %v4575 = vadd.f32 %v4118, %v4389
      %v4576 = vadd.f32 %v4119, %v4391
      %v4577 = vadd.f32 %v4120, %v4393
      %v4578 = vadd.f32 %v4121, %v4395
      %v4579 = vadd.f32 %v4122, %v4397
      %v4580 = vadd.f32 %v4123, %v4399
      %v4581 = vadd.f32 %v4124, %v4401
      %v4582 = vadd.f32 %v4125, %v4403
      %v4583 = vadd.f32 %v4126, %v4405
      %v4584 = vadd.f32 %v4127, %v4407
      %v4585 = vadd.f32 %v4128, %v4409
      %v4586 = vadd.f32 %v4129, %v4411
      %v4587 = vadd.f32 %v4130, %v4413
      %v4588 = vadd.f32 %v4131, %v4415
      %v4589 = vadd.f32 %v4132, %v4417
      %v4590 = vadd.f32 %v4133, %v4419
      %v4591 = vadd.f32 %v4134, %v4421
      %v4592 = vadd.f32 %v4135, %v4423
      %v4593 = vadd.f32 %v4136, %v4425
      %v4594 = vadd.f32 %v4137, %v4427
      %v4595 = vadd.f32 %v4138, %v4429
      %v4596 = vadd.f32 %v4139, %v4431
      %v4597 = vadd.f32 %v4140, %v4433
      %v4598 = vadd.f32 %v4141, %v4435
      %v4599 = vadd.f32 %v4142, %v4437
      %v4600 = vadd.f32 %v4143, %v4439
      %v4601 = vadd.f32 %v4144, %v4441
      %v4602 = vadd.f32 %v4145, %v4443
      %v4603 = vadd.f32 %v4146, %v4445
      %v4604 = vadd.f32 %v4147, %v4447
      %v4605 = vadd.f32 %v4148, %v4449
      %v4606 = vadd.f32 %v4149, %v4451
      %v4607 = vadd.f32 %v4150, %v4453
      %v4608 = vadd.f32 %v4151, %v4455
      %v4609 = vadd.f32 %v4152, %v4457
      %v4610 = vadd.f32 %v4153, %v4459
      %v4611 = vadd.f32 %v4154, %v4461
      %v4612 = vadd.f32 %v4155, %v4463
      %v4613 = vadd.f32 %v4156, %v4465
      %v4614 = vadd.f32 %v4157, %v4467
      %v4615 = vadd.f32 %v4158, %v4469
      %v4616 = vadd.f32 %v4159, %v4471
      %v4617 = vadd.f32 %v4160, %v4473
      %v4618 = vld [vmem:[#allocation2 + $0x40] sm:$0xe0]
      %v4619 = vld [vmem:[#allocation2 + $0x48] sm:$0xe0]
      %v4620 = vld [vmem:[#allocation2 + $0x280] sm:$0x7]
      %v4621 = vld [vmem:[#allocation2 + $0x288] sm:$0x7]
      %v4623 = vlaneseq
      %v4624 = vshrl.u32 %v4623, 7
      %v4625 = vsub.s32 0, %v4624
      %v4626 = vrot.slane %v1685, %v4625
      %v4627 = vlaneseq
      %v4628 = vshrl.u32 %v4627, 7
      %v4629 = vsub.s32 1, %v4628
      %v4630 = vrot.slane %v1685, %v4629
      %v4633 = vmul.f32 %v4618, %v4626
      %v4634 = vmul.f32 %v4619, %v4630
      %v4635 = vmul.f32 %v1697, %v4626
      %v4636 = vmul.f32 %v1698, %v4630
      %v4637 = vmul.f32 %v1699, %v4626
      %v4638 = vmul.f32 %v1700, %v4630
      %v4639 = vmul.f32 %v1701, %v4626
      %v4640 = vmul.f32 %v1702, %v4630
      %v4641 = vmul.f32 %v1703, %v4626
      %v4642 = vmul.f32 %v1704, %v4630
      %v4643 = vmul.f32 %v1705, %v4626
      %v4644 = vmul.f32 %v1706, %v4630
      %v4645 = vmul.f32 %v1707, %v4626
      %v4646 = vmul.f32 %v1708, %v4630
      %v4647 = vmul.f32 %v1709, %v4626
      %v4648 = vmul.f32 %v1710, %v4630
      %v4649 = vmul.f32 %v1711, %v4626
      %v4650 = vmul.f32 %v1712, %v4630
      %v4651 = vmul.f32 %v1713, %v4626
      %v4652 = vmul.f32 %v1714, %v4630
      %v4653 = vmul.f32 %v1715, %v4626
      %v4654 = vmul.f32 %v1716, %v4630
      %v4655 = vmul.f32 %v1717, %v4626
      %v4656 = vmul.f32 %v1718, %v4630
      %v4657 = vmul.f32 %v1719, %v4626
      %v4658 = vmul.f32 %v1720, %v4630
      %v4659 = vmul.f32 %v1721, %v4626
      %v4660 = vmul.f32 %v1722, %v4630
      %v4661 = vmul.f32 %v1723, %v4626
      %v4662 = vmul.f32 %v1724, %v4630
      %v4663 = vmul.f32 %v1725, %v4626
      %v4664 = vmul.f32 %v1726, %v4630
      %v4665 = vmul.f32 %v1727, %v4626
      %v4666 = vmul.f32 %v1728, %v4630
      %v4667 = vmul.f32 %v1729, %v4626
      %v4668 = vmul.f32 %v1730, %v4630
      %v4669 = vmul.f32 %v1731, %v4626
      %v4670 = vmul.f32 %v1732, %v4630
      %v4671 = vmul.f32 %v1733, %v4626
      %v4672 = vmul.f32 %v1734, %v4630
      %v4673 = vmul.f32 %v1735, %v4626
      %v4674 = vmul.f32 %v1736, %v4630
      %v4675 = vmul.f32 %v1737, %v4626
      %v4676 = vmul.f32 %v1738, %v4630
      %v4677 = vmul.f32 %v1739, %v4626
      %v4678 = vmul.f32 %v1740, %v4630
      %v4679 = vmul.f32 %v1741, %v4626
      %v4680 = vmul.f32 %v1742, %v4630
      %v4681 = vmul.f32 %v1743, %v4626
      %v4682 = vmul.f32 %v1744, %v4630
      %v4683 = vmul.f32 %v1745, %v4626
      %v4684 = vmul.f32 %v1746, %v4630
      %v4685 = vmul.f32 %v1747, %v4626
      %v4686 = vmul.f32 %v1748, %v4630
      %v4687 = vmul.f32 %v1749, %v4626
      %v4688 = vmul.f32 %v1750, %v4630
      %v4689 = vmul.f32 %v1751, %v4626
      %v4690 = vmul.f32 %v1752, %v4630
      %v4691 = vmul.f32 %v1753, %v4626
      %v4692 = vmul.f32 %v1754, %v4630
      %v4693 = vmul.f32 %v1755, %v4626
      %v4694 = vmul.f32 %v1756, %v4630
      %v4695 = vmul.f32 %v2362, %v4626
      %v4696 = vmul.f32 %v2363, %v4630
      %v4697 = vmul.f32 %v2808, %v4626
      %v4698 = vmul.f32 %v2809, %v4630
      %v4699 = vmul.f32 %v2810, %v4626
      %v4700 = vmul.f32 %v2811, %v4630
      %v4701 = vmul.f32 %v4163, %v4626
      %v4702 = vmul.f32 %v4164, %v4630
      %v4703 = vmul.f32 %v4165, %v4626
      %v4704 = vmul.f32 %v4166, %v4630
      %v4705 = vmul.f32 %v4620, %v4626
      %v4706 = vmul.f32 %v4621, %v4630
      %vm4781 = vcmask 1042432
      %v4782 = vrot.slane %v4633, 5
      %v4783 = vrot.slane %v4635, 5
      %v4784 = vsel %vm4781, %v4782, %v4783
      %v4785 = vrot.slane %v4634, 5
      %v4786 = vrot.slane %v4636, 5
      %v4787 = vsel %vm4781, %v4785, %v4786
      %v4788 = vrot.slane %v4637, 5
      %v4789 = vsel %vm4781, %v4783, %v4788
      %v4790 = vrot.slane %v4638, 5
      %v4791 = vsel %vm4781, %v4786, %v4790
      %v4792 = vrot.slane %v4639, 5
      %v4793 = vsel %vm4781, %v4788, %v4792
      %v4794 = vrot.slane %v4640, 5
      %v4795 = vsel %vm4781, %v4790, %v4794
      %v4796 = vrot.slane %v4641, 5
      %v4797 = vsel %vm4781, %v4792, %v4796
      %v4798 = vrot.slane %v4642, 5
      %v4799 = vsel %vm4781, %v4794, %v4798
      %v4800 = vrot.slane %v4643, 5
      %v4801 = vsel %vm4781, %v4796, %v4800
      %v4802 = vrot.slane %v4644, 5
      %v4803 = vsel %vm4781, %v4798, %v4802
      %v4804 = vrot.slane %v4645, 5
      %v4805 = vsel %vm4781, %v4800, %v4804
      %v4806 = vrot.slane %v4646, 5
      %v4807 = vsel %vm4781, %v4802, %v4806
      %v4808 = vrot.slane %v4647, 5
      %v4809 = vsel %vm4781, %v4804, %v4808
      %v4810 = vrot.slane %v4648, 5
      %v4811 = vsel %vm4781, %v4806, %v4810
      %v4812 = vrot.slane %v4649, 5
      %v4813 = vsel %vm4781, %v4808, %v4812
      %v4814 = vrot.slane %v4650, 5
      %v4815 = vsel %vm4781, %v4810, %v4814
      %v4816 = vrot.slane %v4651, 5
      %v4817 = vsel %vm4781, %v4812, %v4816
      %v4818 = vrot.slane %v4652, 5
      %v4819 = vsel %vm4781, %v4814, %v4818
      %v4820 = vrot.slane %v4653, 5
      %v4821 = vsel %vm4781, %v4816, %v4820
      %v4822 = vrot.slane %v4654, 5
      %v4823 = vsel %vm4781, %v4818, %v4822
      %v4824 = vrot.slane %v4655, 5
      %v4825 = vsel %vm4781, %v4820, %v4824
      %v4826 = vrot.slane %v4656, 5
      %v4827 = vsel %vm4781, %v4822, %v4826
      %v4828 = vrot.slane %v4657, 5
      %v4829 = vsel %vm4781, %v4824, %v4828
      %v4830 = vrot.slane %v4658, 5
      %v4831 = vsel %vm4781, %v4826, %v4830
      %v4832 = vrot.slane %v4659, 5
      %v4833 = vsel %vm4781, %v4828, %v4832
      %v4834 = vrot.slane %v4660, 5
      %v4835 = vsel %vm4781, %v4830, %v4834
      %v4836 = vrot.slane %v4661, 5
      %v4837 = vsel %vm4781, %v4832, %v4836
      %v4838 = vrot.slane %v4662, 5
      %v4839 = vsel %vm4781, %v4834, %v4838
      %v4840 = vrot.slane %v4663, 5
      %v4841 = vsel %vm4781, %v4836, %v4840
      %v4842 = vrot.slane %v4664, 5
      %v4843 = vsel %vm4781, %v4838, %v4842
      %v4844 = vrot.slane %v4665, 5
      %v4845 = vsel %vm4781, %v4840, %v4844
      %v4846 = vrot.slane %v4666, 5
      %v4847 = vsel %vm4781, %v4842, %v4846
      %v4848 = vrot.slane %v4667, 5
      %v4849 = vsel %vm4781, %v4844, %v4848
      %v4850 = vrot.slane %v4668, 5
      %v4851 = vsel %vm4781, %v4846, %v4850
      %v4852 = vrot.slane %v4669, 5
      %v4853 = vsel %vm4781, %v4848, %v4852
      %v4854 = vrot.slane %v4670, 5
      %v4855 = vsel %vm4781, %v4850, %v4854
      %v4856 = vrot.slane %v4671, 5
      %v4857 = vsel %vm4781, %v4852, %v4856
      %v4858 = vrot.slane %v4672, 5
      %v4859 = vsel %vm4781, %v4854, %v4858
      %v4860 = vrot.slane %v4673, 5
      %v4861 = vsel %vm4781, %v4856, %v4860
      %v4862 = vrot.slane %v4674, 5
      %v4863 = vsel %vm4781, %v4858, %v4862
      %v4864 = vrot.slane %v4675, 5
      %v4865 = vsel %vm4781, %v4860, %v4864
      %v4866 = vrot.slane %v4676, 5
      %v4867 = vsel %vm4781, %v4862, %v4866
      %v4868 = vrot.slane %v4677, 5
      %v4869 = vsel %vm4781, %v4864, %v4868
      %v4870 = vrot.slane %v4678, 5
      %v4871 = vsel %vm4781, %v4866, %v4870
      %v4872 = vrot.slane %v4679, 5
      %v4873 = vsel %vm4781, %v4868, %v4872
      %v4874 = vrot.slane %v4680, 5
      %v4875 = vsel %vm4781, %v4870, %v4874
      %v4876 = vrot.slane %v4681, 5
      %v4877 = vsel %vm4781, %v4872, %v4876
      %v4878 = vrot.slane %v4682, 5
      %v4879 = vsel %vm4781, %v4874, %v4878
      %v4880 = vrot.slane %v4683, 5
      %v4881 = vsel %vm4781, %v4876, %v4880
      %v4882 = vrot.slane %v4684, 5
      %v4883 = vsel %vm4781, %v4878, %v4882
      %v4884 = vrot.slane %v4685, 5
      %v4885 = vsel %vm4781, %v4880, %v4884
      %v4886 = vrot.slane %v4686, 5
      %v4887 = vsel %vm4781, %v4882, %v4886
      %v4888 = vrot.slane %v4687, 5
      %v4889 = vsel %vm4781, %v4884, %v4888
      %v4890 = vrot.slane %v4688, 5
      %v4891 = vsel %vm4781, %v4886, %v4890
      %v4892 = vrot.slane %v4689, 5
      %v4893 = vsel %vm4781, %v4888, %v4892
      %v4894 = vrot.slane %v4690, 5
      %v4895 = vsel %vm4781, %v4890, %v4894
      %v4896 = vrot.slane %v4691, 5
      %v4897 = vsel %vm4781, %v4892, %v4896
      %v4898 = vrot.slane %v4692, 5
      %v4899 = vsel %vm4781, %v4894, %v4898
      %v4900 = vrot.slane %v4693, 5
      %v4901 = vsel %vm4781, %v4896, %v4900
      %v4902 = vrot.slane %v4694, 5
      %v4903 = vsel %vm4781, %v4898, %v4902
      %v4904 = vrot.slane %v4695, 5
      %v4905 = vsel %vm4781, %v4900, %v4904
      %v4906 = vrot.slane %v4696, 5
      %v4907 = vsel %vm4781, %v4902, %v4906
      %v4908 = vrot.slane %v4697, 5
      %v4909 = vsel %vm4781, %v4904, %v4908
      %v4910 = vrot.slane %v4698, 5
      %v4911 = vsel %vm4781, %v4906, %v4910
      %v4912 = vrot.slane %v4699, 5
      %v4913 = vsel %vm4781, %v4908, %v4912
      %v4914 = vrot.slane %v4700, 5
      %v4915 = vsel %vm4781, %v4910, %v4914
      %v4916 = vrot.slane %v4701, 5
      %v4917 = vsel %vm4781, %v4912, %v4916
      %v4918 = vrot.slane %v4702, 5
      %v4919 = vsel %vm4781, %v4914, %v4918
      %v4920 = vrot.slane %v4703, 5
      %v4921 = vsel %vm4781, %v4916, %v4920
      %v4922 = vrot.slane %v4704, 5
      %v4923 = vsel %vm4781, %v4918, %v4922
      %v4924 = vrot.slane %v4705, 5
      %v4925 = vsel %vm4781, %v4920, %v4924
      %v4926 = vrot.slane %v4706, 5
      %v4927 = vsel %vm4781, %v4922, %v4926
      %v5000 = vadd.f32 %v4546, %v4784
      %v5001 = vadd.f32 %v4547, %v4787
      %v5002 = vadd.f32 %v4548, %v4789
      %v5003 = vadd.f32 %v4549, %v4791
      %v5004 = vadd.f32 %v4550, %v4793
      %v5005 = vadd.f32 %v4551, %v4795
      %v5006 = vadd.f32 %v4552, %v4797
      %v5007 = vadd.f32 %v4553, %v4799
      %v5008 = vadd.f32 %v4554, %v4801
      %v5009 = vadd.f32 %v4555, %v4803
      %v5010 = vadd.f32 %v4556, %v4805
      %v5011 = vadd.f32 %v4557, %v4807
      %v5012 = vadd.f32 %v4558, %v4809
      %v5013 = vadd.f32 %v4559, %v4811
      %v5014 = vadd.f32 %v4560, %v4813
      %v5015 = vadd.f32 %v4561, %v4815
      %v5016 = vadd.f32 %v4562, %v4817
      %v5017 = vadd.f32 %v4563, %v4819
      %v5018 = vadd.f32 %v4564, %v4821
      %v5019 = vadd.f32 %v4565, %v4823
      %v5020 = vadd.f32 %v4566, %v4825
      %v5021 = vadd.f32 %v4567, %v4827
      %v5022 = vadd.f32 %v4568, %v4829
      %v5023 = vadd.f32 %v4569, %v4831
      %v5024 = vadd.f32 %v4570, %v4833
      %v5025 = vadd.f32 %v4571, %v4835
      %v5026 = vadd.f32 %v4572, %v4837
      %v5027 = vadd.f32 %v4573, %v4839
      %v5028 = vadd.f32 %v4574, %v4841
      %v5029 = vadd.f32 %v4575, %v4843
      %v5030 = vadd.f32 %v4576, %v4845
      %v5031 = vadd.f32 %v4577, %v4847
      %v5032 = vadd.f32 %v4578, %v4849
      %v5033 = vadd.f32 %v4579, %v4851
      %v5034 = vadd.f32 %v4580, %v4853
      %v5035 = vadd.f32 %v4581, %v4855
      %v5036 = vadd.f32 %v4582, %v4857
      %v5037 = vadd.f32 %v4583, %v4859
      %v5038 = vadd.f32 %v4584, %v4861
      %v5039 = vadd.f32 %v4585, %v4863
      %v5040 = vadd.f32 %v4586, %v4865
      %v5041 = vadd.f32 %v4587, %v4867
      %v5042 = vadd.f32 %v4588, %v4869
      %v5043 = vadd.f32 %v4589, %v4871
      %v5044 = vadd.f32 %v4590, %v4873
      %v5045 = vadd.f32 %v4591, %v4875
      %v5046 = vadd.f32 %v4592, %v4877
      %v5047 = vadd.f32 %v4593, %v4879
      %v5048 = vadd.f32 %v4594, %v4881
      %v5049 = vadd.f32 %v4595, %v4883
      %v5050 = vadd.f32 %v4596, %v4885
      %v5051 = vadd.f32 %v4597, %v4887
      %v5052 = vadd.f32 %v4598, %v4889
      %v5053 = vadd.f32 %v4599, %v4891
      %v5054 = vadd.f32 %v4600, %v4893
      %v5055 = vadd.f32 %v4601, %v4895
      %v5056 = vadd.f32 %v4602, %v4897
      %v5057 = vadd.f32 %v4603, %v4899
      %v5058 = vadd.f32 %v4604, %v4901
      %v5059 = vadd.f32 %v4605, %v4903
      %v5060 = vadd.f32 %v4606, %v4905
      %v5061 = vadd.f32 %v4607, %v4907
      %v5062 = vadd.f32 %v4608, %v4909
      %v5063 = vadd.f32 %v4609, %v4911
      %v5064 = vadd.f32 %v4610, %v4913
      %v5065 = vadd.f32 %v4611, %v4915
      %v5066 = vadd.f32 %v4612, %v4917
      %v5067 = vadd.f32 %v4613, %v4919
      %v5068 = vadd.f32 %v4614, %v4921
      %v5069 = vadd.f32 %v4615, %v4923
      %v5070 = vadd.f32 %v4616, %v4925
      %v5071 = vadd.f32 %v4617, %v4927
      %v5072 = vld [vmem:[#allocation2 + $0x40] sm:$0xc0]
      %v5073 = vld [vmem:[#allocation2 + $0x48] sm:$0xc0]
      %v5074 = vld [vmem:[#allocation2 + $0x280] sm:$0xf]
      %v5075 = vld [vmem:[#allocation2 + $0x288] sm:$0xf]
      %v5077 = vlaneseq
      %v5078 = vshrl.u32 %v5077, 7
      %v5079 = vsub.s32 0, %v5078
      %v5080 = vrot.slane %v1686, %v5079
      %v5081 = vlaneseq
      %v5082 = vshrl.u32 %v5081, 7
      %v5083 = vsub.s32 1, %v5082
      %v5084 = vrot.slane %v1686, %v5083
      %v5087 = vmul.f32 %v5072, %v5080
      %v5088 = vmul.f32 %v5073, %v5084
      %v5089 = vmul.f32 %v1697, %v5080
      %v5090 = vmul.f32 %v1698, %v5084
      %v5091 = vmul.f32 %v1699, %v5080
      %v5092 = vmul.f32 %v1700, %v5084
      %v5093 = vmul.f32 %v1701, %v5080
      %v5094 = vmul.f32 %v1702, %v5084
      %v5095 = vmul.f32 %v1703, %v5080
      %v5096 = vmul.f32 %v1704, %v5084
      %v5097 = vmul.f32 %v1705, %v5080
      %v5098 = vmul.f32 %v1706, %v5084
      %v5099 = vmul.f32 %v1707, %v5080
      %v5100 = vmul.f32 %v1708, %v5084
      %v5101 = vmul.f32 %v1709, %v5080
      %v5102 = vmul.f32 %v1710, %v5084
      %v5103 = vmul.f32 %v1711, %v5080
      %v5104 = vmul.f32 %v1712, %v5084
      %v5105 = vmul.f32 %v1713, %v5080
      %v5106 = vmul.f32 %v1714, %v5084
      %v5107 = vmul.f32 %v1715, %v5080
      %v5108 = vmul.f32 %v1716, %v5084
      %v5109 = vmul.f32 %v1717, %v5080
      %v5110 = vmul.f32 %v1718, %v5084
      %v5111 = vmul.f32 %v1719, %v5080
      %v5112 = vmul.f32 %v1720, %v5084
      %v5113 = vmul.f32 %v1721, %v5080
      %v5114 = vmul.f32 %v1722, %v5084
      %v5115 = vmul.f32 %v1723, %v5080
      %v5116 = vmul.f32 %v1724, %v5084
      %v5117 = vmul.f32 %v1725, %v5080
      %v5118 = vmul.f32 %v1726, %v5084
      %v5119 = vmul.f32 %v1727, %v5080
      %v5120 = vmul.f32 %v1728, %v5084
      %v5121 = vmul.f32 %v1729, %v5080
      %v5122 = vmul.f32 %v1730, %v5084
      %v5123 = vmul.f32 %v1731, %v5080
      %v5124 = vmul.f32 %v1732, %v5084
      %v5125 = vmul.f32 %v1733, %v5080
      %v5126 = vmul.f32 %v1734, %v5084
      %v5127 = vmul.f32 %v1735, %v5080
      %v5128 = vmul.f32 %v1736, %v5084
      %v5129 = vmul.f32 %v1737, %v5080
      %v5130 = vmul.f32 %v1738, %v5084
      %v5131 = vmul.f32 %v1739, %v5080
      %v5132 = vmul.f32 %v1740, %v5084
      %v5133 = vmul.f32 %v1741, %v5080
      %v5134 = vmul.f32 %v1742, %v5084
      %v5135 = vmul.f32 %v1743, %v5080
      %v5136 = vmul.f32 %v1744, %v5084
      %v5137 = vmul.f32 %v1745, %v5080
      %v5138 = vmul.f32 %v1746, %v5084
      %v5139 = vmul.f32 %v1747, %v5080
      %v5140 = vmul.f32 %v1748, %v5084
      %v5141 = vmul.f32 %v1749, %v5080
      %v5142 = vmul.f32 %v1750, %v5084
      %v5143 = vmul.f32 %v1751, %v5080
      %v5144 = vmul.f32 %v1752, %v5084
      %v5145 = vmul.f32 %v1753, %v5080
      %v5146 = vmul.f32 %v1754, %v5084
      %v5147 = vmul.f32 %v1755, %v5080
      %v5148 = vmul.f32 %v1756, %v5084
      %v5149 = vmul.f32 %v2362, %v5080
      %v5150 = vmul.f32 %v2363, %v5084
      %v5151 = vmul.f32 %v2808, %v5080
      %v5152 = vmul.f32 %v2809, %v5084
      %v5153 = vmul.f32 %v2810, %v5080
      %v5154 = vmul.f32 %v2811, %v5084
      %v5155 = vmul.f32 %v4163, %v5080
      %v5156 = vmul.f32 %v4164, %v5084
      %v5157 = vmul.f32 %v4165, %v5080
      %v5158 = vmul.f32 %v4166, %v5084
      %v5159 = vmul.f32 %v5074, %v5080
      %v5160 = vmul.f32 %v5075, %v5084
      %vm5235 = vcmask 1041408
      %v5236 = vrot.slane %v5087, 6
      %v5237 = vrot.slane %v5089, 6
      %v5238 = vsel %vm5235, %v5236, %v5237
      %v5239 = vrot.slane %v5088, 6
      %v5240 = vrot.slane %v5090, 6
      %v5241 = vsel %vm5235, %v5239, %v5240
      %v5242 = vrot.slane %v5091, 6
      %v5243 = vsel %vm5235, %v5237, %v5242
      %v5244 = vrot.slane %v5092, 6
      %v5245 = vsel %vm5235, %v5240, %v5244
      %v5246 = vrot.slane %v5093, 6
      %v5247 = vsel %vm5235, %v5242, %v5246
      %v5248 = vrot.slane %v5094, 6
      %v5249 = vsel %vm5235, %v5244, %v5248
      %v5250 = vrot.slane %v5095, 6
      %v5251 = vsel %vm5235, %v5246, %v5250
      %v5252 = vrot.slane %v5096, 6
      %v5253 = vsel %vm5235, %v5248, %v5252
      %v5254 = vrot.slane %v5097, 6
      %v5255 = vsel %vm5235, %v5250, %v5254
      %v5256 = vrot.slane %v5098, 6
      %v5257 = vsel %vm5235, %v5252, %v5256
      %v5258 = vrot.slane %v5099, 6
      %v5259 = vsel %vm5235, %v5254, %v5258
      %v5260 = vrot.slane %v5100, 6
      %v5261 = vsel %vm5235, %v5256, %v5260
      %v5262 = vrot.slane %v5101, 6
      %v5263 = vsel %vm5235, %v5258, %v5262
      %v5264 = vrot.slane %v5102, 6
      %v5265 = vsel %vm5235, %v5260, %v5264
      %v5266 = vrot.slane %v5103, 6
      %v5267 = vsel %vm5235, %v5262, %v5266
      %v5268 = vrot.slane %v5104, 6
      %v5269 = vsel %vm5235, %v5264, %v5268
      %v5270 = vrot.slane %v5105, 6
      %v5271 = vsel %vm5235, %v5266, %v5270
      %v5272 = vrot.slane %v5106, 6
      %v5273 = vsel %vm5235, %v5268, %v5272
      %v5274 = vrot.slane %v5107, 6
      %v5275 = vsel %vm5235, %v5270, %v5274
      %v5276 = vrot.slane %v5108, 6
      %v5277 = vsel %vm5235, %v5272, %v5276
      %v5278 = vrot.slane %v5109, 6
      %v5279 = vsel %vm5235, %v5274, %v5278
      %v5280 = vrot.slane %v5110, 6
      %v5281 = vsel %vm5235, %v5276, %v5280
      %v5282 = vrot.slane %v5111, 6
      %v5283 = vsel %vm5235, %v5278, %v5282
      %v5284 = vrot.slane %v5112, 6
      %v5285 = vsel %vm5235, %v5280, %v5284
      %v5286 = vrot.slane %v5113, 6
      %v5287 = vsel %vm5235, %v5282, %v5286
      %v5288 = vrot.slane %v5114, 6
      %v5289 = vsel %vm5235, %v5284, %v5288
      %v5290 = vrot.slane %v5115, 6
      %v5291 = vsel %vm5235, %v5286, %v5290
      %v5292 = vrot.slane %v5116, 6
      %v5293 = vsel %vm5235, %v5288, %v5292
      %v5294 = vrot.slane %v5117, 6
      %v5295 = vsel %vm5235, %v5290, %v5294
      %v5296 = vrot.slane %v5118, 6
      %v5297 = vsel %vm5235, %v5292, %v5296
      %v5298 = vrot.slane %v5119, 6
      %v5299 = vsel %vm5235, %v5294, %v5298
      %v5300 = vrot.slane %v5120, 6
      %v5301 = vsel %vm5235, %v5296, %v5300
      %v5302 = vrot.slane %v5121, 6
      %v5303 = vsel %vm5235, %v5298, %v5302
      %v5304 = vrot.slane %v5122, 6
      %v5305 = vsel %vm5235, %v5300, %v5304
      %v5306 = vrot.slane %v5123, 6
      %v5307 = vsel %vm5235, %v5302, %v5306
      %v5308 = vrot.slane %v5124, 6
      %v5309 = vsel %vm5235, %v5304, %v5308
      %v5310 = vrot.slane %v5125, 6
      %v5311 = vsel %vm5235, %v5306, %v5310
      %v5312 = vrot.slane %v5126, 6
      %v5313 = vsel %vm5235, %v5308, %v5312
      %v5314 = vrot.slane %v5127, 6
      %v5315 = vsel %vm5235, %v5310, %v5314
      %v5316 = vrot.slane %v5128, 6
      %v5317 = vsel %vm5235, %v5312, %v5316
      %v5318 = vrot.slane %v5129, 6
      %v5319 = vsel %vm5235, %v5314, %v5318
      %v5320 = vrot.slane %v5130, 6
      %v5321 = vsel %vm5235, %v5316, %v5320
      %v5322 = vrot.slane %v5131, 6
      %v5323 = vsel %vm5235, %v5318, %v5322
      %v5324 = vrot.slane %v5132, 6
      %v5325 = vsel %vm5235, %v5320, %v5324
      %v5326 = vrot.slane %v5133, 6
      %v5327 = vsel %vm5235, %v5322, %v5326
      %v5328 = vrot.slane %v5134, 6
      %v5329 = vsel %vm5235, %v5324, %v5328
      %v5330 = vrot.slane %v5135, 6
      %v5331 = vsel %vm5235, %v5326, %v5330
      %v5332 = vrot.slane %v5136, 6
      %v5333 = vsel %vm5235, %v5328, %v5332
      %v5334 = vrot.slane %v5137, 6
      %v5335 = vsel %vm5235, %v5330, %v5334
      %v5336 = vrot.slane %v5138, 6
      %v5337 = vsel %vm5235, %v5332, %v5336
      %v5338 = vrot.slane %v5139, 6
      %v5339 = vsel %vm5235, %v5334, %v5338
      %v5340 = vrot.slane %v5140, 6
      %v5341 = vsel %vm5235, %v5336, %v5340
      %v5342 = vrot.slane %v5141, 6
      %v5343 = vsel %vm5235, %v5338, %v5342
      %v5344 = vrot.slane %v5142, 6
      %v5345 = vsel %vm5235, %v5340, %v5344
      %v5346 = vrot.slane %v5143, 6
      %v5347 = vsel %vm5235, %v5342, %v5346
      %v5348 = vrot.slane %v5144, 6
      %v5349 = vsel %vm5235, %v5344, %v5348
      %v5350 = vrot.slane %v5145, 6
      %v5351 = vsel %vm5235, %v5346, %v5350
      %v5352 = vrot.slane %v5146, 6
      %v5353 = vsel %vm5235, %v5348, %v5352
      %v5354 = vrot.slane %v5147, 6
      %v5355 = vsel %vm5235, %v5350, %v5354
      %v5356 = vrot.slane %v5148, 6
      %v5357 = vsel %vm5235, %v5352, %v5356
      %v5358 = vrot.slane %v5149, 6
      %v5359 = vsel %vm5235, %v5354, %v5358
      %v5360 = vrot.slane %v5150, 6
      %v5361 = vsel %vm5235, %v5356, %v5360
      %v5362 = vrot.slane %v5151, 6
      %v5363 = vsel %vm5235, %v5358, %v5362
      %v5364 = vrot.slane %v5152, 6
      %v5365 = vsel %vm5235, %v5360, %v5364
      %v5366 = vrot.slane %v5153, 6
      %v5367 = vsel %vm5235, %v5362, %v5366
      %v5368 = vrot.slane %v5154, 6
      %v5369 = vsel %vm5235, %v5364, %v5368
      %v5370 = vrot.slane %v5155, 6
      %v5371 = vsel %vm5235, %v5366, %v5370
      %v5372 = vrot.slane %v5156, 6
      %v5373 = vsel %vm5235, %v5368, %v5372
      %v5374 = vrot.slane %v5157, 6
      %v5375 = vsel %vm5235, %v5370, %v5374
      %v5376 = vrot.slane %v5158, 6
      %v5377 = vsel %vm5235, %v5372, %v5376
      %v5378 = vrot.slane %v5159, 6
      %v5379 = vsel %vm5235, %v5374, %v5378
      %v5380 = vrot.slane %v5160, 6
      %v5381 = vsel %vm5235, %v5376, %v5380
      %v5454 = vadd.f32 %v5000, %v5238
      %v5455 = vadd.f32 %v5001, %v5241
      %v5456 = vadd.f32 %v5002, %v5243
      %v5457 = vadd.f32 %v5003, %v5245
      %v5458 = vadd.f32 %v5004, %v5247
      %v5459 = vadd.f32 %v5005, %v5249
      %v5460 = vadd.f32 %v5006, %v5251
      %v5461 = vadd.f32 %v5007, %v5253
      %v5462 = vadd.f32 %v5008, %v5255
      %v5463 = vadd.f32 %v5009, %v5257
      %v5464 = vadd.f32 %v5010, %v5259
      %v5465 = vadd.f32 %v5011, %v5261
      %v5466 = vadd.f32 %v5012, %v5263
      %v5467 = vadd.f32 %v5013, %v5265
      %v5468 = vadd.f32 %v5014, %v5267
      %v5469 = vadd.f32 %v5015, %v5269
      %v5470 = vadd.f32 %v5016, %v5271
      %v5471 = vadd.f32 %v5017, %v5273
      %v5472 = vadd.f32 %v5018, %v5275
      %v5473 = vadd.f32 %v5019, %v5277
      %v5474 = vadd.f32 %v5020, %v5279
      %v5475 = vadd.f32 %v5021, %v5281
      %v5476 = vadd.f32 %v5022, %v5283
      %v5477 = vadd.f32 %v5023, %v5285
      %v5478 = vadd.f32 %v5024, %v5287
      %v5479 = vadd.f32 %v5025, %v5289
      %v5480 = vadd.f32 %v5026, %v5291
      %v5481 = vadd.f32 %v5027, %v5293
      %v5482 = vadd.f32 %v5028, %v5295
      %v5483 = vadd.f32 %v5029, %v5297
      %v5484 = vadd.f32 %v5030, %v5299
      %v5485 = vadd.f32 %v5031, %v5301
      %v5486 = vadd.f32 %v5032, %v5303
      %v5487 = vadd.f32 %v5033, %v5305
      %v5488 = vadd.f32 %v5034, %v5307
      %v5489 = vadd.f32 %v5035, %v5309
      %v5490 = vadd.f32 %v5036, %v5311
      %v5491 = vadd.f32 %v5037, %v5313
      %v5492 = vadd.f32 %v5038, %v5315
      %v5493 = vadd.f32 %v5039, %v5317
      %v5494 = vadd.f32 %v5040, %v5319
      %v5495 = vadd.f32 %v5041, %v5321
      %v5496 = vadd.f32 %v5042, %v5323
      %v5497 = vadd.f32 %v5043, %v5325
      %v5498 = vadd.f32 %v5044, %v5327
      %v5499 = vadd.f32 %v5045, %v5329
      %v5500 = vadd.f32 %v5046, %v5331
      %v5501 = vadd.f32 %v5047, %v5333
      %v5502 = vadd.f32 %v5048, %v5335
      %v5503 = vadd.f32 %v5049, %v5337
      %v5504 = vadd.f32 %v5050, %v5339
      %v5505 = vadd.f32 %v5051, %v5341
      %v5506 = vadd.f32 %v5052, %v5343
      %v5507 = vadd.f32 %v5053, %v5345
      %v5508 = vadd.f32 %v5054, %v5347
      %v5509 = vadd.f32 %v5055, %v5349
      %v5510 = vadd.f32 %v5056, %v5351
      %v5511 = vadd.f32 %v5057, %v5353
      %v5512 = vadd.f32 %v5058, %v5355
      %v5513 = vadd.f32 %v5059, %v5357
      %v5514 = vadd.f32 %v5060, %v5359
      %v5515 = vadd.f32 %v5061, %v5361
      %v5516 = vadd.f32 %v5062, %v5363
      %v5517 = vadd.f32 %v5063, %v5365
      %v5518 = vadd.f32 %v5064, %v5367
      %v5519 = vadd.f32 %v5065, %v5369
      %v5520 = vadd.f32 %v5066, %v5371
      %v5521 = vadd.f32 %v5067, %v5373
      %v5522 = vadd.f32 %v5068, %v5375
      %v5523 = vadd.f32 %v5069, %v5377
      %v5524 = vadd.f32 %v5070, %v5379
      %v5525 = vadd.f32 %v5071, %v5381
      %v5526 = vld [vmem:[%s7] sm:$0x3]
      %v5528 = vlaneseq
      %v5529 = vshrl.u32 %v5528, 7
      %v5530 = vsub.s32 0, %v5529
      %v5531 = vrot.slane %v5526, %v5530
      %v5532 = vlaneseq
      %v5533 = vshrl.u32 %v5532, 7
      %v5534 = vsub.s32 1, %v5533
      %v5535 = vrot.slane %v5526, %v5534
      %v5538 = vmul.f32 %v5454, %v5531
      %v5539 = vmul.f32 %v5455, %v5535
      %v5540 = vmul.f32 %v5456, %v5531
      %v5541 = vmul.f32 %v5457, %v5535
      %v5542 = vmul.f32 %v5458, %v5531
      %v5543 = vmul.f32 %v5459, %v5535
      %v5544 = vmul.f32 %v5460, %v5531
      %v5545 = vmul.f32 %v5461, %v5535
      %v5546 = vmul.f32 %v5462, %v5531
      %v5547 = vmul.f32 %v5463, %v5535
      %v5548 = vmul.f32 %v5464, %v5531
      %v5549 = vmul.f32 %v5465, %v5535
      %v5550 = vmul.f32 %v5466, %v5531
      %v5551 = vmul.f32 %v5467, %v5535
      %v5552 = vmul.f32 %v5468, %v5531
      %v5553 = vmul.f32 %v5469, %v5535
      %v5554 = vmul.f32 %v5470, %v5531
      %v5555 = vmul.f32 %v5471, %v5535
      %v5556 = vmul.f32 %v5472, %v5531
      %v5557 = vmul.f32 %v5473, %v5535
      %v5558 = vmul.f32 %v5474, %v5531
      %v5559 = vmul.f32 %v5475, %v5535
      %v5560 = vmul.f32 %v5476, %v5531
      %v5561 = vmul.f32 %v5477, %v5535
      %v5562 = vmul.f32 %v5478, %v5531
      %v5563 = vmul.f32 %v5479, %v5535
      %v5564 = vmul.f32 %v5480, %v5531
      %v5565 = vmul.f32 %v5481, %v5535
      %v5566 = vmul.f32 %v5482, %v5531
      %v5567 = vmul.f32 %v5483, %v5535
      %v5568 = vmul.f32 %v5484, %v5531
      %v5569 = vmul.f32 %v5485, %v5535
      %v5570 = vmul.f32 %v5486, %v5531
      %v5571 = vmul.f32 %v5487, %v5535
      %v5572 = vmul.f32 %v5488, %v5531
      %v5573 = vmul.f32 %v5489, %v5535
      %v5574 = vmul.f32 %v5490, %v5531
      %v5575 = vmul.f32 %v5491, %v5535
      %v5576 = vmul.f32 %v5492, %v5531
      %v5577 = vmul.f32 %v5493, %v5535
      %v5578 = vmul.f32 %v5494, %v5531
      %v5579 = vmul.f32 %v5495, %v5535
      %v5580 = vmul.f32 %v5496, %v5531
      %v5581 = vmul.f32 %v5497, %v5535
      %v5582 = vmul.f32 %v5498, %v5531
      %v5583 = vmul.f32 %v5499, %v5535
      %v5584 = vmul.f32 %v5500, %v5531
      %v5585 = vmul.f32 %v5501, %v5535
      %v5586 = vmul.f32 %v5502, %v5531
      %v5587 = vmul.f32 %v5503, %v5535
      %v5588 = vmul.f32 %v5504, %v5531
      %v5589 = vmul.f32 %v5505, %v5535
      %v5590 = vmul.f32 %v5506, %v5531
      %v5591 = vmul.f32 %v5507, %v5535
      %v5592 = vmul.f32 %v5508, %v5531
      %v5593 = vmul.f32 %v5509, %v5535
      %v5594 = vmul.f32 %v5510, %v5531
      %v5595 = vmul.f32 %v5511, %v5535
      %v5596 = vmul.f32 %v5512, %v5531
      %v5597 = vmul.f32 %v5513, %v5535
      %v5598 = vmul.f32 %v5514, %v5531
      %v5599 = vmul.f32 %v5515, %v5535
      %v5600 = vmul.f32 %v5516, %v5531
      %v5601 = vmul.f32 %v5517, %v5535
      %v5602 = vmul.f32 %v5518, %v5531
      %v5603 = vmul.f32 %v5519, %v5535
      %v5604 = vmul.f32 %v5520, %v5531
      %v5605 = vmul.f32 %v5521, %v5535
      %v5606 = vmul.f32 %v5522, %v5531
      %v5607 = vmul.f32 %v5523, %v5535
      %v5608 = vmul.f32 %v5524, %v5531
      %v5609 = vmul.f32 %v5525, %v5535
      %v5610 = vld [vmem:[%s8] sm:$0x3]
      %v5612 = vlaneseq
      %v5613 = vshrl.u32 %v5612, 7
      %v5614 = vsub.s32 0, %v5613
      %v5615 = vrot.slane %v5610, %v5614
      %v5616 = vlaneseq
      %v5617 = vshrl.u32 %v5616, 7
      %v5618 = vsub.s32 1, %v5617
      %v5619 = vrot.slane %v5610, %v5618
      %v5622 = vadd.f32 %v5538, %v5615
      %v5623 = vadd.f32 %v5539, %v5619
      %v5624 = vadd.f32 %v5540, %v5615
      %v5625 = vadd.f32 %v5541, %v5619
      %v5626 = vadd.f32 %v5542, %v5615
      %v5627 = vadd.f32 %v5543, %v5619
      %v5628 = vadd.f32 %v5544, %v5615
      %v5629 = vadd.f32 %v5545, %v5619
      %v5630 = vadd.f32 %v5546, %v5615
      %v5631 = vadd.f32 %v5547, %v5619
      %v5632 = vadd.f32 %v5548, %v5615
      %v5633 = vadd.f32 %v5549, %v5619
      %v5634 = vadd.f32 %v5550, %v5615
      %v5635 = vadd.f32 %v5551, %v5619
      %v5636 = vadd.f32 %v5552, %v5615
      %v5637 = vadd.f32 %v5553, %v5619
      %v5638 = vadd.f32 %v5554, %v5615
      %v5639 = vadd.f32 %v5555, %v5619
      %v5640 = vadd.f32 %v5556, %v5615
      %v5641 = vadd.f32 %v5557, %v5619
      %v5642 = vadd.f32 %v5558, %v5615
      %v5643 = vadd.f32 %v5559, %v5619
      %v5644 = vadd.f32 %v5560, %v5615
      %v5645 = vadd.f32 %v5561, %v5619
      %v5646 = vadd.f32 %v5562, %v5615
      %v5647 = vadd.f32 %v5563, %v5619
      %v5648 = vadd.f32 %v5564, %v5615
      %v5649 = vadd.f32 %v5565, %v5619
      %v5650 = vadd.f32 %v5566, %v5615
      %v5651 = vadd.f32 %v5567, %v5619
      %v5652 = vadd.f32 %v5568, %v5615
      %v5653 = vadd.f32 %v5569, %v5619
      %v5654 = vadd.f32 %v5570, %v5615
      %v5655 = vadd.f32 %v5571, %v5619
      %v5656 = vadd.f32 %v5572, %v5615
      %v5657 = vadd.f32 %v5573, %v5619
      %v5658 = vadd.f32 %v5574, %v5615
      %v5659 = vadd.f32 %v5575, %v5619
      %v5660 = vadd.f32 %v5576, %v5615
      %v5661 = vadd.f32 %v5577, %v5619
      %v5662 = vadd.f32 %v5578, %v5615
      %v5663 = vadd.f32 %v5579, %v5619
      %v5664 = vadd.f32 %v5580, %v5615
      %v5665 = vadd.f32 %v5581, %v5619
      %v5666 = vadd.f32 %v5582, %v5615
      %v5667 = vadd.f32 %v5583, %v5619
      %v5668 = vadd.f32 %v5584, %v5615
      %v5669 = vadd.f32 %v5585, %v5619
      %v5670 = vadd.f32 %v5586, %v5615
      %v5671 = vadd.f32 %v5587, %v5619
      %v5672 = vadd.f32 %v5588, %v5615
      %v5673 = vadd.f32 %v5589, %v5619
      %v5674 = vadd.f32 %v5590, %v5615
      %v5675 = vadd.f32 %v5591, %v5619
      %v5676 = vadd.f32 %v5592, %v5615
      %v5677 = vadd.f32 %v5593, %v5619
      %v5678 = vadd.f32 %v5594, %v5615
      %v5679 = vadd.f32 %v5595, %v5619
      %v5680 = vadd.f32 %v5596, %v5615
      %v5681 = vadd.f32 %v5597, %v5619
      %v5682 = vadd.f32 %v5598, %v5615
      %v5683 = vadd.f32 %v5599, %v5619
      %v5684 = vadd.f32 %v5600, %v5615
      %v5685 = vadd.f32 %v5601, %v5619
      %v5686 = vadd.f32 %v5602, %v5615
      %v5687 = vadd.f32 %v5603, %v5619
      %v5688 = vadd.f32 %v5604, %v5615
      %v5689 = vadd.f32 %v5605, %v5619
      %v5690 = vadd.f32 %v5606, %v5615
      %v5691 = vadd.f32 %v5607, %v5619
      %v5692 = vadd.f32 %v5608, %v5615
      %v5693 = vadd.f32 %v5609, %v5619
      %v5694 = vmax.f32 %v5622, 0.0
      %v5695 = vmax.f32 %v5623, 0.0
      %v5696 = vmax.f32 %v5624, 0.0
      %v5697 = vmax.f32 %v5625, 0.0
      %v5698 = vmax.f32 %v5626, 0.0
      %v5699 = vmax.f32 %v5627, 0.0
      %v5700 = vmax.f32 %v5628, 0.0
      %v5701 = vmax.f32 %v5629, 0.0
      %v5702 = vmax.f32 %v5630, 0.0
      %v5703 = vmax.f32 %v5631, 0.0
      %v5704 = vmax.f32 %v5632, 0.0
      %v5705 = vmax.f32 %v5633, 0.0
      %v5706 = vmax.f32 %v5634, 0.0
      %v5707 = vmax.f32 %v5635, 0.0
      %v5708 = vmax.f32 %v5636, 0.0
      %v5709 = vmax.f32 %v5637, 0.0
      %v5710 = vmax.f32 %v5638, 0.0
      %v5711 = vmax.f32 %v5639, 0.0
      %v5712 = vmax.f32 %v5640, 0.0
      %v5713 = vmax.f32 %v5641, 0.0
      %v5714 = vmax.f32 %v5642, 0.0
      %v5715 = vmax.f32 %v5643, 0.0
      %v5716 = vmax.f32 %v5644, 0.0
      %v5717 = vmax.f32 %v5645, 0.0
      %v5718 = vmax.f32 %v5646, 0.0
      %v5719 = vmax.f32 %v5647, 0.0
      %v5720 = vmax.f32 %v5648, 0.0
      %v5721 = vmax.f32 %v5649, 0.0
      %v5722 = vmax.f32 %v5650, 0.0
      %v5723 = vmax.f32 %v5651, 0.0
      %v5724 = vmax.f32 %v5652, 0.0
      %v5725 = vmax.f32 %v5653, 0.0
      %v5726 = vmax.f32 %v5654, 0.0
      %v5727 = vmax.f32 %v5655, 0.0
      %v5728 = vmax.f32 %v5656, 0.0
      %v5729 = vmax.f32 %v5657, 0.0
      %v5730 = vmax.f32 %v5658, 0.0
      %v5731 = vmax.f32 %v5659, 0.0
      %v5732 = vmax.f32 %v5660, 0.0
      %v5733 = vmax.f32 %v5661, 0.0
      %v5734 = vmax.f32 %v5662, 0.0
      %v5735 = vmax.f32 %v5663, 0.0
      %v5736 = vmax.f32 %v5664, 0.0
      %v5737 = vmax.f32 %v5665, 0.0
      %v5738 = vmax.f32 %v5666, 0.0
      %v5739 = vmax.f32 %v5667, 0.0
      %v5740 = vmax.f32 %v5668, 0.0
      %v5741 = vmax.f32 %v5669, 0.0
      %v5742 = vmax.f32 %v5670, 0.0
      %v5743 = vmax.f32 %v5671, 0.0
      %v5744 = vmax.f32 %v5672, 0.0
      %v5745 = vmax.f32 %v5673, 0.0
      %v5746 = vmax.f32 %v5674, 0.0
      %v5747 = vmax.f32 %v5675, 0.0
      %v5748 = vmax.f32 %v5676, 0.0
      %v5749 = vmax.f32 %v5677, 0.0
      %v5750 = vmax.f32 %v5678, 0.0
      %v5751 = vmax.f32 %v5679, 0.0
      %v5752 = vmax.f32 %v5680, 0.0
      %v5753 = vmax.f32 %v5681, 0.0
      %v5754 = vmax.f32 %v5682, 0.0
      %v5755 = vmax.f32 %v5683, 0.0
      %v5756 = vmax.f32 %v5684, 0.0
      %v5757 = vmax.f32 %v5685, 0.0
      %v5758 = vmax.f32 %v5686, 0.0
      %v5759 = vmax.f32 %v5687, 0.0
      %v5760 = vmax.f32 %v5688, 0.0
      %v5761 = vmax.f32 %v5689, 0.0
      %v5762 = vmax.f32 %v5690, 0.0
      %v5763 = vmax.f32 %v5691, 0.0
      %v5764 = vmax.f32 %v5692, 0.0
      %v5765 = vmax.f32 %v5693, 0.0
      %v5766 = vmin.f32 %v5694, 6.0
      %v5767 = vmin.f32 %v5695, 6.0
      %v5768 = vmin.f32 %v5696, 6.0
      %v5769 = vmin.f32 %v5697, 6.0
      %v5770 = vmin.f32 %v5698, 6.0
      %v5771 = vmin.f32 %v5699, 6.0
      %v5772 = vmin.f32 %v5700, 6.0
      %v5773 = vmin.f32 %v5701, 6.0
      %v5774 = vmin.f32 %v5702, 6.0
      %v5775 = vmin.f32 %v5703, 6.0
      %v5776 = vmin.f32 %v5704, 6.0
      %v5777 = vmin.f32 %v5705, 6.0
      %v5778 = vmin.f32 %v5706, 6.0
      %v5779 = vmin.f32 %v5707, 6.0
      %v5780 = vmin.f32 %v5708, 6.0
      %v5781 = vmin.f32 %v5709, 6.0
      %v5782 = vmin.f32 %v5710, 6.0
      %v5783 = vmin.f32 %v5711, 6.0
      %v5784 = vmin.f32 %v5712, 6.0
      %v5785 = vmin.f32 %v5713, 6.0
      %v5786 = vmin.f32 %v5714, 6.0
      %v5787 = vmin.f32 %v5715, 6.0
      %v5788 = vmin.f32 %v5716, 6.0
      %v5789 = vmin.f32 %v5717, 6.0
      %v5790 = vmin.f32 %v5718, 6.0
      %v5791 = vmin.f32 %v5719, 6.0
      %v5792 = vmin.f32 %v5720, 6.0
      %v5793 = vmin.f32 %v5721, 6.0
      %v5794 = vmin.f32 %v5722, 6.0
      %v5795 = vmin.f32 %v5723, 6.0
      %v5796 = vmin.f32 %v5724, 6.0
      %v5797 = vmin.f32 %v5725, 6.0
      %v5798 = vmin.f32 %v5726, 6.0
      %v5799 = vmin.f32 %v5727, 6.0
      %v5800 = vmin.f32 %v5728, 6.0
      %v5801 = vmin.f32 %v5729, 6.0
      %v5802 = vmin.f32 %v5730, 6.0
      %v5803 = vmin.f32 %v5731, 6.0
      %v5804 = vmin.f32 %v5732, 6.0
      %v5805 = vmin.f32 %v5733, 6.0
      %v5806 = vmin.f32 %v5734, 6.0
      %v5807 = vmin.f32 %v5735, 6.0
      %v5808 = vmin.f32 %v5736, 6.0
      %v5809 = vmin.f32 %v5737, 6.0
      %v5810 = vmin.f32 %v5738, 6.0
      %v5811 = vmin.f32 %v5739, 6.0
      %v5812 = vmin.f32 %v5740, 6.0
      %v5813 = vmin.f32 %v5741, 6.0
      %v5814 = vmin.f32 %v5742, 6.0
      %v5815 = vmin.f32 %v5743, 6.0
      %v5816 = vmin.f32 %v5744, 6.0
      %v5817 = vmin.f32 %v5745, 6.0
      %v5818 = vmin.f32 %v5746, 6.0
      %v5819 = vmin.f32 %v5747, 6.0
      %v5820 = vmin.f32 %v5748, 6.0
      %v5821 = vmin.f32 %v5749, 6.0
      %v5822 = vmin.f32 %v5750, 6.0
      %v5823 = vmin.f32 %v5751, 6.0
      %v5824 = vmin.f32 %v5752, 6.0
      %v5825 = vmin.f32 %v5753, 6.0
      %v5826 = vmin.f32 %v5754, 6.0
      %v5827 = vmin.f32 %v5755, 6.0
      %v5828 = vmin.f32 %v5756, 6.0
      %v5829 = vmin.f32 %v5757, 6.0
      %v5830 = vmin.f32 %v5758, 6.0
      %v5831 = vmin.f32 %v5759, 6.0
      %v5832 = vmin.f32 %v5760, 6.0
      %v5833 = vmin.f32 %v5761, 6.0
      %v5834 = vmin.f32 %v5762, 6.0
      %v5835 = vmin.f32 %v5763, 6.0
      %v5836 = vmin.f32 %v5764, 6.0
      %v5837 = vmin.f32 %v5765, 6.0
      %v5838 = vld [vmem:[%s2] sm:$0xff]
      %v5839 = vld [vmem:[%s2 + $0x8] sm:$0xff]
      %v5840 = vld [vmem:[%s2 + $0x10] sm:$0xff]
      %v5841 = vld [vmem:[%s2 + $0x18] sm:$0xff]
      %v5842 = vld [vmem:[%s2 + $0x20] sm:$0xff]
      %v5843 = vld [vmem:[%s2 + $0x28] sm:$0xff]
      %v5844 = vld [vmem:[%s2 + $0x30] sm:$0xff]
      %v5845 = vld [vmem:[%s2 + $0x38] sm:$0xff]
      %v5846 = vld [vmem:[%s2 + $0x40] sm:$0xff]
      %v5847 = vld [vmem:[%s2 + $0x48] sm:$0xff]
      %v5848 = vld [vmem:[%s2 + $0x50] sm:$0xff]
      %v5849 = vld [vmem:[%s2 + $0x58] sm:$0xff]
      %v5850 = vld [vmem:[%s2 + $0x60] sm:$0xff]
      %v5851 = vld [vmem:[%s2 + $0x68] sm:$0xff]
      %v5852 = vld [vmem:[%s2 + $0x70] sm:$0xff]
      %v5853 = vld [vmem:[%s2 + $0x78] sm:$0xff]
      %v5854 = vld [vmem:[%s2 + $0x80] sm:$0xff]
      %v5855 = vld [vmem:[%s2 + $0x88] sm:$0xff]
      %v5856 = vld [vmem:[%s2 + $0x90] sm:$0xff]
      %v5857 = vld [vmem:[%s2 + $0x98] sm:$0xff]
      %v5858 = vld [vmem:[%s2 + $0xa0] sm:$0xff]
      %v5859 = vld [vmem:[%s2 + $0xa8] sm:$0xff]
      %v5860 = vld [vmem:[%s2 + $0xb0] sm:$0xff]
      %v5861 = vld [vmem:[%s2 + $0xb8] sm:$0xff]
      %v5862 = vld [vmem:[%s2 + $0xc0] sm:$0xff]
      %v5863 = vld [vmem:[%s2 + $0xc8] sm:$0xff]
      %v5864 = vld [vmem:[%s2 + $0xd0] sm:$0xff]
      %v5865 = vld [vmem:[%s2 + $0xd8] sm:$0xff]
      %v5866 = vld [vmem:[%s2 + $0xe0] sm:$0xff]
      %v5867 = vld [vmem:[%s2 + $0xe8] sm:$0xff]
      %v5868 = vld [vmem:[%s2 + $0xf0] sm:$0xff]
      %v5869 = vld [vmem:[%s2 + $0xf8] sm:$0xff]
      %v5870 = vld [vmem:[%s2 + $0x100] sm:$0xff]
      %v5871 = vld [vmem:[%s2 + $0x108] sm:$0xff]
      %v5872 = vld [vmem:[%s2 + $0x110] sm:$0xff]
      %v5873 = vld [vmem:[%s2 + $0x118] sm:$0x3f]
      %5875 = vset.pattern.permute.xlu0 0
      %5876 = vperm.xlu0 %5875, %v5838
      %v5877 = vpop.permute.xlu0 %5876
      %5880 = vset.pattern.permute.xlu0 0
      %5881 = vperm.xlu0 %5880, %v5839
      %v5882 = vpop.permute.xlu0 %5881
      %5885 = vset.pattern.permute.xlu0 0
      %5886 = vperm.xlu0 %5885, %v5840
      %v5887 = vpop.permute.xlu0 %5886
      %5890 = vset.pattern.permute.xlu0 0
      %5891 = vperm.xlu0 %5890, %v5841
      %v5892 = vpop.permute.xlu0 %5891
      %5895 = vset.pattern.permute.xlu0 0
      %5896 = vperm.xlu0 %5895, %v5842
      %v5897 = vpop.permute.xlu0 %5896
      %5900 = vset.pattern.permute.xlu0 0
      %5901 = vperm.xlu0 %5900, %v5843
      %v5902 = vpop.permute.xlu0 %5901
      %5905 = vset.pattern.permute.xlu0 0
      %5906 = vperm.xlu0 %5905, %v5844
      %v5907 = vpop.permute.xlu0 %5906
      %5910 = vset.pattern.permute.xlu0 0
      %5911 = vperm.xlu0 %5910, %v5845
      %v5912 = vpop.permute.xlu0 %5911
      %5915 = vset.pattern.permute.xlu0 0
      %5916 = vperm.xlu0 %5915, %v5846
      %v5917 = vpop.permute.xlu0 %5916
      %5920 = vset.pattern.permute.xlu0 0
      %5921 = vperm.xlu0 %5920, %v5847
      %v5922 = vpop.permute.xlu0 %5921
      %5925 = vset.pattern.permute.xlu0 0
      %5926 = vperm.xlu0 %5925, %v5848
      %v5927 = vpop.permute.xlu0 %5926
      %5930 = vset.pattern.permute.xlu0 0
      %5931 = vperm.xlu0 %5930, %v5849
      %v5932 = vpop.permute.xlu0 %5931
      %5935 = vset.pattern.permute.xlu0 0
      %5936 = vperm.xlu0 %5935, %v5850
      %v5937 = vpop.permute.xlu0 %5936
      %5940 = vset.pattern.permute.xlu0 0
      %5941 = vperm.xlu0 %5940, %v5851
      %v5942 = vpop.permute.xlu0 %5941
      %5945 = vset.pattern.permute.xlu0 0
      %5946 = vperm.xlu0 %5945, %v5852
      %v5947 = vpop.permute.xlu0 %5946
      %5950 = vset.pattern.permute.xlu0 0
      %5951 = vperm.xlu0 %5950, %v5853
      %v5952 = vpop.permute.xlu0 %5951
      %5955 = vset.pattern.permute.xlu0 0
      %5956 = vperm.xlu0 %5955, %v5854
      %v5957 = vpop.permute.xlu0 %5956
      %5960 = vset.pattern.permute.xlu0 0
      %5961 = vperm.xlu0 %5960, %v5855
      %v5962 = vpop.permute.xlu0 %5961
      %5965 = vset.pattern.permute.xlu0 0
      %5966 = vperm.xlu0 %5965, %v5856
      %v5967 = vpop.permute.xlu0 %5966
      %5970 = vset.pattern.permute.xlu0 0
      %5971 = vperm.xlu0 %5970, %v5857
      %v5972 = vpop.permute.xlu0 %5971
      %5975 = vset.pattern.permute.xlu0 0
      %5976 = vperm.xlu0 %5975, %v5858
      %v5977 = vpop.permute.xlu0 %5976
      %5980 = vset.pattern.permute.xlu0 0
      %5981 = vperm.xlu0 %5980, %v5859
      %v5982 = vpop.permute.xlu0 %5981
      %5985 = vset.pattern.permute.xlu0 0
      %5986 = vperm.xlu0 %5985, %v5860
      %v5987 = vpop.permute.xlu0 %5986
      %5990 = vset.pattern.permute.xlu0 0
      %5991 = vperm.xlu0 %5990, %v5861
      %v5992 = vpop.permute.xlu0 %5991
      %5995 = vset.pattern.permute.xlu0 0
      %5996 = vperm.xlu0 %5995, %v5862
      %v5997 = vpop.permute.xlu0 %5996
      %6000 = vset.pattern.permute.xlu0 0
      %6001 = vperm.xlu0 %6000, %v5863
      %v6002 = vpop.permute.xlu0 %6001
      %6005 = vset.pattern.permute.xlu0 0
      %6006 = vperm.xlu0 %6005, %v5864
      %v6007 = vpop.permute.xlu0 %6006
      %6010 = vset.pattern.permute.xlu0 0
      %6011 = vperm.xlu0 %6010, %v5865
      %v6012 = vpop.permute.xlu0 %6011
      %6015 = vset.pattern.permute.xlu0 0
      %6016 = vperm.xlu0 %6015, %v5866
      %v6017 = vpop.permute.xlu0 %6016
      %6020 = vset.pattern.permute.xlu0 0
      %6021 = vperm.xlu0 %6020, %v5867
      %v6022 = vpop.permute.xlu0 %6021
      %6025 = vset.pattern.permute.xlu0 0
      %6026 = vperm.xlu0 %6025, %v5868
      %v6027 = vpop.permute.xlu0 %6026
      %6030 = vset.pattern.permute.xlu0 0
      %6031 = vperm.xlu0 %6030, %v5869
      %v6032 = vpop.permute.xlu0 %6031
      %6035 = vset.pattern.permute.xlu0 0
      %6036 = vperm.xlu0 %6035, %v5870
      %v6037 = vpop.permute.xlu0 %6036
      %6040 = vset.pattern.permute.xlu0 0
      %6041 = vperm.xlu0 %6040, %v5871
      %v6042 = vpop.permute.xlu0 %6041
      %6045 = vset.pattern.permute.xlu0 0
      %6046 = vperm.xlu0 %6045, %v5872
      %v6047 = vpop.permute.xlu0 %6046
      %6050 = vset.pattern.permute.xlu0 0
      %6051 = vperm.xlu0 %6050, %v5873
      %v6052 = vpop.permute.xlu0 %6051
      %v6054 = vmul.f32 %v5766, %v5877
      %v6055 = vmul.f32 %v5767, %v5877
      %v6056 = vmul.f32 %v5768, %v5882
      %v6057 = vmul.f32 %v5769, %v5882
      %v6058 = vmul.f32 %v5770, %v5887
      %v6059 = vmul.f32 %v5771, %v5887
      %v6060 = vmul.f32 %v5772, %v5892
      %v6061 = vmul.f32 %v5773, %v5892
      %v6062 = vmul.f32 %v5774, %v5897
      %v6063 = vmul.f32 %v5775, %v5897
      %v6064 = vmul.f32 %v5776, %v5902
      %v6065 = vmul.f32 %v5777, %v5902
      %v6066 = vmul.f32 %v5778, %v5907
      %v6067 = vmul.f32 %v5779, %v5907
      %v6068 = vmul.f32 %v5780, %v5912
      %v6069 = vmul.f32 %v5781, %v5912
      %v6070 = vmul.f32 %v5782, %v5917
      %v6071 = vmul.f32 %v5783, %v5917
      %v6072 = vmul.f32 %v5784, %v5922
      %v6073 = vmul.f32 %v5785, %v5922
      %v6074 = vmul.f32 %v5786, %v5927
      %v6075 = vmul.f32 %v5787, %v5927
      %v6076 = vmul.f32 %v5788, %v5932
      %v6077 = vmul.f32 %v5789, %v5932
      %v6078 = vmul.f32 %v5790, %v5937
      %v6079 = vmul.f32 %v5791, %v5937
      %v6080 = vmul.f32 %v5792, %v5942
      %v6081 = vmul.f32 %v5793, %v5942
      %v6082 = vmul.f32 %v5794, %v5947
      %v6083 = vmul.f32 %v5795, %v5947
      %v6084 = vmul.f32 %v5796, %v5952
      %v6085 = vmul.f32 %v5797, %v5952
      %v6086 = vmul.f32 %v5798, %v5957
      %v6087 = vmul.f32 %v5799, %v5957
      %v6088 = vmul.f32 %v5800, %v5962
      %v6089 = vmul.f32 %v5801, %v5962
      %v6090 = vmul.f32 %v5802, %v5967
      %v6091 = vmul.f32 %v5803, %v5967
      %v6092 = vmul.f32 %v5804, %v5972
      %v6093 = vmul.f32 %v5805, %v5972
      %v6094 = vmul.f32 %v5806, %v5977
      %v6095 = vmul.f32 %v5807, %v5977
      %v6096 = vmul.f32 %v5808, %v5982
      %v6097 = vmul.f32 %v5809, %v5982
      %v6098 = vmul.f32 %v5810, %v5987
      %v6099 = vmul.f32 %v5811, %v5987
      %v6100 = vmul.f32 %v5812, %v5992
      %v6101 = vmul.f32 %v5813, %v5992
      %v6102 = vmul.f32 %v5814, %v5997
      %v6103 = vmul.f32 %v5815, %v5997
      %v6104 = vmul.f32 %v5816, %v6002
      %v6105 = vmul.f32 %v5817, %v6002
      %v6106 = vmul.f32 %v5818, %v6007
      %v6107 = vmul.f32 %v5819, %v6007
      %v6108 = vmul.f32 %v5820, %v6012
      %v6109 = vmul.f32 %v5821, %v6012
      %v6110 = vmul.f32 %v5822, %v6017
      %v6111 = vmul.f32 %v5823, %v6017
      %v6112 = vmul.f32 %v5824, %v6022
      %v6113 = vmul.f32 %v5825, %v6022
      %v6114 = vmul.f32 %v5826, %v6027
      %v6115 = vmul.f32 %v5827, %v6027
      %v6116 = vmul.f32 %v5828, %v6032
      %v6117 = vmul.f32 %v5829, %v6032
      %v6118 = vmul.f32 %v5830, %v6037
      %v6119 = vmul.f32 %v5831, %v6037
      %v6120 = vmul.f32 %v5832, %v6042
      %v6121 = vmul.f32 %v5833, %v6042
      %v6122 = vmul.f32 %v5834, %v6047
      %v6123 = vmul.f32 %v5835, %v6047
      %v6124 = vmul.f32 %v5836, %v6052
      %v6125 = vmul.f32 %v5837, %v6052
      %v6126 = vadd.f32 %v6054, %v6056
      %v6127 = vadd.f32 %v6126, %v6058
      %v6128 = vadd.f32 %v6127, %v6060
      %v6129 = vadd.f32 %v6128, %v6062
      %v6130 = vadd.f32 %v6129, %v6064
      %v6131 = vadd.f32 %v6130, %v6066
      %v6132 = vadd.f32 %v6131, %v6068
      %v6133 = vadd.f32 %v6132, %v6070
      %v6134 = vadd.f32 %v6133, %v6072
      %v6135 = vadd.f32 %v6134, %v6074
      %v6136 = vadd.f32 %v6135, %v6076
      %v6137 = vadd.f32 %v6136, %v6078
      %v6138 = vadd.f32 %v6137, %v6080
      %v6139 = vadd.f32 %v6138, %v6082
      %v6140 = vadd.f32 %v6139, %v6084
      %v6141 = vadd.f32 %v6140, %v6086
      %v6142 = vadd.f32 %v6141, %v6088
      %v6143 = vadd.f32 %v6142, %v6090
      %v6144 = vadd.f32 %v6143, %v6092
      %v6145 = vadd.f32 %v6144, %v6094
      %v6146 = vadd.f32 %v6145, %v6096
      %v6147 = vadd.f32 %v6146, %v6098
      %v6148 = vadd.f32 %v6147, %v6100
      %v6149 = vadd.f32 %v6148, %v6102
      %v6150 = vadd.f32 %v6149, %v6104
      %v6151 = vadd.f32 %v6150, %v6106
      %v6152 = vadd.f32 %v6151, %v6108
      %v6153 = vadd.f32 %v6152, %v6110
      %v6154 = vadd.f32 %v6153, %v6112
      %v6155 = vadd.f32 %v6154, %v6114
      %v6156 = vadd.f32 %v6155, %v6116
      %v6157 = vadd.f32 %v6156, %v6118
      %v6158 = vadd.f32 %v6157, %v6120
      %v6159 = vadd.f32 %v6158, %v6122
      %v6160 = vsel %vm2519, %v6124, 0.0
      %v6161 = vadd.f32 %v6159, %v6160
      %v6162 = vrot.slane %v6161, 4
      %v6163 = vadd.f32 %v6161, %v6162
      %v6164 = vrot.slane %v6163, 2
      %v6165 = vadd.f32 %v6163, %v6164
      %v6166 = vrot.slane %v6165, 1
      %v6167 = vadd.f32 %v6165, %v6166
      %v6168 = vsel %vm1595, %v6055, 0.0
      %v6169 = vsel %vm1595, %v6057, 0.0
      %v6170 = vadd.f32 %v6168, %v6169
      %v6171 = vsel %vm1595, %v6059, 0.0
      %v6172 = vadd.f32 %v6170, %v6171
      %v6173 = vsel %vm1595, %v6061, 0.0
      %v6174 = vadd.f32 %v6172, %v6173
      %v6175 = vsel %vm1595, %v6063, 0.0
      %v6176 = vadd.f32 %v6174, %v6175
      %v6177 = vsel %vm1595, %v6065, 0.0
      %v6178 = vadd.f32 %v6176, %v6177
      %v6179 = vsel %vm1595, %v6067, 0.0
      %v6180 = vadd.f32 %v6178, %v6179
      %v6181 = vsel %vm1595, %v6069, 0.0
      %v6182 = vadd.f32 %v6180, %v6181
      %v6183 = vsel %vm1595, %v6071, 0.0
      %v6184 = vadd.f32 %v6182, %v6183
      %v6185 = vsel %vm1595, %v6073, 0.0
      %v6186 = vadd.f32 %v6184, %v6185
      %v6187 = vsel %vm1595, %v6075, 0.0
      %v6188 = vadd.f32 %v6186, %v6187
      %v6189 = vsel %vm1595, %v6077, 0.0
      %v6190 = vadd.f32 %v6188, %v6189
      %v6191 = vsel %vm1595, %v6079, 0.0
      %v6192 = vadd.f32 %v6190, %v6191
      %v6193 = vsel %vm1595, %v6081, 0.0
      %v6194 = vadd.f32 %v6192, %v6193
      %v6195 = vsel %vm1595, %v6083, 0.0
      %v6196 = vadd.f32 %v6194, %v6195
      %v6197 = vsel %vm1595, %v6085, 0.0
      %v6198 = vadd.f32 %v6196, %v6197
      %v6199 = vsel %vm1595, %v6087, 0.0
      %v6200 = vadd.f32 %v6198, %v6199
      %v6201 = vsel %vm1595, %v6089, 0.0
      %v6202 = vadd.f32 %v6200, %v6201
      %v6203 = vsel %vm1595, %v6091, 0.0
      %v6204 = vadd.f32 %v6202, %v6203
      %v6205 = vsel %vm1595, %v6093, 0.0
      %v6206 = vadd.f32 %v6204, %v6205
      %v6207 = vsel %vm1595, %v6095, 0.0
      %v6208 = vadd.f32 %v6206, %v6207
      %v6209 = vsel %vm1595, %v6097, 0.0
      %v6210 = vadd.f32 %v6208, %v6209
      %v6211 = vsel %vm1595, %v6099, 0.0
      %v6212 = vadd.f32 %v6210, %v6211
      %v6213 = vsel %vm1595, %v6101, 0.0
      %v6214 = vadd.f32 %v6212, %v6213
      %v6215 = vsel %vm1595, %v6103, 0.0
      %v6216 = vadd.f32 %v6214, %v6215
      %v6217 = vsel %vm1595, %v6105, 0.0
      %v6218 = vadd.f32 %v6216, %v6217
      %v6219 = vsel %vm1595, %v6107, 0.0
      %v6220 = vadd.f32 %v6218, %v6219
      %v6221 = vsel %vm1595, %v6109, 0.0
      %v6222 = vadd.f32 %v6220, %v6221
      %v6223 = vsel %vm1595, %v6111, 0.0
      %v6224 = vadd.f32 %v6222, %v6223
      %v6225 = vsel %vm1595, %v6113, 0.0
      %v6226 = vadd.f32 %v6224, %v6225
      %v6227 = vsel %vm1595, %v6115, 0.0
      %v6228 = vadd.f32 %v6226, %v6227
      %v6229 = vsel %vm1595, %v6117, 0.0
      %v6230 = vadd.f32 %v6228, %v6229
      %v6231 = vsel %vm1595, %v6119, 0.0
      %v6232 = vadd.f32 %v6230, %v6231
      %v6233 = vsel %vm1595, %v6121, 0.0
      %v6234 = vadd.f32 %v6232, %v6233
      %v6235 = vsel %vm1595, %v6123, 0.0
      %v6236 = vadd.f32 %v6234, %v6235
      %vm6237 = vcmask 521216
      %v6238 = vsel %vm6237, %v6125, 0.0
      %v6239 = vadd.f32 %v6236, %v6238
      %v6240 = vrot.slane %v6239, 4
      %v6241 = vadd.f32 %v6239, %v6240
      %v6242 = vrot.slane %v6241, 2
      %v6243 = vadd.f32 %v6241, %v6242
      %v6244 = vrot.slane %v6243, 1
      %v6245 = vadd.f32 %v6243, %v6244
      %v6246 = vmul.f32 %v6167, 0.00390625
      %v6247 = vmul.f32 %v6245, 0.00390625
      %v6248 = vld [vmem:[%s9] sm:$0xff]
      %v6249 = vld [vmem:[%s9 + $0x8] sm:$0xff]
      %v6250 = vmul.f32 %v6248, %v6246
      %v6251 = vmul.f32 %v6249, %v6247
      %v6252 = vsel %vm1595, %v6251, 0.0
      %v6253 = vadd.f32 %v6250, %v6252
      %6254 = vadd.xlane.f32.xlu0 %v6253
      %v6255 = vpop.xlane.xlu0 %6254
      %v6256 = vld [vmem:[%s10] sm:$0xff]
      %v6257 = vadd.f32 %v6255, %v6256
      %v6258 = vmax.f32 %v6257, 0.0
      %v6259 = vld [vmem:[%s11] sm:$0xff]
      %v6260 = vld [vmem:[%s11 + $0x8] sm:$0xff]
      %6262 = vset.pattern.permute.xlu0 0
      %6263 = vperm.xlu0 %6262, %v6258
      %v6264 = vpop.permute.xlu0 %6263
      %v6266 = vmul.f32 %v6259, %v6264
      %v6267 = vmul.f32 %v6260, %v6264
      %v6268 = vrot.slane %v6266, 4
      %v6269 = vadd.f32 %v6266, %v6268
      %v6270 = vrot.slane %v6269, 2
      %v6271 = vadd.f32 %v6269, %v6270
      %v6272 = vrot.slane %v6271, 1
      %v6273 = vadd.f32 %v6271, %v6272
      %v6274 = vsel %vm1595, %v6267, 0.0
      %v6275 = vrot.slane %v6274, 4
      %v6276 = vadd.f32 %v6274, %v6275
      %v6277 = vrot.slane %v6276, 2
      %v6278 = vadd.f32 %v6276, %v6277
      %v6279 = vrot.slane %v6278, 1
      %v6280 = vadd.f32 %v6278, %v6279
      %v6281 = vld [vmem:[%s12] sm:$0x3]
      %v6283 = vlaneseq
      %v6284 = vshrl.u32 %v6283, 7
      %v6285 = vsub.s32 0, %v6284
      %v6286 = vrot.slane %v6281, %v6285
      %v6287 = vlaneseq
      %v6288 = vshrl.u32 %v6287, 7
      %v6289 = vsub.s32 1, %v6288
      %v6290 = vrot.slane %v6281, %v6289
      %v6293 = vadd.f32 %v6273, %v6286
      %v6294 = vadd.f32 %v6280, %v6290
      %v6295 = vxor.u32 %v6293, 2147483648
      %v6296 = vxor.u32 %v6294, 2147483648
      %v6297 = vmul.f32 %v6295, 1.442695
      %v6298 = vpow.pop %v6297
      %v6299 = vmul.f32 %v6296, 1.442695
      %v6300 = vpow.pop %v6299
      %v6301 = vadd.f32 %v6298, 1.0
      %v6302 = vadd.f32 %v6300, 1.0
      %v6303 = vrcp.pop %v6301
      %v6304 = vmul.f32 1.0, %v6303
      %v6305 = vrcp.pop %v6302
      %v6306 = vmul.f32 1.0, %v6305
      %v6307 = vlaneseq
      %v6308 = vshrl.u32 %v6307, 7
      %v6309 = vsub.s32 0, %v6308
      %v6310 = vrot.slane %v6304, %v6309
      %v6311 = vlaneseq
      %v6312 = vshrl.u32 %v6311, 7
      %v6313 = vsub.s32 0, %v6312
      %v6314 = vrot.slane %v6306, %v6313
      %v6315 = vmul.f32 %v5766, %v6310
      %v6316 = vmul.f32 %v5767, %v6314
      %v6317 = vmul.f32 %v5768, %v6310
      %v6318 = vmul.f32 %v5769, %v6314
      %v6319 = vmul.f32 %v5770, %v6310
      %v6320 = vmul.f32 %v5771, %v6314
      %v6321 = vmul.f32 %v5772, %v6310
      %v6322 = vmul.f32 %v5773, %v6314
      %v6323 = vmul.f32 %v5774, %v6310
      %v6324 = vmul.f32 %v5775, %v6314
      %v6325 = vmul.f32 %v5776, %v6310
      %v6326 = vmul.f32 %v5777, %v6314
      %v6327 = vmul.f32 %v5778, %v6310
      %v6328 = vmul.f32 %v5779, %v6314
      %v6329 = vmul.f32 %v5780, %v6310
      %v6330 = vmul.f32 %v5781, %v6314
      %v6331 = vmul.f32 %v5782, %v6310
      %v6332 = vmul.f32 %v5783, %v6314
      %v6333 = vmul.f32 %v5784, %v6310
      %v6334 = vmul.f32 %v5785, %v6314
      %v6335 = vmul.f32 %v5786, %v6310
      %v6336 = vmul.f32 %v5787, %v6314
      %v6337 = vmul.f32 %v5788, %v6310
      %v6338 = vmul.f32 %v5789, %v6314
      %v6339 = vmul.f32 %v5790, %v6310
      %v6340 = vmul.f32 %v5791, %v6314
      %v6341 = vmul.f32 %v5792, %v6310
      %v6342 = vmul.f32 %v5793, %v6314
      %v6343 = vmul.f32 %v5794, %v6310
      %v6344 = vmul.f32 %v5795, %v6314
      %v6345 = vmul.f32 %v5796, %v6310
      %v6346 = vmul.f32 %v5797, %v6314
      %v6347 = vmul.f32 %v5798, %v6310
      %v6348 = vmul.f32 %v5799, %v6314
      %v6349 = vmul.f32 %v5800, %v6310
      %v6350 = vmul.f32 %v5801, %v6314
      %v6351 = vmul.f32 %v5802, %v6310
      %v6352 = vmul.f32 %v5803, %v6314
      %v6353 = vmul.f32 %v5804, %v6310
      %v6354 = vmul.f32 %v5805, %v6314
      %v6355 = vmul.f32 %v5806, %v6310
      %v6356 = vmul.f32 %v5807, %v6314
      %v6357 = vmul.f32 %v5808, %v6310
      %v6358 = vmul.f32 %v5809, %v6314
      %v6359 = vmul.f32 %v5810, %v6310
      %v6360 = vmul.f32 %v5811, %v6314
      %v6361 = vmul.f32 %v5812, %v6310
      %v6362 = vmul.f32 %v5813, %v6314
      %v6363 = vmul.f32 %v5814, %v6310
      %v6364 = vmul.f32 %v5815, %v6314
      %v6365 = vmul.f32 %v5816, %v6310
      %v6366 = vmul.f32 %v5817, %v6314
      %v6367 = vmul.f32 %v5818, %v6310
      %v6368 = vmul.f32 %v5819, %v6314
      %v6369 = vmul.f32 %v5820, %v6310
      %v6370 = vmul.f32 %v5821, %v6314
      %v6371 = vmul.f32 %v5822, %v6310
      %v6372 = vmul.f32 %v5823, %v6314
      %v6373 = vmul.f32 %v5824, %v6310
      %v6374 = vmul.f32 %v5825, %v6314
      %v6375 = vmul.f32 %v5826, %v6310
      %v6376 = vmul.f32 %v5827, %v6314
      %v6377 = vmul.f32 %v5828, %v6310
      %v6378 = vmul.f32 %v5829, %v6314
      %v6379 = vmul.f32 %v5830, %v6310
      %v6380 = vmul.f32 %v5831, %v6314
      %v6381 = vmul.f32 %v5832, %v6310
      %v6382 = vmul.f32 %v5833, %v6314
      %v6383 = vmul.f32 %v5834, %v6310
      %v6384 = vmul.f32 %v5835, %v6314
      %v6385 = vmul.f32 %v5836, %v6310
      %v6386 = vmul.f32 %v5837, %v6314
      %v6387 = vpack.c.bf16 %v6317, %v6315
      %v6388 = vpack.c.bf16 %v6318, %v6316
      %v6389 = vpack.c.bf16 %v6321, %v6319
      %v6390 = vpack.c.bf16 %v6322, %v6320
      %v6391 = vpack.c.bf16 %v6325, %v6323
      %v6392 = vpack.c.bf16 %v6326, %v6324
      %v6393 = vpack.c.bf16 %v6329, %v6327
      %v6394 = vpack.c.bf16 %v6330, %v6328
      %v6395 = vpack.c.bf16 %v6333, %v6331
      %v6396 = vpack.c.bf16 %v6334, %v6332
      %v6397 = vpack.c.bf16 %v6337, %v6335
      %v6398 = vpack.c.bf16 %v6338, %v6336
      %v6399 = vpack.c.bf16 %v6341, %v6339
      %v6400 = vpack.c.bf16 %v6342, %v6340
      %v6401 = vpack.c.bf16 %v6345, %v6343
      %v6402 = vpack.c.bf16 %v6346, %v6344
      %v6403 = vpack.c.bf16 %v6349, %v6347
      %v6404 = vpack.c.bf16 %v6350, %v6348
      %v6405 = vpack.c.bf16 %v6353, %v6351
      %v6406 = vpack.c.bf16 %v6354, %v6352
      %v6407 = vpack.c.bf16 %v6357, %v6355
      %v6408 = vpack.c.bf16 %v6358, %v6356
      %v6409 = vpack.c.bf16 %v6361, %v6359
      %v6410 = vpack.c.bf16 %v6362, %v6360
      %v6411 = vpack.c.bf16 %v6365, %v6363
      %v6412 = vpack.c.bf16 %v6366, %v6364
      %v6413 = vpack.c.bf16 %v6369, %v6367
      %v6414 = vpack.c.bf16 %v6370, %v6368
      %v6415 = vpack.c.bf16 %v6373, %v6371
      %v6416 = vpack.c.bf16 %v6374, %v6372
      %v6417 = vpack.c.bf16 %v6377, %v6375
      %v6418 = vpack.c.bf16 %v6378, %v6376
      %v6419 = vpack.c.bf16 %v6381, %v6379
      %v6420 = vpack.c.bf16 %v6382, %v6380
      %v6421 = vpack.c.bf16 %v6385, %v6383
      %v6422 = vpack.c.bf16 %v6386, %v6384
      %v6423 = vld [vmem:[%s13] sm:$0xf]
      %v6424 = vld [vmem:[%s13 + $0x4] sm:$0xf]
      %v6425 = vld [vmem:[%s13 + $0x8] sm:$0xf]
      %v6426 = vld [vmem:[%s13 + $0xc] sm:$0xf]
      %v6427 = vld [vmem:[%s13 + $0x10] sm:$0xf]
      %v6428 = vld [vmem:[%s13 + $0x14] sm:$0xf]
      %v6429 = vld [vmem:[%s13 + $0x18] sm:$0xf]
      %v6430 = vld [vmem:[%s13 + $0x1c] sm:$0xf]
      %v6431 = vld [vmem:[%s13 + $0x20] sm:$0xf]
      %v6432 = vld [vmem:[%s13 + $0x24] sm:$0xf]
      %v6433 = vld [vmem:[%s13 + $0x28] sm:$0xf]
      %v6434 = vld [vmem:[%s13 + $0x2c] sm:$0xf]
      %v6435 = vld [vmem:[%s13 + $0x30] sm:$0xf]
      %v6436 = vld [vmem:[%s13 + $0x34] sm:$0xf]
      %v6437 = vld [vmem:[%s13 + $0x38] sm:$0xf]
      %v6438 = vld [vmem:[%s13 + $0x3c] sm:$0xf]
      %v6439 = vld [vmem:[%s13 + $0x40] sm:$0xf]
      %v6440 = vld [vmem:[%s13 + $0x44] sm:$0xf]
      %v6441 = vld [vmem:[%s13 + $0x48] sm:$0xf]
      %v6442 = vld [vmem:[%s13 + $0x4c] sm:$0xf]
      %v6443 = vld [vmem:[%s13 + $0x50] sm:$0xf]
      %v6444 = vld [vmem:[%s13 + $0x54] sm:$0xf]
      %v6445 = vld [vmem:[%s13 + $0x58] sm:$0xf]
      %v6446 = vld [vmem:[%s13 + $0x5c] sm:$0xf]
      %v6471 = vunpack.c.l.b16 %v6423
      %v6472 = vunpack.c.l.b16 %v6424
      %v6473 = vunpack.c.l.b16 %v6425
      %v6474 = vunpack.c.l.b16 %v6426
      %v6475 = vunpack.c.l.b16 %v6427
      %v6476 = vunpack.c.l.b16 %v6428
      %v6477 = vunpack.c.l.b16 %v6429
      %v6478 = vunpack.c.l.b16 %v6430
      %v6479 = vunpack.c.l.b16 %v6431
      %v6480 = vunpack.c.l.b16 %v6432
      %v6481 = vunpack.c.l.b16 %v6433
      %v6482 = vunpack.c.l.b16 %v6434
      %v6483 = vunpack.c.l.b16 %v6435
      %v6484 = vunpack.c.l.b16 %v6436
      %v6485 = vunpack.c.l.b16 %v6437
      %v6486 = vunpack.c.l.b16 %v6438
      %v6487 = vunpack.c.l.b16 %v6439
      %v6488 = vunpack.c.l.b16 %v6440
      %v6489 = vunpack.c.l.b16 %v6441
      %v6490 = vunpack.c.l.b16 %v6442
      %v6491 = vunpack.c.l.b16 %v6443
      %v6492 = vunpack.c.l.b16 %v6444
      %v6493 = vunpack.c.l.b16 %v6445
      %v6494 = vunpack.c.l.b16 %v6446
      %v6495 = vpack.c.b16 %v6472, %v6471
      %v6496 = vpack.c.b16 %v6474, %v6473
      %v6497 = vpack.c.b16 %v6476, %v6475
      %v6498 = vpack.c.b16 %v6478, %v6477
      %v6499 = vpack.c.b16 %v6480, %v6479
      %v6500 = vpack.c.b16 %v6482, %v6481
      %v6501 = vpack.c.b16 %v6484, %v6483
      %v6502 = vpack.c.b16 %v6486, %v6485
      %v6503 = vpack.c.b16 %v6488, %v6487
      %v6504 = vpack.c.b16 %v6490, %v6489
      %v6505 = vpack.c.b16 %v6492, %v6491
      %v6506 = vpack.c.b16 %v6494, %v6493
      %v6520 = vsel %vm1595, %v6388, 0
      %v6523 = vsel %vm1595, %v6390, 0
      %v6526 = vsel %vm1595, %v6392, 0
      %v6529 = vsel %vm1595, %v6394, 0
      %v6532 = vsel %vm1595, %v6396, 0
      %v6535 = vsel %vm1595, %v6398, 0
      %v6538 = vsel %vm1595, %v6400, 0
      %v6541 = vsel %vm1595, %v6402, 0
      %v6544 = vsel %vm1595, %v6404, 0
      %v6547 = vsel %vm1595, %v6406, 0
      %v6550 = vsel %vm1595, %v6408, 0
      %v6553 = vsel %vm1595, %v6410, 0
      %v6556 = vsel %vm1595, %v6412, 0
      %v6559 = vsel %vm1595, %v6414, 0
      %v6562 = vsel %vm1595, %v6416, 0
      %v6565 = vsel %vm1595, %v6418, 0
      %v6568 = vsel %vm1595, %v6420, 0
      %v6571 = vsel %vm1595, %v6422, 0
      %6573 = vmatprep.subr.bf16.mxu0 0
      %6574 = vmatpush1.bf16.msra.mxu0 %v6502
      %6575 = vmatprep.subr.bf16.mxu0 0
      %6576 = vmatpush1.bf16.msra.mxu0 %v6501
      %6577 = vmatprep.subr.bf16.mxu0 0
      %6578 = vmatpush1.bf16.msra.mxu0 %v6500
      %6579 = vmatprep.subr.bf16.mxu0 0
      %6580 = vmatpush1.bf16.msra.mxu0 %v6499
      %6581 = vmatprep.subr.bf16.mxu0 0
      %6582 = vmatpush1.bf16.msra.mxu0 %v6498
      %6583 = vmatprep.subr.bf16.mxu0 0
      %6584 = vmatpush1.bf16.msra.mxu0 %v6497
      %6585 = vmatprep.subr.bf16.mxu0 0
      %6586 = vmatpush1.bf16.msra.mxu0 %v6496
      %6587 = vmatprep.subr.bf16.mxu0 0
      %6588 = vmatpush1.bf16.msra.mxu0 %v6495
      %6589 = vmatprep.subr.bf16.mxu0 0
      %6590 = vmatpush2.bf16.msra.mxu0 0
      %6591 = vmatprep.subr.bf16.mxu0 0
      %6592 = vmatpush2.bf16.msra.mxu0 0
      %6593 = vmatprep.subr.bf16.mxu0 0
      %6594 = vmatpush2.bf16.msra.mxu0 0
      %6595 = vmatprep.subr.bf16.mxu0 0
      %6596 = vmatpush2.bf16.msra.mxu0 0
      %6597 = vmatprep.subr.bf16.mxu0 0
      %6598 = vmatpush2.bf16.msra.mxu0 %v6506
      %6599 = vmatprep.subr.bf16.mxu0 0
      %6600 = vmatpush2.bf16.msra.mxu0 %v6505
      %6601 = vmatprep.subr.bf16.mxu0 0
      %6602 = vmatpush2.bf16.msra.mxu0 %v6504
      %6603 = vmatprep.subr.bf16.mxu0 0
      %6604 = vmatpush2.bf16.msra.mxu0 %v6503
      %6605 = vmatprep.mubr.bf16.mxu0 %v6520
      %6606 = vmatmul.mubr.bf16.gmra.mxu0 %v6387
      %v6607 = vpop.f32.mrf.mxu0
      %v6608 = vadd.f32 0.0, %v6607
      %v6609 = vpop.f32.mrf.mxu0
      %v6610 = vpop.f32.mrf.mxu0
      %v6611 = vadd.f32 0.0, %v6610
      %v6612 = vpop.f32.mrf.mxu0
      %6613 = vmatprep.mubr.bf16.mxu0 %v6523
      %6614 = vmatmul.mubr.bf16.gmra.mxu0 %v6389
      %v6615 = vpop.f32.mrf.mxu0
      %v6616 = vadd.f32 0.0, %v6615
      %v6617 = vpop.f32.mrf.mxu0
      %v6618 = vpop.f32.mrf.mxu0
      %v6619 = vadd.f32 0.0, %v6618
      %v6620 = vpop.f32.mrf.mxu0
      %6621 = vmatprep.mubr.bf16.mxu0 %v6526
      %6622 = vmatmul.mubr.bf16.gmra.mxu0 %v6391
      %v6623 = vpop.f32.mrf.mxu0
      %v6624 = vadd.f32 0.0, %v6623
      %v6625 = vpop.f32.mrf.mxu0
      %v6626 = vpop.f32.mrf.mxu0
      %v6627 = vadd.f32 0.0, %v6626
      %v6628 = vpop.f32.mrf.mxu0
      %6629 = vmatprep.mubr.bf16.mxu0 %v6529
      %6630 = vmatmul.mubr.bf16.gmra.mxu0 %v6393
      %v6631 = vpop.f32.mrf.mxu0
      %v6632 = vadd.f32 0.0, %v6631
      %v6633 = vpop.f32.mrf.mxu0
      %v6634 = vpop.f32.mrf.mxu0
      %v6635 = vadd.f32 0.0, %v6634
      %v6636 = vpop.f32.mrf.mxu0
      %6637 = vmatprep.mubr.bf16.mxu0 %v6532
      %6638 = vmatmul.mubr.bf16.gmra.mxu0 %v6395
      %v6639 = vpop.f32.mrf.mxu0
      %v6640 = vadd.f32 0.0, %v6639
      %v6641 = vpop.f32.mrf.mxu0
      %v6642 = vpop.f32.mrf.mxu0
      %v6643 = vadd.f32 0.0, %v6642
      %v6644 = vpop.f32.mrf.mxu0
      %6645 = vmatprep.mubr.bf16.mxu0 %v6535
      %6646 = vmatmul.mubr.bf16.gmra.mxu0 %v6397
      %v6647 = vpop.f32.mrf.mxu0
      %v6648 = vadd.f32 0.0, %v6647
      %v6649 = vpop.f32.mrf.mxu0
      %v6650 = vpop.f32.mrf.mxu0
      %v6651 = vadd.f32 0.0, %v6650
      %v6652 = vpop.f32.mrf.mxu0
      %6653 = vmatprep.mubr.bf16.mxu0 %v6538
      %6654 = vmatmul.mubr.bf16.gmra.mxu0 %v6399
      %v6655 = vpop.f32.mrf.mxu0
      %v6656 = vadd.f32 0.0, %v6655
      %v6657 = vpop.f32.mrf.mxu0
      %v6658 = vpop.f32.mrf.mxu0
      %v6659 = vadd.f32 0.0, %v6658
      %v6660 = vpop.f32.mrf.mxu0
      %6661 = vmatprep.mubr.bf16.mxu0 %v6541
      %6662 = vmatmul.mubr.bf16.gmra.mxu0 %v6401
      %v6663 = vpop.f32.mrf.mxu0
      %v6664 = vadd.f32 0.0, %v6663
      %v6665 = vpop.f32.mrf.mxu0
      %v6666 = vpop.f32.mrf.mxu0
      %v6667 = vadd.f32 0.0, %v6666
      %v6668 = vpop.f32.mrf.mxu0
      %6669 = vmatprep.mubr.bf16.mxu0 %v6544
      %6670 = vmatmul.mubr.bf16.gmra.mxu0 %v6403
      %v6671 = vpop.f32.mrf.mxu0
      %v6672 = vadd.f32 0.0, %v6671
      %v6673 = vpop.f32.mrf.mxu0
      %v6674 = vpop.f32.mrf.mxu0
      %v6675 = vadd.f32 0.0, %v6674
      %v6676 = vpop.f32.mrf.mxu0
      %6677 = vmatprep.mubr.bf16.mxu0 %v6547
      %6678 = vmatmul.mubr.bf16.gmra.mxu0 %v6405
      %v6679 = vpop.f32.mrf.mxu0
      %v6680 = vadd.f32 0.0, %v6679
      %v6681 = vpop.f32.mrf.mxu0
      %v6682 = vpop.f32.mrf.mxu0
      %v6683 = vadd.f32 0.0, %v6682
      %v6684 = vpop.f32.mrf.mxu0
      %6685 = vmatprep.mubr.bf16.mxu0 %v6550
      %6686 = vmatmul.mubr.bf16.gmra.mxu0 %v6407
      %v6687 = vpop.f32.mrf.mxu0
      %v6688 = vadd.f32 0.0, %v6687
      %v6689 = vpop.f32.mrf.mxu0
      %v6690 = vpop.f32.mrf.mxu0
      %v6691 = vadd.f32 0.0, %v6690
      %v6692 = vpop.f32.mrf.mxu0
      %6693 = vmatprep.mubr.bf16.mxu0 %v6553
      %6694 = vmatmul.mubr.bf16.gmra.mxu0 %v6409
      %v6695 = vpop.f32.mrf.mxu0
      %v6696 = vadd.f32 0.0, %v6695
      %v6697 = vpop.f32.mrf.mxu0
      %v6698 = vpop.f32.mrf.mxu0
      %v6699 = vadd.f32 0.0, %v6698
      %v6700 = vpop.f32.mrf.mxu0
      %6701 = vmatprep.mubr.bf16.mxu0 %v6556
      %6702 = vmatmul.mubr.bf16.gmra.mxu0 %v6411
      %v6703 = vpop.f32.mrf.mxu0
      %v6704 = vadd.f32 0.0, %v6703
      %v6705 = vpop.f32.mrf.mxu0
      %v6706 = vpop.f32.mrf.mxu0
      %v6707 = vadd.f32 0.0, %v6706
      %v6708 = vpop.f32.mrf.mxu0
      %6709 = vmatprep.mubr.bf16.mxu0 %v6559
      %6710 = vmatmul.mubr.bf16.gmra.mxu0 %v6413
      %v6711 = vpop.f32.mrf.mxu0
      %v6712 = vadd.f32 0.0, %v6711
      %v6713 = vpop.f32.mrf.mxu0
      %v6714 = vpop.f32.mrf.mxu0
      %v6715 = vadd.f32 0.0, %v6714
      %v6716 = vpop.f32.mrf.mxu0
      %6717 = vmatprep.mubr.bf16.mxu0 %v6562
      %6718 = vmatmul.mubr.bf16.gmra.mxu0 %v6415
      %v6719 = vpop.f32.mrf.mxu0
      %v6720 = vadd.f32 0.0, %v6719
      %v6721 = vpop.f32.mrf.mxu0
      %v6722 = vpop.f32.mrf.mxu0
      %v6723 = vadd.f32 0.0, %v6722
      %v6724 = vpop.f32.mrf.mxu0
      %6725 = vmatprep.mubr.bf16.mxu0 %v6565
      %6726 = vmatmul.mubr.bf16.gmra.mxu0 %v6417
      %v6727 = vpop.f32.mrf.mxu0
      %v6728 = vadd.f32 0.0, %v6727
      %v6729 = vpop.f32.mrf.mxu0
      %v6730 = vpop.f32.mrf.mxu0
      %v6731 = vadd.f32 0.0, %v6730
      %v6732 = vpop.f32.mrf.mxu0
      %6733 = vmatprep.mubr.bf16.mxu0 %v6568
      %6734 = vmatmul.mubr.bf16.gmra.mxu0 %v6419
      %v6735 = vpop.f32.mrf.mxu0
      %v6736 = vadd.f32 0.0, %v6735
      %v6737 = vpop.f32.mrf.mxu0
      %v6738 = vpop.f32.mrf.mxu0
      %v6739 = vadd.f32 0.0, %v6738
      %v6740 = vpop.f32.mrf.mxu0
      %6741 = vmatprep.mubr.bf16.mxu0 %v6571
      %6742 = vmatmul.mubr.bf16.gmra.mxu0 %v6421
      %v6743 = vpop.f32.mrf.mxu0
      %v6744 = vadd.f32 0.0, %v6743
      %v6745 = vpop.f32.mrf.mxu0
      %v6746 = vpop.f32.mrf.mxu0
      %v6747 = vadd.f32 0.0, %v6746
      %v6748 = vpop.f32.mrf.mxu0
      %6749 = vdwg.mxu0
      %v6750 = vld [vmem:[%s14] sm:$0x1]
      %v6752 = vlaneseq
      %v6753 = vshrl.u32 %v6752, 7
      %v6754 = vsub.s32 0, %v6753
      %v6755 = vrot.slane %v6750, %v6754
      %v6757 = vmul.f32 %v6608, %v6755
      %v6758 = vmul.f32 %v6611, %v6755
      %v6759 = vmul.f32 %v6616, %v6755
      %v6760 = vmul.f32 %v6619, %v6755
      %v6761 = vmul.f32 %v6624, %v6755
      %v6762 = vmul.f32 %v6627, %v6755
      %v6763 = vmul.f32 %v6632, %v6755
      %v6764 = vmul.f32 %v6635, %v6755
      %v6765 = vmul.f32 %v6640, %v6755
      %v6766 = vmul.f32 %v6643, %v6755
      %v6767 = vmul.f32 %v6648, %v6755
      %v6768 = vmul.f32 %v6651, %v6755
      %v6769 = vmul.f32 %v6656, %v6755
      %v6770 = vmul.f32 %v6659, %v6755
      %v6771 = vmul.f32 %v6664, %v6755
      %v6772 = vmul.f32 %v6667, %v6755
      %v6773 = vmul.f32 %v6672, %v6755
      %v6774 = vmul.f32 %v6675, %v6755
      %v6775 = vmul.f32 %v6680, %v6755
      %v6776 = vmul.f32 %v6683, %v6755
      %v6777 = vmul.f32 %v6688, %v6755
      %v6778 = vmul.f32 %v6691, %v6755
      %v6779 = vmul.f32 %v6696, %v6755
      %v6780 = vmul.f32 %v6699, %v6755
      %v6781 = vmul.f32 %v6704, %v6755
      %v6782 = vmul.f32 %v6707, %v6755
      %v6783 = vmul.f32 %v6712, %v6755
      %v6784 = vmul.f32 %v6715, %v6755
      %v6785 = vmul.f32 %v6720, %v6755
      %v6786 = vmul.f32 %v6723, %v6755
      %v6787 = vmul.f32 %v6728, %v6755
      %v6788 = vmul.f32 %v6731, %v6755
      %v6789 = vmul.f32 %v6736, %v6755
      %v6790 = vmul.f32 %v6739, %v6755
      %v6791 = vmul.f32 %v6744, %v6755
      %v6792 = vmul.f32 %v6747, %v6755
      %v6793 = vld [vmem:[%s15] sm:$0x1]
      %v6795 = vlaneseq
      %v6796 = vshrl.u32 %v6795, 7
      %v6797 = vsub.s32 0, %v6796
      %v6798 = vrot.slane %v6793, %v6797
      %v6800 = vadd.f32 %v6757, %v6798
      %v6801 = vadd.f32 %v6758, %v6798
      %v6802 = vadd.f32 %v6759, %v6798
      %v6803 = vadd.f32 %v6760, %v6798
      %v6804 = vadd.f32 %v6761, %v6798
      %v6805 = vadd.f32 %v6762, %v6798
      %v6806 = vadd.f32 %v6763, %v6798
      %v6807 = vadd.f32 %v6764, %v6798
      %v6808 = vadd.f32 %v6765, %v6798
      %v6809 = vadd.f32 %v6766, %v6798
      %v6810 = vadd.f32 %v6767, %v6798
      %v6811 = vadd.f32 %v6768, %v6798
      %v6812 = vadd.f32 %v6769, %v6798
      %v6813 = vadd.f32 %v6770, %v6798
      %v6814 = vadd.f32 %v6771, %v6798
      %v6815 = vadd.f32 %v6772, %v6798
      %v6816 = vadd.f32 %v6773, %v6798
      %v6817 = vadd.f32 %v6774, %v6798
      %v6818 = vadd.f32 %v6775, %v6798
      %v6819 = vadd.f32 %v6776, %v6798
      %v6820 = vadd.f32 %v6777, %v6798
      %v6821 = vadd.f32 %v6778, %v6798
      %v6822 = vadd.f32 %v6779, %v6798
      %v6823 = vadd.f32 %v6780, %v6798
      %v6824 = vadd.f32 %v6781, %v6798
      %v6825 = vadd.f32 %v6782, %v6798
      %v6826 = vadd.f32 %v6783, %v6798
      %v6827 = vadd.f32 %v6784, %v6798
      %v6828 = vadd.f32 %v6785, %v6798
      %v6829 = vadd.f32 %v6786, %v6798
      %v6830 = vadd.f32 %v6787, %v6798
      %v6831 = vadd.f32 %v6788, %v6798
      %v6832 = vadd.f32 %v6789, %v6798
      %v6833 = vadd.f32 %v6790, %v6798
      %v6834 = vadd.f32 %v6791, %v6798
      %v6835 = vadd.f32 %v6792, %v6798
      %v6836 = vld [vmem:[%s516 + $0x13] sm:$0xff]
      %v6837 = vld [vmem:[%s516 + $0x1b] sm:$0xff]
      %v6838 = vld [vmem:[%s516 + $0x23] sm:$0xff]
      %v6839 = vld [vmem:[%s516 + $0x2b] sm:$0xff]
      %v6840 = vld [vmem:[%s516 + $0x33] sm:$0xff]
      %v6841 = vld [vmem:[%s516 + $0x3b] sm:$0xff]
      %v6842 = vld [vmem:[%s516 + $0x43] sm:$0xff]
      %v6843 = vld [vmem:[%s516 + $0x4b] sm:$0xff]
      %v6844 = vld [vmem:[%s516 + $0x53] sm:$0xff]
      %v6845 = vld [vmem:[%s516 + $0x5b] sm:$0xff]
      %v6846 = vld [vmem:[%s516 + $0x63] sm:$0xff]
      %v6847 = vld [vmem:[%s516 + $0x6b] sm:$0xff]
      %v6848 = vld [vmem:[%s516 + $0x73] sm:$0xff]
      %v6849 = vld [vmem:[%s516 + $0x7b] sm:$0xff]
      %v6850 = vld [vmem:[%s516 + $0x83] sm:$0xff]
      %v6851 = vld [vmem:[%s516 + $0x8b] sm:$0xff]
      %v6852 = vld [vmem:[%s516 + $0x93] sm:$0xff]
      %v6853 = vld [vmem:[%s516 + $0x9b] sm:$0xff]
      %v6854 = vld [vmem:[%s516 + $0xa3] sm:$0xff]
      %v6855 = vld [vmem:[%s516 + $0xab] sm:$0xff]
      %v6856 = vld [vmem:[%s516 + $0xb3] sm:$0xff]
      %v6857 = vld [vmem:[%s516 + $0xbb] sm:$0xff]
      %v6858 = vld [vmem:[%s516 + $0xc3] sm:$0xff]
      %v6859 = vld [vmem:[%s516 + $0xcb] sm:$0xff]
      %v6860 = vld [vmem:[%s516 + $0xd3] sm:$0xff]
      %v6861 = vld [vmem:[%s516 + $0xdb] sm:$0xff]
      %v6862 = vld [vmem:[%s516 + $0xe3] sm:$0xff]
      %v6863 = vld [vmem:[%s516 + $0xeb] sm:$0xff]
      %v6864 = vld [vmem:[%s516 + $0xf3] sm:$0xff]
      %v6865 = vld [vmem:[%s516 + $0xfb] sm:$0xff]
      %v6866 = vld [vmem:[%s516 + $0x103] sm:$0xff]
      %v6867 = vld [vmem:[%s516 + $0x10b] sm:$0xff]
      %v6868 = vld [vmem:[%s516 + $0x113] sm:$0xff]
      %v6869 = vld [vmem:[%s516 + $0x11b] sm:$0xff]
      %v6870 = vld [vmem:[%s516 + $0x123] sm:$0xff]
      %v6871 = vld [vmem:[%s516 + $0x12b] sm:$0x3f]
      %v6872 = vadd.f32 %v6800, %v6836
      %v6873 = vadd.f32 %v6801, %v6837
      %v6874 = vadd.f32 %v6802, %v6838
      %v6875 = vadd.f32 %v6803, %v6839
      %v6876 = vadd.f32 %v6804, %v6840
      %v6877 = vadd.f32 %v6805, %v6841
      %v6878 = vadd.f32 %v6806, %v6842
      %v6879 = vadd.f32 %v6807, %v6843
      %v6880 = vadd.f32 %v6808, %v6844
      %v6881 = vadd.f32 %v6809, %v6845
      %v6882 = vadd.f32 %v6810, %v6846
      %v6883 = vadd.f32 %v6811, %v6847
      %v6884 = vadd.f32 %v6812, %v6848
      %v6885 = vadd.f32 %v6813, %v6849
      %v6886 = vadd.f32 %v6814, %v6850
      %v6887 = vadd.f32 %v6815, %v6851
      %v6888 = vadd.f32 %v6816, %v6852
      %v6889 = vadd.f32 %v6817, %v6853
      %v6890 = vadd.f32 %v6818, %v6854
      %v6891 = vadd.f32 %v6819, %v6855
      %v6892 = vadd.f32 %v6820, %v6856
      %v6893 = vadd.f32 %v6821, %v6857
      %v6894 = vadd.f32 %v6822, %v6858
      %v6895 = vadd.f32 %v6823, %v6859
      %v6896 = vadd.f32 %v6824, %v6860
      %v6897 = vadd.f32 %v6825, %v6861
      %v6898 = vadd.f32 %v6826, %v6862
      %v6899 = vadd.f32 %v6827, %v6863
      %v6900 = vadd.f32 %v6828, %v6864
      %v6901 = vadd.f32 %v6829, %v6865
      %v6902 = vadd.f32 %v6830, %v6866
      %v6903 = vadd.f32 %v6831, %v6867
      %v6904 = vadd.f32 %v6832, %v6868
      %v6905 = vadd.f32 %v6833, %v6869
      %v6906 = vadd.f32 %v6834, %v6870
      %v6907 = vadd.f32 %v6835, %v6871
      %6908 = vst.msk [vmem:[%s521] sm:$0xff] %vm609, %v6872
      %6909 = vst.msk [vmem:[%s521 + $0x8] sm:$0xff] %vm609, %v6873
      %6910 = vst.msk [vmem:[%s521 + $0x10] sm:$0xff] %vm609, %v6874
      %6911 = vst.msk [vmem:[%s521 + $0x18] sm:$0xff] %vm609, %v6875
      %6912 = vst.msk [vmem:[%s521 + $0x20] sm:$0xff] %vm609, %v6876
      %6913 = vst.msk [vmem:[%s521 + $0x28] sm:$0xff] %vm609, %v6877
      %6914 = vst.msk [vmem:[%s521 + $0x30] sm:$0xff] %vm609, %v6878
      %6915 = vst.msk [vmem:[%s521 + $0x38] sm:$0xff] %vm609, %v6879
      %6916 = vst.msk [vmem:[%s521 + $0x40] sm:$0xff] %vm609, %v6880
      %6917 = vst.msk [vmem:[%s521 + $0x48] sm:$0xff] %vm609, %v6881
      %6918 = vst.msk [vmem:[%s521 + $0x50] sm:$0xff] %vm609, %v6882
      %6919 = vst.msk [vmem:[%s521 + $0x58] sm:$0xff] %vm609, %v6883
      %6920 = vst.msk [vmem:[%s521 + $0x60] sm:$0xff] %vm609, %v6884
      %6921 = vst.msk [vmem:[%s521 + $0x68] sm:$0xff] %vm609, %v6885
      %6922 = vst.msk [vmem:[%s521 + $0x70] sm:$0xff] %vm609, %v6886
      %6923 = vst.msk [vmem:[%s521 + $0x78] sm:$0xff] %vm609, %v6887
      %6924 = vst.msk [vmem:[%s521 + $0x80] sm:$0xff] %vm609, %v6888
      %6925 = vst.msk [vmem:[%s521 + $0x88] sm:$0xff] %vm609, %v6889
      %6926 = vst.msk [vmem:[%s521 + $0x90] sm:$0xff] %vm609, %v6890
      %6927 = vst.msk [vmem:[%s521 + $0x98] sm:$0xff] %vm609, %v6891
      %6928 = vst.msk [vmem:[%s521 + $0xa0] sm:$0xff] %vm609, %v6892
      %6929 = vst.msk [vmem:[%s521 + $0xa8] sm:$0xff] %vm609, %v6893
      %6930 = vst.msk [vmem:[%s521 + $0xb0] sm:$0xff] %vm609, %v6894
      %6931 = vst.msk [vmem:[%s521 + $0xb8] sm:$0xff] %vm609, %v6895
      %6932 = vst.msk [vmem:[%s521 + $0xc0] sm:$0xff] %vm609, %v6896
      %6933 = vst.msk [vmem:[%s521 + $0xc8] sm:$0xff] %vm609, %v6897
      %6934 = vst.msk [vmem:[%s521 + $0xd0] sm:$0xff] %vm609, %v6898
      %6935 = vst.msk [vmem:[%s521 + $0xd8] sm:$0xff] %vm609, %v6899
      %6936 = vst.msk [vmem:[%s521 + $0xe0] sm:$0xff] %vm609, %v6900
      %6937 = vst.msk [vmem:[%s521 + $0xe8] sm:$0xff] %vm609, %v6901
      %6938 = vst.msk [vmem:[%s521 + $0xf0] sm:$0xff] %vm609, %v6902
      %6939 = vst.msk [vmem:[%s521 + $0xf8] sm:$0xff] %vm609, %v6903
      %6940 = vst.msk [vmem:[%s521 + $0x100] sm:$0xff] %vm609, %v6904
      %6941 = vst.msk [vmem:[%s521 + $0x108] sm:$0xff] %vm609, %v6905
      %6942 = vst.msk [vmem:[%s521 + $0x110] sm:$0xff] %vm609, %v6906
      %vm6943 = vcmask 259072
      %6944 = vst.msk [vmem:[%s521 + $0x118] sm:$0x3f] %vm6943, %v6907
      %p6945 = scmp.lt.s32.totalorder %s27, 1
      %s6946 = scalar_select %p6945, %s27, 1
      %s6947 = smul.addr %s6946, 36
      %s6948 = smul.addr %s6947, 8
      %s6949 = scalar_lea.vmem %s16, %s6948
      // Predicated region
      $region85: #{mbconv_block.1} parent=83 // pred_check
        %p6950 = pneg %p386
      $region86: #{mbconv_block.1} parent=83 // pred_check_branch
        %6952 = sbr.rel (%p6950) target = $region88
      $region87: #{mbconv_block.1} parent=83 // pred_region
        _
      $region88: #{mbconv_block.1} parent=83 // pred_fallthru
        _
    $region84: #{mbconv_block.1} parent=5 // pred_fallthru
      _
    %p6953 = scmp.le.s32.totalorder 2, %s22
    // Predicated region
    $region89: #{mbconv_block.1} parent=5 // pred_check
      %p6954 = pneg %p6953
    $region90: #{mbconv_block.1} parent=5 // pred_check_branch
      %6956 = sbr.rel (%p6954) target = $region92
    $region91: #{mbconv_block.1} parent=5 // pred_region
      %s6957 = ssub.s32 %s22, 2
      // Predicated region
      $region93: #{mbconv_block.1} parent=91 // pred_check
        %p6958 = pneg %p392
      $region94: #{mbconv_block.1} parent=91 // pred_check_branch
        %6960 = sbr.rel (%p6958) target = $region96
      $region95: #{mbconv_block.1} parent=91 // pred_region
        %p6961 = scmp.lt.s32.totalorder %s28, 1
        %s6962 = scalar_select %p6961, %s28, 1
        %s6963 = smul.addr %s6962, 36
        %s6964 = smul.addr %s6963, 8
        %s6965 = scalar_lea.vmem %s16, %s6964
      $region96: #{mbconv_block.1} parent=91 // pred_fallthru
        _
    $region92: #{mbconv_block.1} parent=5 // pred_fallthru
      _
  $region6: #{mbconv_block.1} parent=0 // loop_footer
    %s26 = sadd.s32 1, %s22
  $region7: #{mbconv_block.1} parent=0 // loop_footer_branch
    %21 = sbr.rel target = $region3
  $region8: #{mbconv_block.1} parent=0 // loop_exit
    _

</llo_original>
